<compile_context>
chip_gen: v5e
topology: v5e:2x2
jax: 0.10.0
libtpu: 0.0.40
codegen_flags: <defaults>
</compile_context>

<pallas_src>
import functools

import jax
import jax.numpy as jnp
import numpy as np
from jax.experimental import pallas as pl
from jax.experimental.pallas import tpu as pltpu

LN_EPS = 1e-5
NEG_INF = -1e9


# ----------------------------------------------------------------------------
# helpers
# ----------------------------------------------------------------------------
def _round_up(x, m):
    return (x + m - 1) // m * m


def _vmem_limit_bytes():
    """Generation-aware scoped VMEM limit (v5e/v6e: 128 MiB, v7x: 64 MiB)."""
    try:
        cap = int(pltpu.get_tpu_info().vmem_capacity_bytes)
    except Exception:  # pragma: no cover - conservative fallback
        cap = 64 * 1024 * 1024
    return max(32 * 1024 * 1024, min(cap * 3 // 4, 96 * 1024 * 1024))


VMEM_LIMIT = _vmem_limit_bytes()


def _layer_norm(x, g, b):
    mu = jnp.mean(x, axis=-1, keepdims=True)
    var = jnp.mean((x - mu) ** 2, axis=-1, keepdims=True)
    return (x - mu) * jax.lax.rsqrt(var + LN_EPS) * g + b


def _proj(x, w, b, mxu_dtype):
    # f32 accumulation on the MXU; w is already stored in mxu_dtype.
    return jnp.dot(x.astype(mxu_dtype), w, preferred_element_type=jnp.float32) + b


def _mha_heads(q, k, v, wo, n_head, d_k, keep, mxu_dtype):
    """Per-head attention on 2-D tiles; merge folded into the out-projection.

    q: (Sq, H*dk), k/v: (Skv, H*dk), wo: (H, dk, D) head-major.
    Only one (Sq, Skv) score tile is live at a time.
    """
    scale = 1.0 / (d_k ** 0.5)
    out = None
    for h in range(n_head):
        sl = slice(h * d_k, (h + 1) * d_k)
        qh = (q[:, sl] * scale).astype(mxu_dtype)     # scale on q, not on scores
        kh = k[:, sl].astype(mxu_dtype)
        vh = v[:, sl].astype(mxu_dtype)
        s = jax.lax.dot_general(qh, kh, (((1,), (1,)), ((), ())),
                                preferred_element_type=jnp.float32)
        if keep is not None:
            s = jnp.where(keep, s, NEG_INF)
        m = jnp.max(s, axis=-1, keepdims=True)
        p = jnp.exp(s - m)
        p = p * pl.reciprocal(jnp.sum(p, axis=-1, keepdims=True), approx=True)
        ctx = jnp.dot(p.astype(mxu_dtype), vh, preferred_element_type=jnp.float32)
        oh = jnp.dot(ctx.astype(mxu_dtype), wo[h], preferred_element_type=jnp.float32)
        out = oh if out is None else out + oh
    return out


# ----------------------------------------------------------------------------
# kernels
# ----------------------------------------------------------------------------
def _decoder_stack_kernel(pad_ref, emb_ref, pos_ref, ng_ref, nb_ref, enc_ref,
                          s_wqkv, s_bqkv, s_wo, s_bo, s_g, s_b,
                          c_wq, c_bq, c_wkv, c_bkv, c_wo, c_bo, c_g, c_b,
                          f_w1, f_b1, f_w2, f_b2, f_g, f_b,
                          o_ref, mask_ref, *, n_head, d_k, d_model, mxu_dtype):
    """Whole decoder stack for one (batch element, layer) grid point.

    grid = (B, L); the output block index is constant over L, so the residual
    stream stays resident in VMEM across all layers of one batch element.
    """
    l = pl.program_id(1)
    hdk = n_head * d_k
    S = o_ref.shape[1]

    @pl.when(l == 0)
    def _prologue():
        # causal + key-not-pad keep mask, built once per batch element.
        row = jax.lax.broadcasted_iota(jnp.int32, (S, S), 0)
        col = jax.lax.broadcasted_iota(jnp.int32, (S, S), 1)
        keep0 = (row >= col) & (pad_ref[0] != 0)           # (S,S) & (1,S)
        mask_ref[...] = keep0.astype(jnp.float32)
        # LayerNorm(pos_enc(dropout(emb) * sqrt(d_model))); dropout = identity.
        x0 = emb_ref[0] * (d_model ** 0.5) + pos_ref[...]
        o_ref[0] = _layer_norm(x0, ng_ref[...], nb_ref[...])

    x = o_ref[0]                   # residual from previous layer (VMEM resident)
    enc = enc_ref[0]               # (S_enc, D)
    keep = mask_ref[...] != 0.0    # (S, S) bool, shared by all heads / layers

    # ---- self attention + residual + LN ----
    qkv = _proj(x, s_wqkv[0], s_bqkv[0], mxu_dtype)        # (S, 3*hdk) lane-dense
    attn = _mha_heads(qkv[:, :hdk], qkv[:, hdk:2 * hdk], qkv[:, 2 * hdk:],
                      s_wo[0], n_head, d_k, keep, mxu_dtype)
    x = _layer_norm(attn + s_bo[0] + x, s_g[0], s_b[0])

    # ---- cross attention (enc_mask=None -> unmasked) + residual + LN ----
    q = _proj(x, c_wq[0], c_bq[0], mxu_dtype)              # (S, hdk)
    kv = _proj(enc, c_wkv[0], c_bkv[0], mxu_dtype)         # (S_enc, 2*hdk)
    attn = _mha_heads(q, kv[:, :hdk], kv[:, hdk:], c_wo[0],
                      n_head, d_k, None, mxu_dtype)
    x = _layer_norm(attn + c_bo[0] + x, c_g[0], c_b[0])

    # ---- position-wise FFN + residual + LN ----
    h = jnp.maximum(_proj(x, f_w1[0], f_b1[0], mxu_dtype), 0.0)
    y = _proj(h, f_w2[0], f_b2[0], mxu_dtype)
    o_ref[0] = _layer_norm(y + x, f_g[0], f_b[0])


def _head_kernel(x_ref, w_ref, b_ref, o_ref, *, n_vocab, mxu_dtype):
    # Fused [cls | box | pad] head; one lane-dense matmul, sigmoid on box cols.
    y = jnp.dot(x_ref[...].astype(mxu_dtype), w_ref[...],
                preferred_element_type=jnp.float32) + b_ref[...]
    col = jax.lax.broadcasted_iota(jnp.int32, y.shape, 1)
    is_box = (col >= n_vocab) & (col < n_vocab + 4)
    o_ref[...] = jnp.where(is_box, jax.nn.sigmoid(y), y)


# ----------------------------------------------------------------------------
# pallas_call wrappers
# ----------------------------------------------------------------------------
def decoder_stack_call(pad, emb, pos, ng, nb, enc, w, *,
                       n_head, d_k, d_model, mxu_dtype):
    B, S, D = emb.shape
    S_enc = enc.shape[1]
    L = w["s_wqkv"].shape[0]
    hdk = n_head * d_k
    d_ffn = w["f_w1"].shape[-1]

    def bspec(shape):                       # per-batch block, constant over L
        z = (0,) * len(shape)
        return pl.BlockSpec((1,) + shape, lambda b, l: (b,) + z)

    def cspec(shape):                       # fully constant block
        z = (0,) * len(shape)
        return pl.BlockSpec(shape, lambda b, l: z)

    def lspec(shape):                       # per-layer block (double-buffered
        z = (0,) * len(shape)               # -> next layer's weights prefetch)
        return pl.BlockSpec((1,) + shape, lambda b, l: (l,) + z)

    weight_order = ["s_wqkv", "s_bqkv", "s_wo", "s_bo", "s_g", "s_b",
                    "c_wq", "c_bq", "c_wkv", "c_bkv", "c_wo", "c_bo", "c_g", "c_b",
                    "f_w1", "f_b1", "f_w2", "f_b2", "f_g", "f_b"]
    w_operands = [w[k] for k in weight_order]
    w_specs = [lspec(tuple(w[k].shape[1:])) for k in weight_order]

    w_bytes = sum(int(a.size) * a.dtype.itemsize for a in w_operands)
    flops = int(2 * B * L * (S * D * 3 * hdk + 2 * S * S * hdk + S * hdk * D
                             + S * D * hdk + S_enc * D * 2 * hdk
                             + 2 * S * S_enc * hdk + S * hdk * D
                             + 2 * S * D * d_ffn))
    transcendentals = int(B * L * n_head * (S * S + S * S_enc))
    bytes_accessed = int(4 * (2 * B * S * D + B * S_enc * D + B * S) + B * w_bytes)

    return pl.pallas_call(
        functools.partial(_decoder_stack_kernel, n_head=n_head, d_k=d_k,
                          d_model=d_model, mxu_dtype=mxu_dtype),
        out_shape=jax.ShapeDtypeStruct((B, S, D), jnp.float32),
        grid=(B, L),
        in_specs=[bspec((1, S)),            # pad flags (int32)
                  bspec((S, D)),            # embedded tokens
                  cspec((S, D)),            # positional table (no B broadcast)
                  cspec((1, D)),            # input-norm gamma
                  cspec((1, D)),            # input-norm beta
                  bspec((S_enc, D))] + w_specs,
        out_specs=pl.BlockSpec((1, S, D), lambda b, l: (b, 0, 0)),
        scratch_shapes=[pltpu.VMEM((S, S), jnp.float32)],   # keep mask
        compiler_params=pltpu.CompilerParams(
            # NOTE: with B as the only parallel axis, keep B >= 2 (and even)
            # for v7x's two TensorCores.
            dimension_semantics=("parallel", "arbitrary"),
            vmem_limit_bytes=VMEM_LIMIT),
        cost_estimate=pl.CostEstimate(flops=flops,
                                      transcendentals=transcendentals,
                                      bytes_accessed=bytes_accessed),
    )(pad, emb, pos, ng, nb, enc, *w_operands)


def head_call(x2d, cls_w, box_w, box_b, mxu_dtype):
    n, d = x2d.shape
    n_vocab = cls_w.shape[1]
    n_out = n_vocab + 4
    # Lane-dense output slab; 256-multiple when wide enough (v6e/v7x 256-wide MXU).
    n_pad = _round_up(n_out, 256) if n_out > 128 else _round_up(n_out, 128)
    w = jnp.concatenate([cls_w, box_w], axis=1)
    w = jnp.pad(w, ((0, 0), (0, n_pad - n_out))).astype(mxu_dtype)
    b = jnp.concatenate([jnp.zeros((n_vocab,), jnp.float32), box_b,
                         jnp.zeros((n_pad - n_out,), jnp.float32)])[None]

    # Pad the row count up to the tile instead of a single giant block.
    row_tile = 256 if n >= 256 else _round_up(n, 8)
    n_rows = _round_up(n, row_tile)
    if n_rows != n:
        x2d = jnp.pad(x2d, ((0, n_rows - n), (0, 0)))

    out = pl.pallas_call(
        functools.partial(_head_kernel, n_vocab=n_vocab, mxu_dtype=mxu_dtype),
        out_shape=jax.ShapeDtypeStruct((n_rows, n_pad), jnp.float32),
        grid=(n_rows // row_tile,),
        in_specs=[
            pl.BlockSpec((row_tile, d), lambda i: (i, 0)),
            pl.BlockSpec((d, n_pad), lambda i: (0, 0)),
            pl.BlockSpec((1, n_pad), lambda i: (0, 0)),
        ],
        out_specs=pl.BlockSpec((row_tile, n_pad), lambda i: (i, 0)),
        compiler_params=pltpu.CompilerParams(
            dimension_semantics=("parallel",), vmem_limit_bytes=VMEM_LIMIT),
    )(x2d, w, b)
    return out[:n, :n_vocab], out[:n, n_vocab:n_out]


# ----------------------------------------------------------------------------
# weight packing + Decoder forward (Pallas)
# ----------------------------------------------------------------------------
def _stack_layer_params(layers, n_head, d_k, mxu_dtype):
    """Stack per-layer weights on a leading L axis; MXU weights in mxu_dtype,
    biases / LayerNorm params in f32; output projections head-major (H,dk,D)."""
    D = layers[0]["slf"]["wq"].shape[0]

    def cat(*xs):
        return jnp.concatenate(list(xs), axis=-1)

    def stack(f, dtype=None):
        a = jnp.stack([f(l) for l in layers], axis=0)
        return a.astype(dtype) if dtype is not None else a

    wd = mxu_dtype
    return dict(
        s_wqkv=stack(lambda l: cat(l["slf"]["wq"], l["slf"]["wk"], l["slf"]["wv"]), wd),
        s_bqkv=stack(lambda l: cat(l["slf"]["bq"], l["slf"]["bk"], l["slf"]["bv"])[None]),
        s_wo=stack(lambda l: l["slf"]["wo"].reshape(n_head, d_k, D), wd),
        s_bo=stack(lambda l: l["slf"]["bo"][None]),
        s_g=stack(lambda l: l["slf"]["g"][None]),
        s_b=stack(lambda l: l["slf"]["b"][None]),
        c_wq=stack(lambda l: l["enc"]["wq"], wd),
        c_bq=stack(lambda l: l["enc"]["bq"][None]),
        c_wkv=stack(lambda l: cat(l["enc"]["wk"], l["enc"]["wv"]), wd),
        c_bkv=stack(lambda l: cat(l["enc"]["bk"], l["enc"]["bv"])[None]),
        c_wo=stack(lambda l: l["enc"]["wo"].reshape(n_head, d_k, D), wd),
        c_bo=stack(lambda l: l["enc"]["bo"][None]),
        c_g=stack(lambda l: l["enc"]["g"][None]),
        c_b=stack(lambda l: l["enc"]["b"][None]),
        f_w1=stack(lambda l: l["ffn"]["w1"], wd),
        f_b1=stack(lambda l: l["ffn"]["b1"][None]),
        f_w2=stack(lambda l: l["ffn"]["w2"], wd),
        f_b2=stack(lambda l: l["ffn"]["b2"][None]),
        f_g=stack(lambda l: l["ffn"]["g"][None]),
        f_b=stack(lambda l: l["ffn"]["b"][None]),
    )


def decoder_forward(dec_input, enc_value, params, *, d_model, n_head, d_k,
                    pad_idx, mxu_dtype=jnp.bfloat16):
    B, S = dec_input.shape

    # --- glue: embedding gather + pad flags (data-dependent gather) ----------
    # TODO(synk): embedding gather kept in plain JAX (jnp.take).
    emb = jnp.take(params["emb"], dec_input, axis=0)                  # (B,S,D)
    pad = (dec_input != pad_idx).astype(jnp.int32)[:, None, :]        # (B,1,S)
    stacked = _stack_layer_params(params["layers"], n_head, d_k, mxu_dtype)

    # --- Pallas hot path: one fused kernel for embed-norm + all layers -------
    x = decoder_stack_call(pad, emb, params["pos"][:S],
                           params["norm_g"][None], params["norm_b"][None],
                           enc_value, stacked,
                           n_head=n_head, d_k=d_k, d_model=d_model,
                           mxu_dtype=mxu_dtype)

    cls2d, box2d = head_call(x.reshape(B * S, d_model),
                             params["cls_w"], params["box_w"], params["box_b"],
                             mxu_dtype)
    n_vocab = params["cls_w"].shape[1]
    return cls2d.reshape(B, S, n_vocab), box2d.reshape(B, S, 4)


# ----------------------------------------------------------------------------
# Pure-JAX reference (f32, for numerical check)
# ----------------------------------------------------------------------------
def _ln_ref(x, g, b):
    mu = x.mean(-1, keepdims=True)
    var = ((x - mu) ** 2).mean(-1, keepdims=True)
    return (x - mu) * jax.lax.rsqrt(var + LN_EPS) * g + b


def _mha_ref(xq, xkv, mask, w, n_head, d_k):
    B, Sq, _ = xq.shape
    Skv = xkv.shape[1]
    q = (xq @ w["wq"] + w["bq"]).reshape(B, Sq, n_head, d_k).transpose(0, 2, 1, 3)
    k = (xkv @ w["wk"] + w["bk"]).reshape(B, Skv, n_head, d_k).transpose(0, 2, 1, 3)
    v = (xkv @ w["wv"] + w["bv"]).reshape(B, Skv, n_head, d_k).transpose(0, 2, 1, 3)
    s = jnp.einsum("bhqd,bhkd->bhqk", q, k) / (d_k ** 0.5)
    if mask is not None:
        s = jnp.where(mask[:, None] > 0, s, NEG_INF)
    p = jax.nn.softmax(s, -1)
    ctx = jnp.einsum("bhqk,bhkd->bhqd", p, v).transpose(0, 2, 1, 3).reshape(B, Sq, n_head * d_k)
    y = ctx @ w["wo"] + w["bo"] + xq
    return _ln_ref(y, w["g"], w["b"])


def decoder_ref(dec_input, enc_value, params, *, d_model, n_head, d_k, pad_idx):
    B, S = dec_input.shape
    emb = params["emb"][dec_input]
    x = _ln_ref(emb * d_model ** 0.5 + params["pos"][:S][None],
                params["norm_g"], params["norm_b"])
    pad_m = (dec_input != pad_idx)
    causal = jnp.tril(jnp.ones((S, S), jnp.bool_))
    slf_mask = (pad_m[:, None, :] & causal[None]).astype(jnp.float32)
    for lyr in params["layers"]:
        x = _mha_ref(x, x, slf_mask, lyr["slf"], n_head, d_k)
        x = _mha_ref(x, enc_value, None, lyr["enc"], n_head, d_k)
        w = lyr["ffn"]
        h = jnp.maximum(x @ w["w1"] + w["b1"], 0.0)
        x = _ln_ref(h @ w["w2"] + w["b2"] + x, w["g"], w["b"])
    cls = x @ params["cls_w"]
    box = jax.nn.sigmoid(x @ params["box_w"] + params["box_b"])
    return cls, box


# ----------------------------------------------------------------------------
# Deterministic parameter init
# ----------------------------------------------------------------------------
def sinusoid_pos_table(n_position, d_model):
    pos = jnp.arange(n_position, dtype=jnp.float32)[:, None]
    i = jnp.arange(d_model, dtype=jnp.float32)[None, :]
    angle = pos / jnp.power(10000.0, 2.0 * jnp.floor(i / 2.0) / d_model)
    even = (jnp.arange(d_model) % 2 == 0)[None, :]
    return jnp.where(even, jnp.sin(angle), jnp.cos(angle)).astype(jnp.float32)


def init_params(key, *, n_vocab, d_model, n_head, d_k, d_ffn, layers,
                n_position, pad_idx):
    keys = iter(jax.random.split(key, 256))

    def w(shape, scale=0.02):
        return scale * jax.random.normal(next(keys), shape, jnp.float32)

    hdk = n_head * d_k
    emb = w((n_vocab, d_model))
    emb = emb.at[pad_idx].set(0.0)   # padding_idx row is zero

    def attn_block():
        return dict(wq=w((d_model, hdk)), bq=jnp.zeros((hdk,), jnp.float32),
                    wk=w((d_model, hdk)), bk=jnp.zeros((hdk,), jnp.float32),
                    wv=w((d_model, hdk)), bv=jnp.zeros((hdk,), jnp.float32),
                    wo=w((hdk, d_model)), bo=jnp.zeros((d_model,), jnp.float32),
                    g=jnp.ones((d_model,), jnp.float32),
                    b=jnp.zeros((d_model,), jnp.float32))

    def ffn_block():
        return dict(w1=w((d_model, d_ffn)), b1=jnp.zeros((d_ffn,), jnp.float32),
                    w2=w((d_ffn, d_model)), b2=jnp.zeros((d_model,), jnp.float32),
                    g=jnp.ones((d_model,), jnp.float32),
                    b=jnp.zeros((d_model,), jnp.float32))

    return dict(
        emb=emb,
        pos=sinusoid_pos_table(n_position, d_model),
        norm_g=jnp.ones((d_model,), jnp.float32),
        norm_b=jnp.zeros((d_model,), jnp.float32),
        layers=[dict(slf=attn_block(), enc=attn_block(), ffn=ffn_block())
                for _ in range(layers)],
        cls_w=w((d_model, n_vocab)),
        box_w=w((d_model, 4)),
        box_b=jnp.zeros((4,), jnp.float32),
    )


# ----------------------------------------------------------------------------
if __name__ == "__main__":
    B, S, S_enc = 2, 8, 16
    n_vocab, d_model, n_head, d_k, d_ffn, layers = 16, 32, 4, 8, 64, 2
    pad_idx, n_position = 0, 64

    key = jax.random.PRNGKey(0)
    k_p, k_in, k_enc = jax.random.split(key, 3)

    params = init_params(k_p, n_vocab=n_vocab, d_model=d_model, n_head=n_head,
                         d_k=d_k, d_ffn=d_ffn, layers=layers,
                         n_position=n_position, pad_idx=pad_idx)

    dec_input = jax.random.randint(k_in, (B, S), 0, n_vocab, dtype=jnp.int32)
    enc_value = jax.random.normal(k_enc, (B, S_enc, d_model), jnp.float32)

    fwd = jax.jit(functools.partial(decoder_forward, d_model=d_model,
                                    n_head=n_head, d_k=d_k, pad_idx=pad_idx))
    cls_x, box_x = fwd(dec_input, enc_value, params)
    jax.block_until_ready((cls_x, box_x))

    cls_r, box_r = decoder_ref(dec_input, enc_value, params, d_model=d_model,
                               n_head=n_head, d_k=d_k, pad_idx=pad_idx)

    assert cls_x.shape == (B, S, n_vocab) and box_x.shape == (B, S, 4)
    np.testing.assert_allclose(np.asarray(cls_x), np.asarray(cls_r),
                               rtol=2e-2, atol=2e-2)
    np.testing.assert_allclose(np.asarray(box_x), np.asarray(box_r),
                               rtol=2e-2, atol=2e-2)
    print("KERNEL_OK")
</pallas_src>

<mosaic_0001>
module attributes {stable_mosaic.version = 11 : i64} {
  func.func @_decoder_stack_kernel(%arg0: i32, %arg1: i32, %arg2: memref<1x1x8xi32, #tpu.memory_space<vmem>>, %arg3: memref<1x8x32xf32, #tpu.memory_space<vmem>>, %arg4: memref<8x32xf32, #tpu.memory_space<vmem>>, %arg5: memref<1x32xf32, #tpu.memory_space<vmem>>, %arg6: memref<1x32xf32, #tpu.memory_space<vmem>>, %arg7: memref<1x16x32xf32, #tpu.memory_space<vmem>>, %arg8: memref<1x32x96xbf16, #tpu.memory_space<vmem>>, %arg9: memref<1x1x96xf32, #tpu.memory_space<vmem>>, %arg10: memref<1x4x8x32xbf16, #tpu.memory_space<vmem>>, %arg11: memref<1x1x32xf32, #tpu.memory_space<vmem>>, %arg12: memref<1x1x32xf32, #tpu.memory_space<vmem>>, %arg13: memref<1x1x32xf32, #tpu.memory_space<vmem>>, %arg14: memref<1x32x32xbf16, #tpu.memory_space<vmem>>, %arg15: memref<1x1x32xf32, #tpu.memory_space<vmem>>, %arg16: memref<1x32x64xbf16, #tpu.memory_space<vmem>>, %arg17: memref<1x1x64xf32, #tpu.memory_space<vmem>>, %arg18: memref<1x4x8x32xbf16, #tpu.memory_space<vmem>>, %arg19: memref<1x1x32xf32, #tpu.memory_space<vmem>>, %arg20: memref<1x1x32xf32, #tpu.memory_space<vmem>>, %arg21: memref<1x1x32xf32, #tpu.memory_space<vmem>>, %arg22: memref<1x32x64xbf16, #tpu.memory_space<vmem>>, %arg23: memref<1x1x64xf32, #tpu.memory_space<vmem>>, %arg24: memref<1x64x32xbf16, #tpu.memory_space<vmem>>, %arg25: memref<1x1x32xf32, #tpu.memory_space<vmem>>, %arg26: memref<1x1x32xf32, #tpu.memory_space<vmem>>, %arg27: memref<1x1x32xf32, #tpu.memory_space<vmem>>, %arg28: memref<1x8x32xf32, #tpu.memory_space<vmem>>, %arg29: memref<8x8xf32, #tpu.memory_space<vmem>>) attributes {dimension_semantics = [#tpu.dimension_semantics<parallel>, #tpu.dimension_semantics<arbitrary>], iteration_bounds = array<i64: 2, 2>, scalar_prefetch = 0 : i64, scratch_operands = 1 : i64, tpu.core_type = #tpu.core_type<tc>, window_params = [{transform_indices = @transform_0, window_bounds = array<i64: 1, 1, 8>}, {transform_indices = @transform_1, window_bounds = array<i64: 1, 8, 32>}, {pipeline_mode = #tpu.pipeline_mode<synchronous>, transform_indices = @transform_2, window_bounds = array<i64: 8, 32>}, {pipeline_mode = #tpu.pipeline_mode<synchronous>, transform_indices = @transform_3, window_bounds = array<i64: 1, 32>}, {pipeline_mode = #tpu.pipeline_mode<synchronous>, transform_indices = @transform_4, window_bounds = array<i64: 1, 32>}, {transform_indices = @transform_5, window_bounds = array<i64: 1, 16, 32>}, {transform_indices = @transform_6, window_bounds = array<i64: 1, 32, 96>}, {transform_indices = @transform_7, window_bounds = array<i64: 1, 1, 96>}, {transform_indices = @transform_8, window_bounds = array<i64: 1, 4, 8, 32>}, {transform_indices = @transform_9, window_bounds = array<i64: 1, 1, 32>}, {transform_indices = @transform_10, window_bounds = array<i64: 1, 1, 32>}, {transform_indices = @transform_11, window_bounds = array<i64: 1, 1, 32>}, {transform_indices = @transform_12, window_bounds = array<i64: 1, 32, 32>}, {transform_indices = @transform_13, window_bounds = array<i64: 1, 1, 32>}, {transform_indices = @transform_14, window_bounds = array<i64: 1, 32, 64>}, {transform_indices = @transform_15, window_bounds = array<i64: 1, 1, 64>}, {transform_indices = @transform_16, window_bounds = array<i64: 1, 4, 8, 32>}, {transform_indices = @transform_17, window_bounds = array<i64: 1, 1, 32>}, {transform_indices = @transform_18, window_bounds = array<i64: 1, 1, 32>}, {transform_indices = @transform_19, window_bounds = array<i64: 1, 1, 32>}, {transform_indices = @transform_20, window_bounds = array<i64: 1, 32, 64>}, {transform_indices = @transform_21, window_bounds = array<i64: 1, 1, 64>}, {transform_indices = @transform_22, window_bounds = array<i64: 1, 64, 32>}, {transform_indices = @transform_23, window_bounds = array<i64: 1, 1, 32>}, {transform_indices = @transform_24, window_bounds = array<i64: 1, 1, 32>}, {transform_indices = @transform_25, window_bounds = array<i64: 1, 1, 32>}, {transform_indices = @transform_26, window_bounds = array<i64: 1, 8, 32>}]} {
    %c0_i32 = arith.constant 0 : i32
    %0 = arith.cmpi eq, %arg1, %c0_i32 : i32
    %1 = arith.extui %0 : i1 to i32
    %c0_i32_0 = arith.constant 0 : i32
    %2 = arith.cmpi ne, %1, %c0_i32_0 : i32
    scf.if %2 {
      %367 = tpu.iota {dimensions = array<i32: 0>} : vector<8x8xi32>
      %368 = tpu.iota {dimensions = array<i32: 1>} : vector<8x8xi32>
      %369 = arith.cmpi sge, %367, %368 : vector<8x8xi32>
      %c0_146 = arith.constant 0 : index
      %c0_147 = arith.constant 0 : index
      %c0_148 = arith.constant 0 : index
      %370 = vector.load %arg2[%c0_146, %c0_147, %c0_148] : memref<1x1x8xi32, #tpu.memory_space<vmem>>, vector<1x1x8xi32>
      %371 = vector.shape_cast %370 : vector<1x1x8xi32> to vector<1x8xi32>
      %c0_i32_149 = arith.constant 0 : i32
      %372 = vector.broadcast %c0_i32_149 : i32 to vector<1x8xi32>
      %373 = arith.cmpi ne, %371, %372 : vector<1x8xi32>
      %374 = vector.broadcast %373 : vector<1x8xi1> to vector<8x8xi1>
      %375 = arith.andi %369, %374 : vector<8x8xi1>
      %376 = arith.extui %375 : vector<8x8xi1> to vector<8x8xi32>
      %377 = arith.sitofp %376 : vector<8x8xi32> to vector<8x8xf32>
      %c0_150 = arith.constant 0 : index
      %c0_151 = arith.constant 0 : index
      %378 = vector.load %arg29[%c0_150, %c0_151] : memref<8x8xf32, #tpu.memory_space<vmem>>, vector<8x8xf32>
      tpu.vector_store %arg29[%c0_150, %c0_151], %377 {strides = array<i32>} : memref<8x8xf32, #tpu.memory_space<vmem>>, vector<8x8xf32>,
      %c0_152 = arith.constant 0 : index
      %c0_153 = arith.constant 0 : index
      %c0_154 = arith.constant 0 : index
      %379 = vector.load %arg3[%c0_152, %c0_153, %c0_154] : memref<1x8x32xf32, #tpu.memory_space<vmem>>, vector<1x8x32xf32>
      %380 = vector.shape_cast %379 : vector<1x8x32xf32> to vector<8x32xf32>
      %cst_155 = arith.constant 5.65685415 : f32
      %381 = vector.broadcast %cst_155 : f32 to vector<8x32xf32>
      %382 = arith.mulf %380, %381 : vector<8x32xf32>
      %c0_156 = arith.constant 0 : index
      %c0_157 = arith.constant 0 : index
      %383 = vector.load %arg4[%c0_156, %c0_157] : memref<8x32xf32, #tpu.memory_space<vmem>>, vector<8x32xf32>
      %384 = arith.addf %382, %383 : vector<8x32xf32>
      %c0_158 = arith.constant 0 : index
      %c0_159 = arith.constant 0 : index
      %385 = vector.load %arg5[%c0_158, %c0_159] : memref<1x32xf32, #tpu.memory_space<vmem>>, vector<1x32xf32>
      %c0_160 = arith.constant 0 : index
      %c0_161 = arith.constant 0 : index
      %386 = vector.load %arg6[%c0_160, %c0_161] : memref<1x32xf32, #tpu.memory_space<vmem>>, vector<1x32xf32>
      %cst_162 = arith.constant dense<0.000000e+00> : vector<8xf32>
      %387 = vector.multi_reduction <add>, %384, %cst_162 [1] : vector<8x32xf32> to vector<8xf32>
      %388 = vector.shape_cast %387 : vector<8xf32> to vector<8x1xf32>
      %cst_163 = arith.constant 3.200000e+01 : f32
      %389 = vector.broadcast %cst_163 : f32 to vector<8x1xf32>
      %390 = arith.divf %388, %389 : vector<8x1xf32>
      %391 = vector.broadcast %390 : vector<8x1xf32> to vector<8x32xf32>
      %392 = arith.subf %384, %391 : vector<8x32xf32>
      %393 = arith.mulf %392, %392 : vector<8x32xf32>
      %cst_164 = arith.constant dense<0.000000e+00> : vector<8xf32>
      %394 = vector.multi_reduction <add>, %393, %cst_164 [1] : vector<8x32xf32> to vector<8xf32>
      %395 = vector.shape_cast %394 : vector<8xf32> to vector<8x1xf32>
      %cst_165 = arith.constant 3.200000e+01 : f32
      %396 = vector.broadcast %cst_165 : f32 to vector<8x1xf32>
      %397 = arith.divf %395, %396 : vector<8x1xf32>
      %398 = vector.broadcast %390 : vector<8x1xf32> to vector<8x32xf32>
      %399 = arith.subf %384, %398 : vector<8x32xf32>
      %cst_166 = arith.constant 9.99999974E-6 : f32
      %400 = vector.broadcast %cst_166 : f32 to vector<8x1xf32>
      %401 = arith.addf %397, %400 : vector<8x1xf32>
      %402 = math.rsqrt %401 : vector<8x1xf32>
      %403 = vector.broadcast %402 : vector<8x1xf32> to vector<8x32xf32>
      %404 = arith.mulf %399, %403 : vector<8x32xf32>
      %405 = vector.broadcast %385 : vector<1x32xf32> to vector<8x32xf32>
      %406 = arith.mulf %404, %405 : vector<8x32xf32>
      %407 = vector.broadcast %386 : vector<1x32xf32> to vector<8x32xf32>
      %408 = arith.addf %406, %407 : vector<8x32xf32>
      %c0_167 = arith.constant 0 : index
      %c0_168 = arith.constant 0 : index
      %c0_169 = arith.constant 0 : index
      %409 = vector.load %arg28[%c0_167, %c0_168, %c0_169] : memref<1x8x32xf32, #tpu.memory_space<vmem>>, vector<1x8x32xf32>
      %410 = vector.shape_cast %409 : vector<1x8x32xf32> to vector<8x32xf32>
      %411 = vector.shape_cast %408 : vector<8x32xf32> to vector<1x8x32xf32>
      tpu.vector_store %arg28[%c0_167, %c0_168, %c0_169], %411 {strides = array<i32>} : memref<1x8x32xf32, #tpu.memory_space<vmem>>, vector<1x8x32xf32>,
    } else {
    }
    %c0 = arith.constant 0 : index
    %c0_1 = arith.constant 0 : index
    %c0_2 = arith.constant 0 : index
    %3 = vector.load %arg28[%c0, %c0_1, %c0_2] : memref<1x8x32xf32, #tpu.memory_space<vmem>>, vector<1x8x32xf32>
    %4 = vector.shape_cast %3 : vector<1x8x32xf32> to vector<8x32xf32>
    %c0_3 = arith.constant 0 : index
    %c0_4 = arith.constant 0 : index
    %c0_5 = arith.constant 0 : index
    %5 = vector.load %arg7[%c0_3, %c0_4, %c0_5] : memref<1x16x32xf32, #tpu.memory_space<vmem>>, vector<1x16x32xf32>
    %6 = vector.shape_cast %5 : vector<1x16x32xf32> to vector<16x32xf32>
    %c0_6 = arith.constant 0 : index
    %c0_7 = arith.constant 0 : index
    %7 = vector.load %arg29[%c0_6, %c0_7] : memref<8x8xf32, #tpu.memory_space<vmem>>, vector<8x8xf32>
    %cst = arith.constant 0.000000e+00 : f32
    %8 = vector.broadcast %cst : f32 to vector<8x8xf32>
    %9 = arith.cmpf one, %7, %8 : vector<8x8xf32>
    %c0_8 = arith.constant 0 : index
    %c0_9 = arith.constant 0 : index
    %c0_10 = arith.constant 0 : index
    %10 = vector.load %arg8[%c0_8, %c0_9, %c0_10] : memref<1x32x96xbf16, #tpu.memory_space<vmem>>, vector<1x32x96xbf16>
    %11 = vector.shape_cast %10 : vector<1x32x96xbf16> to vector<32x96xbf16>
    %c0_11 = arith.constant 0 : index
    %c0_12 = arith.constant 0 : index
    %c0_13 = arith.constant 0 : index
    %12 = vector.load %arg9[%c0_11, %c0_12, %c0_13] : memref<1x1x96xf32, #tpu.memory_space<vmem>>, vector<1x1x96xf32>
    %13 = vector.shape_cast %12 : vector<1x1x96xf32> to vector<1x96xf32>
    %14 = arith.truncf %4 : vector<8x32xf32> to vector<8x32xbf16>
    %cst_14 = arith.constant dense<0.000000e+00> : vector<8x96xf32>
    %15 = tpu.matmul %14, %11, %cst_14 {dimension_numbers = #tpu.dot_dimension_numbers<[1], [0], [0], [1], [0, 0, 1, 1], [], []>} : vector<8x32xbf16>, vector<32x96xbf16>, vector<8x96xf32> -> vector<8x96xf32>
    %16 = vector.broadcast %13 : vector<1x96xf32> to vector<8x96xf32>
    %17 = arith.addf %15, %16 : vector<8x96xf32>
    %18 = vector.extract_strided_slice %17 {offsets = [0, 0], sizes = [8, 32], strides = [1, 1]} : vector<8x96xf32> to vector<8x32xf32>
    %19 = vector.extract_strided_slice %17 {offsets = [0, 32], sizes = [8, 32], strides = [1, 1]} : vector<8x96xf32> to vector<8x32xf32>
    %20 = vector.extract_strided_slice %17 {offsets = [0, 64], sizes = [8, 32], strides = [1, 1]} : vector<8x96xf32> to vector<8x32xf32>
    %c0_15 = arith.constant 0 : index
    %c0_16 = arith.constant 0 : index
    %c0_17 = arith.constant 0 : index
    %c0_18 = arith.constant 0 : index
    %21 = vector.load %arg10[%c0_15, %c0_16, %c0_17, %c0_18] : memref<1x4x8x32xbf16, #tpu.memory_space<vmem>>, vector<1x4x8x32xbf16>
    %22 = vector.shape_cast %21 : vector<1x4x8x32xbf16> to vector<4x8x32xbf16>
    %23 = vector.extract_strided_slice %18 {offsets = [0, 0], sizes = [8, 8], strides = [1, 1]} : vector<8x32xf32> to vector<8x8xf32>
    %cst_19 = arith.constant 0.353553385 : f32
    %24 = vector.broadcast %cst_19 : f32 to vector<8x8xf32>
    %25 = arith.mulf %23, %24 : vector<8x8xf32>
    %26 = arith.truncf %25 : vector<8x8xf32> to vector<8x8xbf16>
    %27 = vector.extract_strided_slice %19 {offsets = [0, 0], sizes = [8, 8], strides = [1, 1]} : vector<8x32xf32> to vector<8x8xf32>
    %28 = arith.truncf %27 : vector<8x8xf32> to vector<8x8xbf16>
    %29 = vector.extract_strided_slice %20 {offsets = [0, 0], sizes = [8, 8], strides = [1, 1]} : vector<8x32xf32> to vector<8x8xf32>
    %30 = arith.truncf %29 : vector<8x8xf32> to vector<8x8xbf16>
    %cst_20 = arith.constant dense<0.000000e+00> : vector<8x8xf32>
    %31 = tpu.matmul %26, %28, %cst_20 {dimension_numbers = #tpu.dot_dimension_numbers<[1], [1], [0], [0], [0, 0, 1, 0], [], []>} : vector<8x8xbf16>, vector<8x8xbf16>, vector<8x8xf32> -> vector<8x8xf32>
    %cst_21 = arith.constant -1.000000e+09 : f32
    %32 = vector.broadcast %cst_21 : f32 to vector<8x8xf32>
    %33 = arith.select %9, %31, %32 : vector<8x8xi1>, vector<8x8xf32>
    %cst_22 = arith.constant dense<0xFF800000> : vector<8xf32>
    %34 = vector.multi_reduction <maximumf>, %33, %cst_22 [1] : vector<8x8xf32> to vector<8xf32>
    %35 = vector.shape_cast %34 : vector<8xf32> to vector<8x1xf32>
    %36 = vector.broadcast %35 : vector<8x1xf32> to vector<8x8xf32>
    %37 = arith.subf %33, %36 : vector<8x8xf32>
    %38 = math.exp %37 : vector<8x8xf32>
    %cst_23 = arith.constant dense<0.000000e+00> : vector<8xf32>
    %39 = vector.multi_reduction <add>, %38, %cst_23 [1] : vector<8x8xf32> to vector<8xf32>
    %40 = vector.shape_cast %39 : vector<8xf32> to vector<8x1xf32>
    %41 = tpu.reciprocal %40 {approx = true} : vector<8x1xf32> -> vector<8x1xf32>
    %42 = vector.broadcast %41 : vector<8x1xf32> to vector<8x8xf32>
    %43 = arith.mulf %38, %42 : vector<8x8xf32>
    %44 = arith.truncf %43 : vector<8x8xf32> to vector<8x8xbf16>
    %cst_24 = arith.constant dense<0.000000e+00> : vector<8x8xf32>
    %45 = tpu.matmul %44, %30, %cst_24 {dimension_numbers = #tpu.dot_dimension_numbers<[1], [0], [0], [1], [0, 0, 1, 1], [], []>} : vector<8x8xbf16>, vector<8x8xbf16>, vector<8x8xf32> -> vector<8x8xf32>
    %46 = arith.truncf %45 : vector<8x8xf32> to vector<8x8xbf16>
    %47 = vector.extract_strided_slice %22 {offsets = [0, 0, 0], sizes = [1, 8, 32], strides = [1, 1, 1]} : vector<4x8x32xbf16> to vector<1x8x32xbf16>
    %48 = vector.shape_cast %47 : vector<1x8x32xbf16> to vector<8x32xbf16>
    %cst_25 = arith.constant dense<0.000000e+00> : vector<8x32xf32>
    %49 = tpu.matmul %46, %48, %cst_25 {dimension_numbers = #tpu.dot_dimension_numbers<[1], [0], [0], [1], [0, 0, 1, 1], [], []>} : vector<8x8xbf16>, vector<8x32xbf16>, vector<8x32xf32> -> vector<8x32xf32>
    %50 = vector.extract_strided_slice %18 {offsets = [0, 8], sizes = [8, 8], strides = [1, 1]} : vector<8x32xf32> to vector<8x8xf32>
    %cst_26 = arith.constant 0.353553385 : f32
    %51 = vector.broadcast %cst_26 : f32 to vector<8x8xf32>
    %52 = arith.mulf %50, %51 : vector<8x8xf32>
    %53 = arith.truncf %52 : vector<8x8xf32> to vector<8x8xbf16>
    %54 = vector.extract_strided_slice %19 {offsets = [0, 8], sizes = [8, 8], strides = [1, 1]} : vector<8x32xf32> to vector<8x8xf32>
    %55 = arith.truncf %54 : vector<8x8xf32> to vector<8x8xbf16>
    %56 = vector.extract_strided_slice %20 {offsets = [0, 8], sizes = [8, 8], strides = [1, 1]} : vector<8x32xf32> to vector<8x8xf32>
    %57 = arith.truncf %56 : vector<8x8xf32> to vector<8x8xbf16>
    %cst_27 = arith.constant dense<0.000000e+00> : vector<8x8xf32>
    %58 = tpu.matmul %53, %55, %cst_27 {dimension_numbers = #tpu.dot_dimension_numbers<[1], [1], [0], [0], [0, 0, 1, 0], [], []>} : vector<8x8xbf16>, vector<8x8xbf16>, vector<8x8xf32> -> vector<8x8xf32>
    %cst_28 = arith.constant -1.000000e+09 : f32
    %59 = vector.broadcast %cst_28 : f32 to vector<8x8xf32>
    %60 = arith.select %9, %58, %59 : vector<8x8xi1>, vector<8x8xf32>
    %cst_29 = arith.constant dense<0xFF800000> : vector<8xf32>
    %61 = vector.multi_reduction <maximumf>, %60, %cst_29 [1] : vector<8x8xf32> to vector<8xf32>
    %62 = vector.shape_cast %61 : vector<8xf32> to vector<8x1xf32>
    %63 = vector.broadcast %62 : vector<8x1xf32> to vector<8x8xf32>
    %64 = arith.subf %60, %63 : vector<8x8xf32>
    %65 = math.exp %64 : vector<8x8xf32>
    %cst_30 = arith.constant dense<0.000000e+00> : vector<8xf32>
    %66 = vector.multi_reduction <add>, %65, %cst_30 [1] : vector<8x8xf32> to vector<8xf32>
    %67 = vector.shape_cast %66 : vector<8xf32> to vector<8x1xf32>
    %68 = tpu.reciprocal %67 {approx = true} : vector<8x1xf32> -> vector<8x1xf32>
    %69 = vector.broadcast %68 : vector<8x1xf32> to vector<8x8xf32>
    %70 = arith.mulf %65, %69 : vector<8x8xf32>
    %71 = arith.truncf %70 : vector<8x8xf32> to vector<8x8xbf16>
    %cst_31 = arith.constant dense<0.000000e+00> : vector<8x8xf32>
    %72 = tpu.matmul %71, %57, %cst_31 {dimension_numbers = #tpu.dot_dimension_numbers<[1], [0], [0], [1], [0, 0, 1, 1], [], []>} : vector<8x8xbf16>, vector<8x8xbf16>, vector<8x8xf32> -> vector<8x8xf32>
    %73 = arith.truncf %72 : vector<8x8xf32> to vector<8x8xbf16>
    %74 = vector.extract_strided_slice %22 {offsets = [1, 0, 0], sizes = [1, 8, 32], strides = [1, 1, 1]} : vector<4x8x32xbf16> to vector<1x8x32xbf16>
    %75 = vector.shape_cast %74 : vector<1x8x32xbf16> to vector<8x32xbf16>
    %cst_32 = arith.constant dense<0.000000e+00> : vector<8x32xf32>
    %76 = tpu.matmul %73, %75, %cst_32 {dimension_numbers = #tpu.dot_dimension_numbers<[1], [0], [0], [1], [0, 0, 1, 1], [], []>} : vector<8x8xbf16>, vector<8x32xbf16>, vector<8x32xf32> -> vector<8x32xf32>
    %77 = arith.addf %49, %76 : vector<8x32xf32>
    %78 = vector.extract_strided_slice %18 {offsets = [0, 16], sizes = [8, 8], strides = [1, 1]} : vector<8x32xf32> to vector<8x8xf32>
    %cst_33 = arith.constant 0.353553385 : f32
    %79 = vector.broadcast %cst_33 : f32 to vector<8x8xf32>
    %80 = arith.mulf %78, %79 : vector<8x8xf32>
    %81 = arith.truncf %80 : vector<8x8xf32> to vector<8x8xbf16>
    %82 = vector.extract_strided_slice %19 {offsets = [0, 16], sizes = [8, 8], strides = [1, 1]} : vector<8x32xf32> to vector<8x8xf32>
    %83 = arith.truncf %82 : vector<8x8xf32> to vector<8x8xbf16>
    %84 = vector.extract_strided_slice %20 {offsets = [0, 16], sizes = [8, 8], strides = [1, 1]} : vector<8x32xf32> to vector<8x8xf32>
    %85 = arith.truncf %84 : vector<8x8xf32> to vector<8x8xbf16>
    %cst_34 = arith.constant dense<0.000000e+00> : vector<8x8xf32>
    %86 = tpu.matmul %81, %83, %cst_34 {dimension_numbers = #tpu.dot_dimension_numbers<[1], [1], [0], [0], [0, 0, 1, 0], [], []>} : vector<8x8xbf16>, vector<8x8xbf16>, vector<8x8xf32> -> vector<8x8xf32>
    %cst_35 = arith.constant -1.000000e+09 : f32
    %87 = vector.broadcast %cst_35 : f32 to vector<8x8xf32>
    %88 = arith.select %9, %86, %87 : vector<8x8xi1>, vector<8x8xf32>
    %cst_36 = arith.constant dense<0xFF800000> : vector<8xf32>
    %89 = vector.multi_reduction <maximumf>, %88, %cst_36 [1] : vector<8x8xf32> to vector<8xf32>
    %90 = vector.shape_cast %89 : vector<8xf32> to vector<8x1xf32>
    %91 = vector.broadcast %90 : vector<8x1xf32> to vector<8x8xf32>
    %92 = arith.subf %88, %91 : vector<8x8xf32>
    %93 = math.exp %92 : vector<8x8xf32>
    %cst_37 = arith.constant dense<0.000000e+00> : vector<8xf32>
    %94 = vector.multi_reduction <add>, %93, %cst_37 [1] : vector<8x8xf32> to vector<8xf32>
    %95 = vector.shape_cast %94 : vector<8xf32> to vector<8x1xf32>
    %96 = tpu.reciprocal %95 {approx = true} : vector<8x1xf32> -> vector<8x1xf32>
    %97 = vector.broadcast %96 : vector<8x1xf32> to vector<8x8xf32>
    %98 = arith.mulf %93, %97 : vector<8x8xf32>
    %99 = arith.truncf %98 : vector<8x8xf32> to vector<8x8xbf16>
    %cst_38 = arith.constant dense<0.000000e+00> : vector<8x8xf32>
    %100 = tpu.matmul %99, %85, %cst_38 {dimension_numbers = #tpu.dot_dimension_numbers<[1], [0], [0], [1], [0, 0, 1, 1], [], []>} : vector<8x8xbf16>, vector<8x8xbf16>, vector<8x8xf32> -> vector<8x8xf32>
    %101 = arith.truncf %100 : vector<8x8xf32> to vector<8x8xbf16>
    %102 = vector.extract_strided_slice %22 {offsets = [2, 0, 0], sizes = [1, 8, 32], strides = [1, 1, 1]} : vector<4x8x32xbf16> to vector<1x8x32xbf16>
    %103 = vector.shape_cast %102 : vector<1x8x32xbf16> to vector<8x32xbf16>
    %cst_39 = arith.constant dense<0.000000e+00> : vector<8x32xf32>
    %104 = tpu.matmul %101, %103, %cst_39 {dimension_numbers = #tpu.dot_dimension_numbers<[1], [0], [0], [1], [0, 0, 1, 1], [], []>} : vector<8x8xbf16>, vector<8x32xbf16>, vector<8x32xf32> -> vector<8x32xf32>
    %105 = arith.addf %77, %104 : vector<8x32xf32>
    %106 = vector.extract_strided_slice %18 {offsets = [0, 24], sizes = [8, 8], strides = [1, 1]} : vector<8x32xf32> to vector<8x8xf32>
    %cst_40 = arith.constant 0.353553385 : f32
    %107 = vector.broadcast %cst_40 : f32 to vector<8x8xf32>
    %108 = arith.mulf %106, %107 : vector<8x8xf32>
    %109 = arith.truncf %108 : vector<8x8xf32> to vector<8x8xbf16>
    %110 = vector.extract_strided_slice %19 {offsets = [0, 24], sizes = [8, 8], strides = [1, 1]} : vector<8x32xf32> to vector<8x8xf32>
    %111 = arith.truncf %110 : vector<8x8xf32> to vector<8x8xbf16>
    %112 = vector.extract_strided_slice %20 {offsets = [0, 24], sizes = [8, 8], strides = [1, 1]} : vector<8x32xf32> to vector<8x8xf32>
    %113 = arith.truncf %112 : vector<8x8xf32> to vector<8x8xbf16>
    %cst_41 = arith.constant dense<0.000000e+00> : vector<8x8xf32>
    %114 = tpu.matmul %109, %111, %cst_41 {dimension_numbers = #tpu.dot_dimension_numbers<[1], [1], [0], [0], [0, 0, 1, 0], [], []>} : vector<8x8xbf16>, vector<8x8xbf16>, vector<8x8xf32> -> vector<8x8xf32>
    %cst_42 = arith.constant -1.000000e+09 : f32
    %115 = vector.broadcast %cst_42 : f32 to vector<8x8xf32>
    %116 = arith.select %9, %114, %115 : vector<8x8xi1>, vector<8x8xf32>
    %cst_43 = arith.constant dense<0xFF800000> : vector<8xf32>
    %117 = vector.multi_reduction <maximumf>, %116, %cst_43 [1] : vector<8x8xf32> to vector<8xf32>
    %118 = vector.shape_cast %117 : vector<8xf32> to vector<8x1xf32>
    %119 = vector.broadcast %118 : vector<8x1xf32> to vector<8x8xf32>
    %120 = arith.subf %116, %119 : vector<8x8xf32>
    %121 = math.exp %120 : vector<8x8xf32>
    %cst_44 = arith.constant dense<0.000000e+00> : vector<8xf32>
    %122 = vector.multi_reduction <add>, %121, %cst_44 [1] : vector<8x8xf32> to vector<8xf32>
    %123 = vector.shape_cast %122 : vector<8xf32> to vector<8x1xf32>
    %124 = tpu.reciprocal %123 {approx = true} : vector<8x1xf32> -> vector<8x1xf32>
    %125 = vector.broadcast %124 : vector<8x1xf32> to vector<8x8xf32>
    %126 = arith.mulf %121, %125 : vector<8x8xf32>
    %127 = arith.truncf %126 : vector<8x8xf32> to vector<8x8xbf16>
    %cst_45 = arith.constant dense<0.000000e+00> : vector<8x8xf32>
    %128 = tpu.matmul %127, %113, %cst_45 {dimension_numbers = #tpu.dot_dimension_numbers<[1], [0], [0], [1], [0, 0, 1, 1], [], []>} : vector<8x8xbf16>, vector<8x8xbf16>, vector<8x8xf32> -> vector<8x8xf32>
    %129 = arith.truncf %128 : vector<8x8xf32> to vector<8x8xbf16>
    %130 = vector.extract_strided_slice %22 {offsets = [3, 0, 0], sizes = [1, 8, 32], strides = [1, 1, 1]} : vector<4x8x32xbf16> to vector<1x8x32xbf16>
    %131 = vector.shape_cast %130 : vector<1x8x32xbf16> to vector<8x32xbf16>
    %cst_46 = arith.constant dense<0.000000e+00> : vector<8x32xf32>
    %132 = tpu.matmul %129, %131, %cst_46 {dimension_numbers = #tpu.dot_dimension_numbers<[1], [0], [0], [1], [0, 0, 1, 1], [], []>} : vector<8x8xbf16>, vector<8x32xbf16>, vector<8x32xf32> -> vector<8x32xf32>
    %133 = arith.addf %105, %132 : vector<8x32xf32>
    %c0_47 = arith.constant 0 : index
    %c0_48 = arith.constant 0 : index
    %c0_49 = arith.constant 0 : index
    %134 = vector.load %arg11[%c0_47, %c0_48, %c0_49] : memref<1x1x32xf32, #tpu.memory_space<vmem>>, vector<1x1x32xf32>
    %135 = vector.shape_cast %134 : vector<1x1x32xf32> to vector<1x32xf32>
    %136 = vector.broadcast %135 : vector<1x32xf32> to vector<8x32xf32>
    %137 = arith.addf %133, %136 : vector<8x32xf32>
    %138 = arith.addf %137, %4 : vector<8x32xf32>
    %c0_50 = arith.constant 0 : index
    %c0_51 = arith.constant 0 : index
    %c0_52 = arith.constant 0 : index
    %139 = vector.load %arg12[%c0_50, %c0_51, %c0_52] : memref<1x1x32xf32, #tpu.memory_space<vmem>>, vector<1x1x32xf32>
    %140 = vector.shape_cast %139 : vector<1x1x32xf32> to vector<1x32xf32>
    %c0_53 = arith.constant 0 : index
    %c0_54 = arith.constant 0 : index
    %c0_55 = arith.constant 0 : index
    %141 = vector.load %arg13[%c0_53, %c0_54, %c0_55] : memref<1x1x32xf32, #tpu.memory_space<vmem>>, vector<1x1x32xf32>
    %142 = vector.shape_cast %141 : vector<1x1x32xf32> to vector<1x32xf32>
    %cst_56 = arith.constant dense<0.000000e+00> : vector<8xf32>
    %143 = vector.multi_reduction <add>, %138, %cst_56 [1] : vector<8x32xf32> to vector<8xf32>
    %144 = vector.shape_cast %143 : vector<8xf32> to vector<8x1xf32>
    %cst_57 = arith.constant 3.200000e+01 : f32
    %145 = vector.broadcast %cst_57 : f32 to vector<8x1xf32>
    %146 = arith.divf %144, %145 : vector<8x1xf32>
    %147 = vector.broadcast %146 : vector<8x1xf32> to vector<8x32xf32>
    %148 = arith.subf %138, %147 : vector<8x32xf32>
    %149 = arith.mulf %148, %148 : vector<8x32xf32>
    %cst_58 = arith.constant dense<0.000000e+00> : vector<8xf32>
    %150 = vector.multi_reduction <add>, %149, %cst_58 [1] : vector<8x32xf32> to vector<8xf32>
    %151 = vector.shape_cast %150 : vector<8xf32> to vector<8x1xf32>
    %cst_59 = arith.constant 3.200000e+01 : f32
    %152 = vector.broadcast %cst_59 : f32 to vector<8x1xf32>
    %153 = arith.divf %151, %152 : vector<8x1xf32>
    %154 = vector.broadcast %146 : vector<8x1xf32> to vector<8x32xf32>
    %155 = arith.subf %138, %154 : vector<8x32xf32>
    %cst_60 = arith.constant 9.99999974E-6 : f32
    %156 = vector.broadcast %cst_60 : f32 to vector<8x1xf32>
    %157 = arith.addf %153, %156 : vector<8x1xf32>
    %158 = math.rsqrt %157 : vector<8x1xf32>
    %159 = vector.broadcast %158 : vector<8x1xf32> to vector<8x32xf32>
    %160 = arith.mulf %155, %159 : vector<8x32xf32>
    %161 = vector.broadcast %140 : vector<1x32xf32> to vector<8x32xf32>
    %162 = arith.mulf %160, %161 : vector<8x32xf32>
    %163 = vector.broadcast %142 : vector<1x32xf32> to vector<8x32xf32>
    %164 = arith.addf %162, %163 : vector<8x32xf32>
    %c0_61 = arith.constant 0 : index
    %c0_62 = arith.constant 0 : index
    %c0_63 = arith.constant 0 : index
    %165 = vector.load %arg14[%c0_61, %c0_62, %c0_63] : memref<1x32x32xbf16, #tpu.memory_space<vmem>>, vector<1x32x32xbf16>
    %166 = vector.shape_cast %165 : vector<1x32x32xbf16> to vector<32x32xbf16>
    %c0_64 = arith.constant 0 : index
    %c0_65 = arith.constant 0 : index
    %c0_66 = arith.constant 0 : index
    %167 = vector.load %arg15[%c0_64, %c0_65, %c0_66] : memref<1x1x32xf32, #tpu.memory_space<vmem>>, vector<1x1x32xf32>
    %168 = vector.shape_cast %167 : vector<1x1x32xf32> to vector<1x32xf32>
    %169 = arith.truncf %164 : vector<8x32xf32> to vector<8x32xbf16>
    %cst_67 = arith.constant dense<0.000000e+00> : vector<8x32xf32>
    %170 = tpu.matmul %169, %166, %cst_67 {dimension_numbers = #tpu.dot_dimension_numbers<[1], [0], [0], [1], [0, 0, 1, 1], [], []>} : vector<8x32xbf16>, vector<32x32xbf16>, vector<8x32xf32> -> vector<8x32xf32>
    %171 = vector.broadcast %168 : vector<1x32xf32> to vector<8x32xf32>
    %172 = arith.addf %170, %171 : vector<8x32xf32>
    %c0_68 = arith.constant 0 : index
    %c0_69 = arith.constant 0 : index
    %c0_70 = arith.constant 0 : index
    %173 = vector.load %arg16[%c0_68, %c0_69, %c0_70] : memref<1x32x64xbf16, #tpu.memory_space<vmem>>, vector<1x32x64xbf16>
    %174 = vector.shape_cast %173 : vector<1x32x64xbf16> to vector<32x64xbf16>
    %c0_71 = arith.constant 0 : index
    %c0_72 = arith.constant 0 : index
    %c0_73 = arith.constant 0 : index
    %175 = vector.load %arg17[%c0_71, %c0_72, %c0_73] : memref<1x1x64xf32, #tpu.memory_space<vmem>>, vector<1x1x64xf32>
    %176 = vector.shape_cast %175 : vector<1x1x64xf32> to vector<1x64xf32>
    %177 = arith.truncf %6 : vector<16x32xf32> to vector<16x32xbf16>
    %cst_74 = arith.constant dense<0.000000e+00> : vector<16x64xf32>
    %178 = tpu.matmul %177, %174, %cst_74 {dimension_numbers = #tpu.dot_dimension_numbers<[1], [0], [0], [1], [0, 0, 1, 1], [], []>} : vector<16x32xbf16>, vector<32x64xbf16>, vector<16x64xf32> -> vector<16x64xf32>
    %179 = vector.broadcast %176 : vector<1x64xf32> to vector<16x64xf32>
    %180 = arith.addf %178, %179 : vector<16x64xf32>
    %181 = vector.extract_strided_slice %180 {offsets = [0, 0], sizes = [16, 32], strides = [1, 1]} : vector<16x64xf32> to vector<16x32xf32>
    %182 = vector.extract_strided_slice %180 {offsets = [0, 32], sizes = [16, 32], strides = [1, 1]} : vector<16x64xf32> to vector<16x32xf32>
    %c0_75 = arith.constant 0 : index
    %c0_76 = arith.constant 0 : index
    %c0_77 = arith.constant 0 : index
    %c0_78 = arith.constant 0 : index
    %183 = vector.load %arg18[%c0_75, %c0_76, %c0_77, %c0_78] : memref<1x4x8x32xbf16, #tpu.memory_space<vmem>>, vector<1x4x8x32xbf16>
    %184 = vector.shape_cast %183 : vector<1x4x8x32xbf16> to vector<4x8x32xbf16>
    %185 = vector.extract_strided_slice %172 {offsets = [0, 0], sizes = [8, 8], strides = [1, 1]} : vector<8x32xf32> to vector<8x8xf32>
    %cst_79 = arith.constant 0.353553385 : f32
    %186 = vector.broadcast %cst_79 : f32 to vector<8x8xf32>
    %187 = arith.mulf %185, %186 : vector<8x8xf32>
    %188 = arith.truncf %187 : vector<8x8xf32> to vector<8x8xbf16>
    %189 = vector.extract_strided_slice %181 {offsets = [0, 0], sizes = [16, 8], strides = [1, 1]} : vector<16x32xf32> to vector<16x8xf32>
    %190 = arith.truncf %189 : vector<16x8xf32> to vector<16x8xbf16>
    %191 = vector.extract_strided_slice %182 {offsets = [0, 0], sizes = [16, 8], strides = [1, 1]} : vector<16x32xf32> to vector<16x8xf32>
    %192 = arith.truncf %191 : vector<16x8xf32> to vector<16x8xbf16>
    %cst_80 = arith.constant dense<0.000000e+00> : vector<8x16xf32>
    %193 = tpu.matmul %188, %190, %cst_80 {dimension_numbers = #tpu.dot_dimension_numbers<[1], [1], [0], [0], [0, 0, 1, 0], [], []>} : vector<8x8xbf16>, vector<16x8xbf16>, vector<8x16xf32> -> vector<8x16xf32>
    %cst_81 = arith.constant dense<0xFF800000> : vector<8xf32>
    %194 = vector.multi_reduction <maximumf>, %193, %cst_81 [1] : vector<8x16xf32> to vector<8xf32>
    %195 = vector.shape_cast %194 : vector<8xf32> to vector<8x1xf32>
    %196 = vector.broadcast %195 : vector<8x1xf32> to vector<8x16xf32>
    %197 = arith.subf %193, %196 : vector<8x16xf32>
    %198 = math.exp %197 : vector<8x16xf32>
    %cst_82 = arith.constant dense<0.000000e+00> : vector<8xf32>
    %199 = vector.multi_reduction <add>, %198, %cst_82 [1] : vector<8x16xf32> to vector<8xf32>
    %200 = vector.shape_cast %199 : vector<8xf32> to vector<8x1xf32>
    %201 = tpu.reciprocal %200 {approx = true} : vector<8x1xf32> -> vector<8x1xf32>
    %202 = vector.broadcast %201 : vector<8x1xf32> to vector<8x16xf32>
    %203 = arith.mulf %198, %202 : vector<8x16xf32>
    %204 = arith.truncf %203 : vector<8x16xf32> to vector<8x16xbf16>
    %cst_83 = arith.constant dense<0.000000e+00> : vector<8x8xf32>
    %205 = tpu.matmul %204, %192, %cst_83 {dimension_numbers = #tpu.dot_dimension_numbers<[1], [0], [0], [1], [0, 0, 1, 1], [], []>} : vector<8x16xbf16>, vector<16x8xbf16>, vector<8x8xf32> -> vector<8x8xf32>
    %206 = arith.truncf %205 : vector<8x8xf32> to vector<8x8xbf16>
    %207 = vector.extract_strided_slice %184 {offsets = [0, 0, 0], sizes = [1, 8, 32], strides = [1, 1, 1]} : vector<4x8x32xbf16> to vector<1x8x32xbf16>
    %208 = vector.shape_cast %207 : vector<1x8x32xbf16> to vector<8x32xbf16>
    %cst_84 = arith.constant dense<0.000000e+00> : vector<8x32xf32>
    %209 = tpu.matmul %206, %208, %cst_84 {dimension_numbers = #tpu.dot_dimension_numbers<[1], [0], [0], [1], [0, 0, 1, 1], [], []>} : vector<8x8xbf16>, vector<8x32xbf16>, vector<8x32xf32> -> vector<8x32xf32>
    %210 = vector.extract_strided_slice %172 {offsets = [0, 8], sizes = [8, 8], strides = [1, 1]} : vector<8x32xf32> to vector<8x8xf32>
    %cst_85 = arith.constant 0.353553385 : f32
    %211 = vector.broadcast %cst_85 : f32 to vector<8x8xf32>
    %212 = arith.mulf %210, %211 : vector<8x8xf32>
    %213 = arith.truncf %212 : vector<8x8xf32> to vector<8x8xbf16>
    %214 = vector.extract_strided_slice %181 {offsets = [0, 8], sizes = [16, 8], strides = [1, 1]} : vector<16x32xf32> to vector<16x8xf32>
    %215 = arith.truncf %214 : vector<16x8xf32> to vector<16x8xbf16>
    %216 = vector.extract_strided_slice %182 {offsets = [0, 8], sizes = [16, 8], strides = [1, 1]} : vector<16x32xf32> to vector<16x8xf32>
    %217 = arith.truncf %216 : vector<16x8xf32> to vector<16x8xbf16>
    %cst_86 = arith.constant dense<0.000000e+00> : vector<8x16xf32>
    %218 = tpu.matmul %213, %215, %cst_86 {dimension_numbers = #tpu.dot_dimension_numbers<[1], [1], [0], [0], [0, 0, 1, 0], [], []>} : vector<8x8xbf16>, vector<16x8xbf16>, vector<8x16xf32> -> vector<8x16xf32>
    %cst_87 = arith.constant dense<0xFF800000> : vector<8xf32>
    %219 = vector.multi_reduction <maximumf>, %218, %cst_87 [1] : vector<8x16xf32> to vector<8xf32>
    %220 = vector.shape_cast %219 : vector<8xf32> to vector<8x1xf32>
    %221 = vector.broadcast %220 : vector<8x1xf32> to vector<8x16xf32>
    %222 = arith.subf %218, %221 : vector<8x16xf32>
    %223 = math.exp %222 : vector<8x16xf32>
    %cst_88 = arith.constant dense<0.000000e+00> : vector<8xf32>
    %224 = vector.multi_reduction <add>, %223, %cst_88 [1] : vector<8x16xf32> to vector<8xf32>
    %225 = vector.shape_cast %224 : vector<8xf32> to vector<8x1xf32>
    %226 = tpu.reciprocal %225 {approx = true} : vector<8x1xf32> -> vector<8x1xf32>
    %227 = vector.broadcast %226 : vector<8x1xf32> to vector<8x16xf32>
    %228 = arith.mulf %223, %227 : vector<8x16xf32>
    %229 = arith.truncf %228 : vector<8x16xf32> to vector<8x16xbf16>
    %cst_89 = arith.constant dense<0.000000e+00> : vector<8x8xf32>
    %230 = tpu.matmul %229, %217, %cst_89 {dimension_numbers = #tpu.dot_dimension_numbers<[1], [0], [0], [1], [0, 0, 1, 1], [], []>} : vector<8x16xbf16>, vector<16x8xbf16>, vector<8x8xf32> -> vector<8x8xf32>
    %231 = arith.truncf %230 : vector<8x8xf32> to vector<8x8xbf16>
    %232 = vector.extract_strided_slice %184 {offsets = [1, 0, 0], sizes = [1, 8, 32], strides = [1, 1, 1]} : vector<4x8x32xbf16> to vector<1x8x32xbf16>
    %233 = vector.shape_cast %232 : vector<1x8x32xbf16> to vector<8x32xbf16>
    %cst_90 = arith.constant dense<0.000000e+00> : vector<8x32xf32>
    %234 = tpu.matmul %231, %233, %cst_90 {dimension_numbers = #tpu.dot_dimension_numbers<[1], [0], [0], [1], [0, 0, 1, 1], [], []>} : vector<8x8xbf16>, vector<8x32xbf16>, vector<8x32xf32> -> vector<8x32xf32>
    %235 = arith.addf %209, %234 : vector<8x32xf32>
    %236 = vector.extract_strided_slice %172 {offsets = [0, 16], sizes = [8, 8], strides = [1, 1]} : vector<8x32xf32> to vector<8x8xf32>
    %cst_91 = arith.constant 0.353553385 : f32
    %237 = vector.broadcast %cst_91 : f32 to vector<8x8xf32>
    %238 = arith.mulf %236, %237 : vector<8x8xf32>
    %239 = arith.truncf %238 : vector<8x8xf32> to vector<8x8xbf16>
    %240 = vector.extract_strided_slice %181 {offsets = [0, 16], sizes = [16, 8], strides = [1, 1]} : vector<16x32xf32> to vector<16x8xf32>
    %241 = arith.truncf %240 : vector<16x8xf32> to vector<16x8xbf16>
    %242 = vector.extract_strided_slice %182 {offsets = [0, 16], sizes = [16, 8], strides = [1, 1]} : vector<16x32xf32> to vector<16x8xf32>
    %243 = arith.truncf %242 : vector<16x8xf32> to vector<16x8xbf16>
    %cst_92 = arith.constant dense<0.000000e+00> : vector<8x16xf32>
    %244 = tpu.matmul %239, %241, %cst_92 {dimension_numbers = #tpu.dot_dimension_numbers<[1], [1], [0], [0], [0, 0, 1, 0], [], []>} : vector<8x8xbf16>, vector<16x8xbf16>, vector<8x16xf32> -> vector<8x16xf32>
    %cst_93 = arith.constant dense<0xFF800000> : vector<8xf32>
    %245 = vector.multi_reduction <maximumf>, %244, %cst_93 [1] : vector<8x16xf32> to vector<8xf32>
    %246 = vector.shape_cast %245 : vector<8xf32> to vector<8x1xf32>
    %247 = vector.broadcast %246 : vector<8x1xf32> to vector<8x16xf32>
    %248 = arith.subf %244, %247 : vector<8x16xf32>
    %249 = math.exp %248 : vector<8x16xf32>
    %cst_94 = arith.constant dense<0.000000e+00> : vector<8xf32>
    %250 = vector.multi_reduction <add>, %249, %cst_94 [1] : vector<8x16xf32> to vector<8xf32>
    %251 = vector.shape_cast %250 : vector<8xf32> to vector<8x1xf32>
    %252 = tpu.reciprocal %251 {approx = true} : vector<8x1xf32> -> vector<8x1xf32>
    %253 = vector.broadcast %252 : vector<8x1xf32> to vector<8x16xf32>
    %254 = arith.mulf %249, %253 : vector<8x16xf32>
    %255 = arith.truncf %254 : vector<8x16xf32> to vector<8x16xbf16>
    %cst_95 = arith.constant dense<0.000000e+00> : vector<8x8xf32>
    %256 = tpu.matmul %255, %243, %cst_95 {dimension_numbers = #tpu.dot_dimension_numbers<[1], [0], [0], [1], [0, 0, 1, 1], [], []>} : vector<8x16xbf16>, vector<16x8xbf16>, vector<8x8xf32> -> vector<8x8xf32>
    %257 = arith.truncf %256 : vector<8x8xf32> to vector<8x8xbf16>
    %258 = vector.extract_strided_slice %184 {offsets = [2, 0, 0], sizes = [1, 8, 32], strides = [1, 1, 1]} : vector<4x8x32xbf16> to vector<1x8x32xbf16>
    %259 = vector.shape_cast %258 : vector<1x8x32xbf16> to vector<8x32xbf16>
    %cst_96 = arith.constant dense<0.000000e+00> : vector<8x32xf32>
    %260 = tpu.matmul %257, %259, %cst_96 {dimension_numbers = #tpu.dot_dimension_numbers<[1], [0], [0], [1], [0, 0, 1, 1], [], []>} : vector<8x8xbf16>, vector<8x32xbf16>, vector<8x32xf32> -> vector<8x32xf32>
    %261 = arith.addf %235, %260 : vector<8x32xf32>
    %262 = vector.extract_strided_slice %172 {offsets = [0, 24], sizes = [8, 8], strides = [1, 1]} : vector<8x32xf32> to vector<8x8xf32>
    %cst_97 = arith.constant 0.353553385 : f32
    %263 = vector.broadcast %cst_97 : f32 to vector<8x8xf32>
    %264 = arith.mulf %262, %263 : vector<8x8xf32>
    %265 = arith.truncf %264 : vector<8x8xf32> to vector<8x8xbf16>
    %266 = vector.extract_strided_slice %181 {offsets = [0, 24], sizes = [16, 8], strides = [1, 1]} : vector<16x32xf32> to vector<16x8xf32>
    %267 = arith.truncf %266 : vector<16x8xf32> to vector<16x8xbf16>
    %268 = vector.extract_strided_slice %182 {offsets = [0, 24], sizes = [16, 8], strides = [1, 1]} : vector<16x32xf32> to vector<16x8xf32>
    %269 = arith.truncf %268 : vector<16x8xf32> to vector<16x8xbf16>
    %cst_98 = arith.constant dense<0.000000e+00> : vector<8x16xf32>
    %270 = tpu.matmul %265, %267, %cst_98 {dimension_numbers = #tpu.dot_dimension_numbers<[1], [1], [0], [0], [0, 0, 1, 0], [], []>} : vector<8x8xbf16>, vector<16x8xbf16>, vector<8x16xf32> -> vector<8x16xf32>
    %cst_99 = arith.constant dense<0xFF800000> : vector<8xf32>
    %271 = vector.multi_reduction <maximumf>, %270, %cst_99 [1] : vector<8x16xf32> to vector<8xf32>
    %272 = vector.shape_cast %271 : vector<8xf32> to vector<8x1xf32>
    %273 = vector.broadcast %272 : vector<8x1xf32> to vector<8x16xf32>
    %274 = arith.subf %270, %273 : vector<8x16xf32>
    %275 = math.exp %274 : vector<8x16xf32>
    %cst_100 = arith.constant dense<0.000000e+00> : vector<8xf32>
    %276 = vector.multi_reduction <add>, %275, %cst_100 [1] : vector<8x16xf32> to vector<8xf32>
    %277 = vector.shape_cast %276 : vector<8xf32> to vector<8x1xf32>
    %278 = tpu.reciprocal %277 {approx = true} : vector<8x1xf32> -> vector<8x1xf32>
    %279 = vector.broadcast %278 : vector<8x1xf32> to vector<8x16xf32>
    %280 = arith.mulf %275, %279 : vector<8x16xf32>
    %281 = arith.truncf %280 : vector<8x16xf32> to vector<8x16xbf16>
    %cst_101 = arith.constant dense<0.000000e+00> : vector<8x8xf32>
    %282 = tpu.matmul %281, %269, %cst_101 {dimension_numbers = #tpu.dot_dimension_numbers<[1], [0], [0], [1], [0, 0, 1, 1], [], []>} : vector<8x16xbf16>, vector<16x8xbf16>, vector<8x8xf32> -> vector<8x8xf32>
    %283 = arith.truncf %282 : vector<8x8xf32> to vector<8x8xbf16>
    %284 = vector.extract_strided_slice %184 {offsets = [3, 0, 0], sizes = [1, 8, 32], strides = [1, 1, 1]} : vector<4x8x32xbf16> to vector<1x8x32xbf16>
    %285 = vector.shape_cast %284 : vector<1x8x32xbf16> to vector<8x32xbf16>
    %cst_102 = arith.constant dense<0.000000e+00> : vector<8x32xf32>
    %286 = tpu.matmul %283, %285, %cst_102 {dimension_numbers = #tpu.dot_dimension_numbers<[1], [0], [0], [1], [0, 0, 1, 1], [], []>} : vector<8x8xbf16>, vector<8x32xbf16>, vector<8x32xf32> -> vector<8x32xf32>
    %287 = arith.addf %261, %286 : vector<8x32xf32>
    %c0_103 = arith.constant 0 : index
    %c0_104 = arith.constant 0 : index
    %c0_105 = arith.constant 0 : index
    %288 = vector.load %arg19[%c0_103, %c0_104, %c0_105] : memref<1x1x32xf32, #tpu.memory_space<vmem>>, vector<1x1x32xf32>
    %289 = vector.shape_cast %288 : vector<1x1x32xf32> to vector<1x32xf32>
    %290 = vector.broadcast %289 : vector<1x32xf32> to vector<8x32xf32>
    %291 = arith.addf %287, %290 : vector<8x32xf32>
    %292 = arith.addf %291, %164 : vector<8x32xf32>
    %c0_106 = arith.constant 0 : index
    %c0_107 = arith.constant 0 : index
    %c0_108 = arith.constant 0 : index
    %293 = vector.load %arg20[%c0_106, %c0_107, %c0_108] : memref<1x1x32xf32, #tpu.memory_space<vmem>>, vector<1x1x32xf32>
    %294 = vector.shape_cast %293 : vector<1x1x32xf32> to vector<1x32xf32>
    %c0_109 = arith.constant 0 : index
    %c0_110 = arith.constant 0 : index
    %c0_111 = arith.constant 0 : index
    %295 = vector.load %arg21[%c0_109, %c0_110, %c0_111] : memref<1x1x32xf32, #tpu.memory_space<vmem>>, vector<1x1x32xf32>
    %296 = vector.shape_cast %295 : vector<1x1x32xf32> to vector<1x32xf32>
    %cst_112 = arith.constant dense<0.000000e+00> : vector<8xf32>
    %297 = vector.multi_reduction <add>, %292, %cst_112 [1] : vector<8x32xf32> to vector<8xf32>
    %298 = vector.shape_cast %297 : vector<8xf32> to vector<8x1xf32>
    %cst_113 = arith.constant 3.200000e+01 : f32
    %299 = vector.broadcast %cst_113 : f32 to vector<8x1xf32>
    %300 = arith.divf %298, %299 : vector<8x1xf32>
    %301 = vector.broadcast %300 : vector<8x1xf32> to vector<8x32xf32>
    %302 = arith.subf %292, %301 : vector<8x32xf32>
    %303 = arith.mulf %302, %302 : vector<8x32xf32>
    %cst_114 = arith.constant dense<0.000000e+00> : vector<8xf32>
    %304 = vector.multi_reduction <add>, %303, %cst_114 [1] : vector<8x32xf32> to vector<8xf32>
    %305 = vector.shape_cast %304 : vector<8xf32> to vector<8x1xf32>
    %cst_115 = arith.constant 3.200000e+01 : f32
    %306 = vector.broadcast %cst_115 : f32 to vector<8x1xf32>
    %307 = arith.divf %305, %306 : vector<8x1xf32>
    %308 = vector.broadcast %300 : vector<8x1xf32> to vector<8x32xf32>
    %309 = arith.subf %292, %308 : vector<8x32xf32>
    %cst_116 = arith.constant 9.99999974E-6 : f32
    %310 = vector.broadcast %cst_116 : f32 to vector<8x1xf32>
    %311 = arith.addf %307, %310 : vector<8x1xf32>
    %312 = math.rsqrt %311 : vector<8x1xf32>
    %313 = vector.broadcast %312 : vector<8x1xf32> to vector<8x32xf32>
    %314 = arith.mulf %309, %313 : vector<8x32xf32>
    %315 = vector.broadcast %294 : vector<1x32xf32> to vector<8x32xf32>
    %316 = arith.mulf %314, %315 : vector<8x32xf32>
    %317 = vector.broadcast %296 : vector<1x32xf32> to vector<8x32xf32>
    %318 = arith.addf %316, %317 : vector<8x32xf32>
    %c0_117 = arith.constant 0 : index
    %c0_118 = arith.constant 0 : index
    %c0_119 = arith.constant 0 : index
    %319 = vector.load %arg22[%c0_117, %c0_118, %c0_119] : memref<1x32x64xbf16, #tpu.memory_space<vmem>>, vector<1x32x64xbf16>
    %320 = vector.shape_cast %319 : vector<1x32x64xbf16> to vector<32x64xbf16>
    %c0_120 = arith.constant 0 : index
    %c0_121 = arith.constant 0 : index
    %c0_122 = arith.constant 0 : index
    %321 = vector.load %arg23[%c0_120, %c0_121, %c0_122] : memref<1x1x64xf32, #tpu.memory_space<vmem>>, vector<1x1x64xf32>
    %322 = vector.shape_cast %321 : vector<1x1x64xf32> to vector<1x64xf32>
    %323 = arith.truncf %318 : vector<8x32xf32> to vector<8x32xbf16>
    %cst_123 = arith.constant dense<0.000000e+00> : vector<8x64xf32>
    %324 = tpu.matmul %323, %320, %cst_123 {dimension_numbers = #tpu.dot_dimension_numbers<[1], [0], [0], [1], [0, 0, 1, 1], [], []>} : vector<8x32xbf16>, vector<32x64xbf16>, vector<8x64xf32> -> vector<8x64xf32>
    %325 = vector.broadcast %322 : vector<1x64xf32> to vector<8x64xf32>
    %326 = arith.addf %324, %325 : vector<8x64xf32>
    %cst_124 = arith.constant 0.000000e+00 : f32
    %327 = vector.broadcast %cst_124 : f32 to vector<8x64xf32>
    %328 = arith.maximumf %326, %327 : vector<8x64xf32>
    %c0_125 = arith.constant 0 : index
    %c0_126 = arith.constant 0 : index
    %c0_127 = arith.constant 0 : index
    %329 = vector.load %arg24[%c0_125, %c0_126, %c0_127] : memref<1x64x32xbf16, #tpu.memory_space<vmem>>, vector<1x64x32xbf16>
    %330 = vector.shape_cast %329 : vector<1x64x32xbf16> to vector<64x32xbf16>
    %c0_128 = arith.constant 0 : index
    %c0_129 = arith.constant 0 : index
    %c0_130 = arith.constant 0 : index
    %331 = vector.load %arg25[%c0_128, %c0_129, %c0_130] : memref<1x1x32xf32, #tpu.memory_space<vmem>>, vector<1x1x32xf32>
    %332 = vector.shape_cast %331 : vector<1x1x32xf32> to vector<1x32xf32>
    %333 = arith.truncf %328 : vector<8x64xf32> to vector<8x64xbf16>
    %cst_131 = arith.constant dense<0.000000e+00> : vector<8x32xf32>
    %334 = tpu.matmul %333, %330, %cst_131 {dimension_numbers = #tpu.dot_dimension_numbers<[1], [0], [0], [1], [0, 0, 1, 1], [], []>} : vector<8x64xbf16>, vector<64x32xbf16>, vector<8x32xf32> -> vector<8x32xf32>
    %335 = vector.broadcast %332 : vector<1x32xf32> to vector<8x32xf32>
    %336 = arith.addf %334, %335 : vector<8x32xf32>
    %337 = arith.addf %336, %318 : vector<8x32xf32>
    %c0_132 = arith.constant 0 : index
    %c0_133 = arith.constant 0 : index
    %c0_134 = arith.constant 0 : index
    %338 = vector.load %arg26[%c0_132, %c0_133, %c0_134] : memref<1x1x32xf32, #tpu.memory_space<vmem>>, vector<1x1x32xf32>
    %339 = vector.shape_cast %338 : vector<1x1x32xf32> to vector<1x32xf32>
    %c0_135 = arith.constant 0 : index
    %c0_136 = arith.constant 0 : index
    %c0_137 = arith.constant 0 : index
    %340 = vector.load %arg27[%c0_135, %c0_136, %c0_137] : memref<1x1x32xf32, #tpu.memory_space<vmem>>, vector<1x1x32xf32>
    %341 = vector.shape_cast %340 : vector<1x1x32xf32> to vector<1x32xf32>
    %cst_138 = arith.constant dense<0.000000e+00> : vector<8xf32>
    %342 = vector.multi_reduction <add>, %337, %cst_138 [1] : vector<8x32xf32> to vector<8xf32>
    %343 = vector.shape_cast %342 : vector<8xf32> to vector<8x1xf32>
    %cst_139 = arith.constant 3.200000e+01 : f32
    %344 = vector.broadcast %cst_139 : f32 to vector<8x1xf32>
    %345 = arith.divf %343, %344 : vector<8x1xf32>
    %346 = vector.broadcast %345 : vector<8x1xf32> to vector<8x32xf32>
    %347 = arith.subf %337, %346 : vector<8x32xf32>
    %348 = arith.mulf %347, %347 : vector<8x32xf32>
    %cst_140 = arith.constant dense<0.000000e+00> : vector<8xf32>
    %349 = vector.multi_reduction <add>, %348, %cst_140 [1] : vector<8x32xf32> to vector<8xf32>
    %350 = vector.shape_cast %349 : vector<8xf32> to vector<8x1xf32>
    %cst_141 = arith.constant 3.200000e+01 : f32
    %351 = vector.broadcast %cst_141 : f32 to vector<8x1xf32>
    %352 = arith.divf %350, %351 : vector<8x1xf32>
    %353 = vector.broadcast %345 : vector<8x1xf32> to vector<8x32xf32>
    %354 = arith.subf %337, %353 : vector<8x32xf32>
    %cst_142 = arith.constant 9.99999974E-6 : f32
    %355 = vector.broadcast %cst_142 : f32 to vector<8x1xf32>
    %356 = arith.addf %352, %355 : vector<8x1xf32>
    %357 = math.rsqrt %356 : vector<8x1xf32>
    %358 = vector.broadcast %357 : vector<8x1xf32> to vector<8x32xf32>
    %359 = arith.mulf %354, %358 : vector<8x32xf32>
    %360 = vector.broadcast %339 : vector<1x32xf32> to vector<8x32xf32>
    %361 = arith.mulf %359, %360 : vector<8x32xf32>
    %362 = vector.broadcast %341 : vector<1x32xf32> to vector<8x32xf32>
    %363 = arith.addf %361, %362 : vector<8x32xf32>
    %c0_143 = arith.constant 0 : index
    %c0_144 = arith.constant 0 : index
    %c0_145 = arith.constant 0 : index
    %364 = vector.load %arg28[%c0_143, %c0_144, %c0_145] : memref<1x8x32xf32, #tpu.memory_space<vmem>>, vector<1x8x32xf32>
    %365 = vector.shape_cast %364 : vector<1x8x32xf32> to vector<8x32xf32>
    %366 = vector.shape_cast %363 : vector<8x32xf32> to vector<1x8x32xf32>
    tpu.vector_store %arg28[%c0_143, %c0_144, %c0_145], %366 {strides = array<i32>} : memref<1x8x32xf32, #tpu.memory_space<vmem>>, vector<1x8x32xf32>,
    return
  }
  func.func @transform_0(%arg0: i32, %arg1: i32) -> (i32, i32, i32) {
    %c0_i32 = arith.constant 0 : i32
    %c0_i32_0 = arith.constant 0 : i32
    %c0_i32_1 = arith.constant 0 : i32
    return %arg0, %c0_i32, %c0_i32_0 : i32, i32, i32
  }
  func.func @transform_1(%arg0: i32, %arg1: i32) -> (i32, i32, i32) {
    %c0_i32 = arith.constant 0 : i32
    %c0_i32_0 = arith.constant 0 : i32
    %c0_i32_1 = arith.constant 0 : i32
    return %arg0, %c0_i32, %c0_i32_0 : i32, i32, i32
  }
  func.func @transform_2(%arg0: i32, %arg1: i32) -> (i32, i32) {
    %c0_i32 = arith.constant 0 : i32
    %c0_i32_0 = arith.constant 0 : i32
    %c0_i32_1 = arith.constant 0 : i32
    return %c0_i32, %c0_i32_0 : i32, i32
  }
  func.func @transform_3(%arg0: i32, %arg1: i32) -> (i32, i32) {
    %c0_i32 = arith.constant 0 : i32
    %c0_i32_0 = arith.constant 0 : i32
    %c0_i32_1 = arith.constant 0 : i32
    return %c0_i32, %c0_i32_0 : i32, i32
  }
  func.func @transform_4(%arg0: i32, %arg1: i32) -> (i32, i32) {
    %c0_i32 = arith.constant 0 : i32
    %c0_i32_0 = arith.constant 0 : i32
    %c0_i32_1 = arith.constant 0 : i32
    return %c0_i32, %c0_i32_0 : i32, i32
  }
  func.func @transform_5(%arg0: i32, %arg1: i32) -> (i32, i32, i32) {
    %c0_i32 = arith.constant 0 : i32
    %c0_i32_0 = arith.constant 0 : i32
    %c0_i32_1 = arith.constant 0 : i32
    return %arg0, %c0_i32, %c0_i32_0 : i32, i32, i32
  }
  func.func @transform_6(%arg0: i32, %arg1: i32) -> (i32, i32, i32) {
    %c0_i32 = arith.constant 0 : i32
    %c0_i32_0 = arith.constant 0 : i32
    %c0_i32_1 = arith.constant 0 : i32
    return %arg1, %c0_i32, %c0_i32_0 : i32, i32, i32
  }
  func.func @transform_7(%arg0: i32, %arg1: i32) -> (i32, i32, i32) {
    %c0_i32 = arith.constant 0 : i32
    %c0_i32_0 = arith.constant 0 : i32
    %c0_i32_1 = arith.constant 0 : i32
    return %arg1, %c0_i32, %c0_i32_0 : i32, i32, i32
  }
  func.func @transform_8(%arg0: i32, %arg1: i32) -> (i32, i32, i32, i32) {
    %c0_i32 = arith.constant 0 : i32
    %c0_i32_0 = arith.constant 0 : i32
    %c0_i32_1 = arith.constant 0 : i32
    %c0_i32_2 = arith.constant 0 : i32
    return %arg1, %c0_i32, %c0_i32_0, %c0_i32_1 : i32, i32, i32, i32
  }
  func.func @transform_9(%arg0: i32, %arg1: i32) -> (i32, i32, i32) {
    %c0_i32 = arith.constant 0 : i32
    %c0_i32_0 = arith.constant 0 : i32
    %c0_i32_1 = arith.constant 0 : i32
    return %arg1, %c0_i32, %c0_i32_0 : i32, i32, i32
  }
  func.func @transform_10(%arg0: i32, %arg1: i32) -> (i32, i32, i32) {
    %c0_i32 = arith.constant 0 : i32
    %c0_i32_0 = arith.constant 0 : i32
    %c0_i32_1 = arith.constant 0 : i32
    return %arg1, %c0_i32, %c0_i32_0 : i32, i32, i32
  }
  func.func @transform_11(%arg0: i32, %arg1: i32) -> (i32, i32, i32) {
    %c0_i32 = arith.constant 0 : i32
    %c0_i32_0 = arith.constant 0 : i32
    %c0_i32_1 = arith.constant 0 : i32
    return %arg1, %c0_i32, %c0_i32_0 : i32, i32, i32
  }
  func.func @transform_12(%arg0: i32, %arg1: i32) -> (i32, i32, i32) {
    %c0_i32 = arith.constant 0 : i32
    %c0_i32_0 = arith.constant 0 : i32
    %c0_i32_1 = arith.constant 0 : i32
    return %arg1, %c0_i32, %c0_i32_0 : i32, i32, i32
  }
  func.func @transform_13(%arg0: i32, %arg1: i32) -> (i32, i32, i32) {
    %c0_i32 = arith.constant 0 : i32
    %c0_i32_0 = arith.constant 0 : i32
    %c0_i32_1 = arith.constant 0 : i32
    return %arg1, %c0_i32, %c0_i32_0 : i32, i32, i32
  }
  func.func @transform_14(%arg0: i32, %arg1: i32) -> (i32, i32, i32) {
    %c0_i32 = arith.constant 0 : i32
    %c0_i32_0 = arith.constant 0 : i32
    %c0_i32_1 = arith.constant 0 : i32
    return %arg1, %c0_i32, %c0_i32_0 : i32, i32, i32
  }
  func.func @transform_15(%arg0: i32, %arg1: i32) -> (i32, i32, i32) {
    %c0_i32 = arith.constant 0 : i32
    %c0_i32_0 = arith.constant 0 : i32
    %c0_i32_1 = arith.constant 0 : i32
    return %arg1, %c0_i32, %c0_i32_0 : i32, i32, i32
  }
  func.func @transform_16(%arg0: i32, %arg1: i32) -> (i32, i32, i32, i32) {
    %c0_i32 = arith.constant 0 : i32
    %c0_i32_0 = arith.constant 0 : i32
    %c0_i32_1 = arith.constant 0 : i32
    %c0_i32_2 = arith.constant 0 : i32
    return %arg1, %c0_i32, %c0_i32_0, %c0_i32_1 : i32, i32, i32, i32
  }
  func.func @transform_17(%arg0: i32, %arg1: i32) -> (i32, i32, i32) {
    %c0_i32 = arith.constant 0 : i32
    %c0_i32_0 = arith.constant 0 : i32
    %c0_i32_1 = arith.constant 0 : i32
    return %arg1, %c0_i32, %c0_i32_0 : i32, i32, i32
  }
  func.func @transform_18(%arg0: i32, %arg1: i32) -> (i32, i32, i32) {
    %c0_i32 = arith.constant 0 : i32
    %c0_i32_0 = arith.constant 0 : i32
    %c0_i32_1 = arith.constant 0 : i32
    return %arg1, %c0_i32, %c0_i32_0 : i32, i32, i32
  }
  func.func @transform_19(%arg0: i32, %arg1: i32) -> (i32, i32, i32) {
    %c0_i32 = arith.constant 0 : i32
    %c0_i32_0 = arith.constant 0 : i32
    %c0_i32_1 = arith.constant 0 : i32
    return %arg1, %c0_i32, %c0_i32_0 : i32, i32, i32
  }
  func.func @transform_20(%arg0: i32, %arg1: i32) -> (i32, i32, i32) {
    %c0_i32 = arith.constant 0 : i32
    %c0_i32_0 = arith.constant 0 : i32
    %c0_i32_1 = arith.constant 0 : i32
    return %arg1, %c0_i32, %c0_i32_0 : i32, i32, i32
  }
  func.func @transform_21(%arg0: i32, %arg1: i32) -> (i32, i32, i32) {
    %c0_i32 = arith.constant 0 : i32
    %c0_i32_0 = arith.constant 0 : i32
    %c0_i32_1 = arith.constant 0 : i32
    return %arg1, %c0_i32, %c0_i32_0 : i32, i32, i32
  }
  func.func @transform_22(%arg0: i32, %arg1: i32) -> (i32, i32, i32) {
    %c0_i32 = arith.constant 0 : i32
    %c0_i32_0 = arith.constant 0 : i32
    %c0_i32_1 = arith.constant 0 : i32
    return %arg1, %c0_i32, %c0_i32_0 : i32, i32, i32
  }
  func.func @transform_23(%arg0: i32, %arg1: i32) -> (i32, i32, i32) {
    %c0_i32 = arith.constant 0 : i32
    %c0_i32_0 = arith.constant 0 : i32
    %c0_i32_1 = arith.constant 0 : i32
    return %arg1, %c0_i32, %c0_i32_0 : i32, i32, i32
  }
  func.func @transform_24(%arg0: i32, %arg1: i32) -> (i32, i32, i32) {
    %c0_i32 = arith.constant 0 : i32
    %c0_i32_0 = arith.constant 0 : i32
    %c0_i32_1 = arith.constant 0 : i32
    return %arg1, %c0_i32, %c0_i32_0 : i32, i32, i32
  }
  func.func @transform_25(%arg0: i32, %arg1: i32) -> (i32, i32, i32) {
    %c0_i32 = arith.constant 0 : i32
    %c0_i32_0 = arith.constant 0 : i32
    %c0_i32_1 = arith.constant 0 : i32
    return %arg1, %c0_i32, %c0_i32_0 : i32, i32, i32
  }
  func.func @transform_26(%arg0: i32, %arg1: i32) -> (i32, i32, i32) {
    %c0_i32 = arith.constant 0 : i32
    %c0_i32_0 = arith.constant 0 : i32
    %c0_i32_1 = arith.constant 0 : i32
    return %arg0, %c0_i32, %c0_i32_0 : i32, i32, i32
  }
}

module attributes {stable_mosaic.version = 11 : i64} {
  func.func @_head_kernel(%arg0: i32, %arg1: memref<16x32xf32, #tpu.memory_space<vmem>>, %arg2: memref<32x128xbf16, #tpu.memory_space<vmem>>, %arg3: memref<1x128xf32, #tpu.memory_space<vmem>>, %arg4: memref<16x128xf32, #tpu.memory_space<vmem>>) attributes {dimension_semantics = [#tpu.dimension_semantics<parallel>], iteration_bounds = array<i64: 1>, scalar_prefetch = 0 : i64, scratch_operands = 0 : i64, tpu.core_type = #tpu.core_type<tc>, window_params = [{transform_indices = @transform_0, window_bounds = array<i64: 16, 32>}, {pipeline_mode = #tpu.pipeline_mode<synchronous>, transform_indices = @transform_1, window_bounds = array<i64: 32, 128>}, {pipeline_mode = #tpu.pipeline_mode<synchronous>, transform_indices = @transform_2, window_bounds = array<i64: 1, 128>}, {transform_indices = @transform_3, window_bounds = array<i64: 16, 128>}]} {
    %c0 = arith.constant 0 : index
    %c0_0 = arith.constant 0 : index
    %0 = vector.load %arg1[%c0, %c0_0] : memref<16x32xf32, #tpu.memory_space<vmem>>, vector<16x32xf32>
    %1 = arith.truncf %0 : vector<16x32xf32> to vector<16x32xbf16>
    %c0_1 = arith.constant 0 : index
    %c0_2 = arith.constant 0 : index
    %2 = vector.load %arg2[%c0_1, %c0_2] : memref<32x128xbf16, #tpu.memory_space<vmem>>, vector<32x128xbf16>
    %cst = arith.constant dense<0.000000e+00> : vector<16x128xf32>
    %3 = tpu.matmul %1, %2, %cst {dimension_numbers = #tpu.dot_dimension_numbers<[1], [0], [0], [1], [0, 0, 1, 1], [], []>} : vector<16x32xbf16>, vector<32x128xbf16>, vector<16x128xf32> -> vector<16x128xf32>
    %c0_3 = arith.constant 0 : index
    %c0_4 = arith.constant 0 : index
    %4 = vector.load %arg3[%c0_3, %c0_4] : memref<1x128xf32, #tpu.memory_space<vmem>>, vector<1x128xf32>
    %5 = vector.broadcast %4 : vector<1x128xf32> to vector<16x128xf32>
    %6 = arith.addf %3, %5 : vector<16x128xf32>
    %7 = tpu.iota {dimensions = array<i32: 1>} : vector<16x128xi32>
    %c16_i32 = arith.constant 16 : i32
    %8 = vector.broadcast %c16_i32 : i32 to vector<16x128xi32>
    %9 = arith.cmpi sge, %7, %8 : vector<16x128xi32>
    %c20_i32 = arith.constant 20 : i32
    %10 = vector.broadcast %c20_i32 : i32 to vector<16x128xi32>
    %11 = arith.cmpi slt, %7, %10 : vector<16x128xi32>
    %12 = arith.andi %9, %11 : vector<16x128xi1>
    %13 = arith.negf %6 : vector<16x128xf32>
    %14 = math.exp %13 : vector<16x128xf32>
    %cst_5 = arith.constant 1.000000e+00 : f32
    %15 = vector.broadcast %cst_5 : f32 to vector<16x128xf32>
    %16 = arith.addf %15, %14 : vector<16x128xf32>
    %17 = arith.divf %15, %16 : vector<16x128xf32>
    %18 = arith.select %12, %17, %6 : vector<16x128xi1>, vector<16x128xf32>
    %c0_6 = arith.constant 0 : index
    %c0_7 = arith.constant 0 : index
    %19 = vector.load %arg4[%c0_6, %c0_7] : memref<16x128xf32, #tpu.memory_space<vmem>>, vector<16x128xf32>
    tpu.vector_store %arg4[%c0_6, %c0_7], %18 {strides = array<i32>} : memref<16x128xf32, #tpu.memory_space<vmem>>, vector<16x128xf32>,
    return
  }
  func.func @transform_0(%arg0: i32) -> (i32, i32) {
    %c0_i32 = arith.constant 0 : i32
    %c0_i32_0 = arith.constant 0 : i32
    return %arg0, %c0_i32 : i32, i32
  }
  func.func @transform_1(%arg0: i32) -> (i32, i32) {
    %c0_i32 = arith.constant 0 : i32
    %c0_i32_0 = arith.constant 0 : i32
    %c0_i32_1 = arith.constant 0 : i32
    return %c0_i32, %c0_i32_0 : i32, i32
  }
  func.func @transform_2(%arg0: i32) -> (i32, i32) {
    %c0_i32 = arith.constant 0 : i32
    %c0_i32_0 = arith.constant 0 : i32
    %c0_i32_1 = arith.constant 0 : i32
    return %c0_i32, %c0_i32_0 : i32, i32
  }
  func.func @transform_3(%arg0: i32) -> (i32, i32) {
    %c0_i32 = arith.constant 0 : i32
    %c0_i32_0 = arith.constant 0 : i32
    return %arg0, %c0_i32 : i32, i32
  }
}

</mosaic_0001>

<llo_original>
// kernel: decoder_forward.3
$region0: #{decoder_forward.3}
  #allocation0 [shape = 'u32[]', space=smem, size = 0x4, offset = 0x4, fixed_abs, tag = 'smem constant byte address 0x4 - core index']
  #allocation1 [shape = 'u32[72,128]{1,0:T(1,128)}', space=vmem, size = 0x9000, scoped, tag = 'internal scratch']
  %s0 = inlined_call_operand.vmem [shape: f32[16,32], index: 0, kind: input, shape index: {}]
  %s1 = inlined_call_operand.vmem [shape: bf16[32,128], index: 1, kind: input, shape index: {}]
  %s2 = inlined_call_operand.vmem [shape: f32[1,128], index: 2, kind: input, shape index: {}]
  %s3 = inlined_call_operand.vmem [shape: f32[16,128], index: 3, kind: output, shape index: {}]
  %s4 = sld [smem:[#allocation0]]
  $region22: #{decoder_forward.3} parent=0
    _
  %s6 = ssub.s32 1, %s4
  %s7 = scalar_select 0, %s6, %s4
  // Predicated region
  $region2: #{decoder_forward.3} parent=0 // pred_check
    _
  $region3: #{decoder_forward.3} parent=0 // pred_check_branch
    %9 = sbr.rel (0) target = $region5
  $region4: #{decoder_forward.3} parent=0 // pred_region
    _
  $region5: #{decoder_forward.3} parent=0 // pred_fallthru
    _
  // Predicated region
  $region6: #{decoder_forward.3} parent=0 // pred_check
    _
  $region7: #{decoder_forward.3} parent=0 // pred_check_branch
    %11 = sbr.rel (0) target = $region9
  $region8: #{decoder_forward.3} parent=0 // pred_region
    _
  $region9: #{decoder_forward.3} parent=0 // pred_fallthru
    _
  // Predicated region
  $region10: #{decoder_forward.3} parent=0 // pred_check
    _
  $region11: #{decoder_forward.3} parent=0 // pred_check_branch
    %13 = sbr.rel (0) target = $region13
  $region12: #{decoder_forward.3} parent=0 // pred_region
    _
  $region13: #{decoder_forward.3} parent=0 // pred_fallthru
    _
  %v15 = vld [vmem:[%s0] sm:$0xff]
  %v16 = vld [vmem:[%s0 + $0x8] sm:$0xff]
  %v17 = vpack.c.bf16 %v16, %v15
  %v18 = vld [vmem:[%s1] sm:$0xf]
  %v19 = vld [vmem:[%s1 + $0x4] sm:$0xf]
  %v20 = vld [vmem:[%s1 + $0x8] sm:$0xf]
  %v21 = vld [vmem:[%s1 + $0xc] sm:$0xf]
  %v22 = vld [vmem:[%s2] sm:$0x1]
  %v24 = vperm.slane %v22, 0
  %v30 = vunpack.c.l.b16 %v18
  %v31 = vunpack.c.l.b16 %v19
  %v32 = vunpack.c.l.b16 %v20
  %v33 = vunpack.c.l.b16 %v21
  %v34 = vpack.c.b16 %v31, %v30
  %v35 = vpack.c.b16 %v33, %v32
  %vm38 = vcmask 261120
  %v40 = vsel %vm38, %v17, 0
  %42 = vmatpush.bf16.msra.mxu0 0
  %43 = vmatpush.bf16.msra.mxu0 0
  %44 = vmatpush.bf16.msra.mxu0 0
  %45 = vmatpush.bf16.msra.mxu0 0
  %46 = vmatpush.bf16.msra.mxu0 0
  %47 = vmatpush.bf16.msra.mxu0 0
  %48 = vmatpush.bf16.msra.mxu0 %v35
  %49 = vmatpush.bf16.msra.mxu0 %v34
  %50 = vmatmul.bf16.gmra.mxu0 %v40
  %v51 = vpop.f32.mrf.mxu0
  %v52 = vadd.f32 %v24, %v51
  %v53 = vpop.f32.mrf.mxu0
  %v54 = vadd.f32 %v24, %v53
  %55 = vdwg.mxu0
  %v56 = vlaneseq
  %v57 = vand.u32 %v56, 127
  %vm58 = vcmp.ge.s32.totalorder %v57, 16
  %vm59 = vcmp.lt.s32.totalorder %v57, 20
  %vm60 = vmand %vm58, %vm59
  %v61 = vxor.u32 %v52, 2147483648
  %v62 = vxor.u32 %v54, 2147483648
  %v63 = vmul.f32 %v61, 1.442695
  %v64 = vpow.pop %v63
  %v65 = vmul.f32 %v62, 1.442695
  %v66 = vpow.pop %v65
  %v67 = vadd.f32 %v64, 1.0
  %v68 = vadd.f32 %v66, 1.0
  %v69 = vrcp.pop %v67
  %v70 = vmul.f32 %v67, %v69
  %v71 = vsub.f32 1.0, %v70
  %v72 = vmul.f32 %v69, %v71
  %v73 = vadd.f32 %v69, %v72
  %vm74 = vweird.f32 %v67
  %vm75 = vweird.f32 %v69
  %vm76 = vmor %vm74, %vm75
  %v77 = vsel %vm76, %v69, %v73
  %v78 = vand.u32 2147483647, %v67
  %vm79 = vcmp.eq.f32.partialorder %v78, 8.507059e+37
  %v80 = vand.u32 %v67, 2147483648
  %v81 = vor.u32 1.1754944e-38, %v80
  %v82 = vsel %vm79, %v81, %v77
  %v83 = vmul.f32 1.0, %v82
  %v84 = vrcp.pop %v68
  %v85 = vmul.f32 %v68, %v84
  %v86 = vsub.f32 1.0, %v85
  %v87 = vmul.f32 %v84, %v86
  %v88 = vadd.f32 %v84, %v87
  %vm89 = vweird.f32 %v68
  %vm90 = vweird.f32 %v84
  %vm91 = vmor %vm89, %vm90
  %v92 = vsel %vm91, %v84, %v88
  %v93 = vand.u32 2147483647, %v68
  %vm94 = vcmp.eq.f32.partialorder %v93, 8.507059e+37
  %v95 = vand.u32 %v68, 2147483648
  %v96 = vor.u32 1.1754944e-38, %v95
  %v97 = vsel %vm94, %v96, %v92
  %v98 = vmul.f32 1.0, %v97
  %v99 = vsel %vm60, %v83, %v52
  %v100 = vsel %vm60, %v98, %v54
  %101 = vst [vmem:[%s3] sm:$0xff] %v99
  %102 = vst [vmem:[%s3 + $0x8] sm:$0xff] %v100
  // Predicated region
  $region14: #{decoder_forward.3} parent=0 // pred_check
    _
  $region15: #{decoder_forward.3} parent=0 // pred_check_branch
    %104 = sbr.rel (0) target = $region17
  $region16: #{decoder_forward.3} parent=0 // pred_region
    _
  $region17: #{decoder_forward.3} parent=0 // pred_fallthru
    _
  // Predicated region
  $region18: #{decoder_forward.3} parent=0 // pred_check
    _
  $region19: #{decoder_forward.3} parent=0 // pred_check_branch
    %106 = sbr.rel (0) target = $region21
  $region20: #{decoder_forward.3} parent=0 // pred_region
    _
  $region21: #{decoder_forward.3} parent=0 // pred_fallthru
    _

// kernel: decoder_forward.2
$region0: #{decoder_forward.2}
  #allocation0 [shape = 'u32[]', space=smem, size = 0x4, offset = 0x4, fixed_abs, tag = 'smem constant byte address 0x4 - core index']
  #allocation1 [shape = 'u32[72,128]{1,0:T(1,128)}', space=vmem, size = 0x9000, scoped, tag = 'internal scratch']
  #allocation2 [shape = 'f32[8,8]{1,0:T(8,128)}', space=vmem, size = 0x1000, scoped, tag = 'scratch operand']
  %s0 = inlined_call_operand.vmem [shape: s32[2,1,8], index: 0, kind: input, shape index: {}]
  %s1 = inlined_call_operand.vmem [shape: f32[2,8,32], index: 1, kind: input, shape index: {}]
  %s2 = inlined_call_operand.vmem [shape: f32[8,32], index: 2, kind: input, shape index: {}]
  %s3 = inlined_call_operand.vmem [shape: f32[1,32], index: 3, kind: input, shape index: {}]
  %s4 = inlined_call_operand.vmem [shape: f32[1,32], index: 4, kind: input, shape index: {}]
  %s5 = inlined_call_operand.vmem [shape: f32[2,16,32], index: 5, kind: input, shape index: {}]
  %s6 = inlined_call_operand.vmem [shape: bf16[2,32,96], index: 6, kind: input, shape index: {}]
  %s7 = inlined_call_operand.vmem [shape: f32[2,1,96], index: 7, kind: input, shape index: {}]
  %s8 = inlined_call_operand.vmem [shape: bf16[2,4,8,32], index: 8, kind: input, shape index: {}]
  %s9 = inlined_call_operand.vmem [shape: f32[2,1,32], index: 9, kind: input, shape index: {}]
  %s10 = inlined_call_operand.vmem [shape: f32[2,1,32], index: 10, kind: input, shape index: {}]
  %s11 = inlined_call_operand.vmem [shape: f32[2,1,32], index: 11, kind: input, shape index: {}]
  %s12 = inlined_call_operand.vmem [shape: bf16[2,32,32], index: 12, kind: input, shape index: {}]
  %s13 = inlined_call_operand.vmem [shape: f32[2,1,32], index: 13, kind: input, shape index: {}]
  %s14 = inlined_call_operand.vmem [shape: bf16[2,32,64], index: 14, kind: input, shape index: {}]
  %s15 = inlined_call_operand.vmem [shape: f32[2,1,64], index: 15, kind: input, shape index: {}]
  %s16 = inlined_call_operand.vmem [shape: bf16[2,4,8,32], index: 16, kind: input, shape index: {}]
  %s17 = inlined_call_operand.vmem [shape: f32[2,1,32], index: 17, kind: input, shape index: {}]
  %s18 = inlined_call_operand.vmem [shape: f32[2,1,32], index: 18, kind: input, shape index: {}]
  %s19 = inlined_call_operand.vmem [shape: f32[2,1,32], index: 19, kind: input, shape index: {}]
  %s20 = inlined_call_operand.vmem [shape: bf16[2,32,64], index: 20, kind: input, shape index: {}]
  %s21 = inlined_call_operand.vmem [shape: f32[2,1,64], index: 21, kind: input, shape index: {}]
  %s22 = inlined_call_operand.vmem [shape: bf16[2,64,32], index: 22, kind: input, shape index: {}]
  %s23 = inlined_call_operand.vmem [shape: f32[2,1,32], index: 23, kind: input, shape index: {}]
  %s24 = inlined_call_operand.vmem [shape: f32[2,1,32], index: 24, kind: input, shape index: {}]
  %s25 = inlined_call_operand.vmem [shape: f32[2,1,32], index: 25, kind: input, shape index: {}]
  %s26 = inlined_call_operand.vmem [shape: f32[2,8,32], index: 26, kind: output, shape index: {}]
  %s27 = sld [smem:[#allocation0]]
  $region141: #{decoder_forward.2} parent=0
    _
  %s29 = ssub.s32 1, %s27
  %s30 = scalar_select 0, %s29, %s27
  loop: start=0, step=1, limit=6
  $region2: #{decoder_forward.2} parent=0 // loop_pre_header
    _
  $region3: #{decoder_forward.2} parent=0 // loop_header
    %s32 = sphi 0, %s36
    %p33 = scmp.ge.s32.totalorder %s32, 6
    %s39 = sphi 0, %s51
    %s40 = sphi 0, %s47
    %s41 = sphi 0, %s39
    %s42 = sphi 0, %s40
    %s43 = sphi 0, %s41
    %s44 = sphi 0, %s42
    %s54 = sphi 0, %s56
    %s57 = sphi 0, %s54
    %s58 = sphi 0, %s57
    %s74 = sphi 0, %s58
    %s80 = sphi 0, %s82
    %s83 = sphi 0, %s80
    %s84 = sphi 0, %s83
    %s100 = sphi 0, %s84
    %s104 = sphi 0, %s104
    %s106 = sphi 0, %s104
    %s107 = sphi 0, %s106
    %s121 = sphi 0, %s107
    %s125 = sphi 0, %s125
    %s127 = sphi 0, %s125
    %s128 = sphi 0, %s127
    %s142 = sphi 0, %s128
    %s146 = sphi 0, %s146
    %s148 = sphi 0, %s146
    %s149 = sphi 0, %s148
    %s163 = sphi 0, %s149
    %s169 = sphi 0, %s171
    %s172 = sphi 0, %s169
    %s173 = sphi 0, %s172
    %s189 = sphi 0, %s173
    %s195 = sphi 0, %s197
    %s198 = sphi 0, %s195
    %s199 = sphi 0, %s198
    %s215 = sphi 0, %s199
    %s221 = sphi 0, %s223
    %s224 = sphi 0, %s221
    %s225 = sphi 0, %s224
    %s241 = sphi 0, %s225
    %s247 = sphi 0, %s249
    %s250 = sphi 0, %s247
    %s251 = sphi 0, %s250
    %s267 = sphi 0, %s251
    %s273 = sphi 0, %s275
    %s276 = sphi 0, %s273
    %s277 = sphi 0, %s276
    %s293 = sphi 0, %s277
    %s299 = sphi 0, %s301
    %s302 = sphi 0, %s299
    %s303 = sphi 0, %s302
    %s319 = sphi 0, %s303
    %s325 = sphi 0, %s327
    %s328 = sphi 0, %s325
    %s329 = sphi 0, %s328
    %s345 = sphi 0, %s329
    %s351 = sphi 0, %s353
    %s354 = sphi 0, %s351
    %s355 = sphi 0, %s354
    %s371 = sphi 0, %s355
    %s377 = sphi 0, %s379
    %s380 = sphi 0, %s377
    %s381 = sphi 0, %s380
    %s397 = sphi 0, %s381
    %s403 = sphi 0, %s405
    %s406 = sphi 0, %s403
    %s407 = sphi 0, %s406
    %s423 = sphi 0, %s407
    %s429 = sphi 0, %s431
    %s432 = sphi 0, %s429
    %s433 = sphi 0, %s432
    %s449 = sphi 0, %s433
    %s455 = sphi 0, %s457
    %s458 = sphi 0, %s455
    %s459 = sphi 0, %s458
    %s475 = sphi 0, %s459
    %s481 = sphi 0, %s483
    %s484 = sphi 0, %s481
    %s485 = sphi 0, %s484
    %s501 = sphi 0, %s485
    %s507 = sphi 0, %s509
    %s510 = sphi 0, %s507
    %s511 = sphi 0, %s510
    %s527 = sphi 0, %s511
    %s533 = sphi 0, %s535
    %s536 = sphi 0, %s533
    %s537 = sphi 0, %s536
    %s553 = sphi 0, %s537
    %s559 = sphi 0, %s561
    %s562 = sphi 0, %s559
    %s563 = sphi 0, %s562
    %s579 = sphi 0, %s563
    %s585 = sphi 0, %s587
    %s588 = sphi 0, %s585
    %s589 = sphi 0, %s588
    %s605 = sphi 0, %s589
    %s611 = sphi 0, %s613
    %s614 = sphi 0, %s611
    %s615 = sphi 0, %s614
    %s631 = sphi 0, %s615
    %s637 = sphi 0, %s639
    %s640 = sphi 0, %s637
    %s641 = sphi 0, %s640
    %s657 = sphi 0, %s641
    %s663 = sphi 0, %s665
    %s666 = sphi 0, %s663
    %s667 = sphi 0, %s666
    %s683 = sphi 0, %s667
    %s689 = sphi 0, %s691
    %s692 = sphi 0, %s689
    %s693 = sphi 0, %s692
    %s709 = sphi 0, %s693
    %s715 = sphi 0, %s717
    %s718 = sphi 0, %s715
    %s719 = sphi 0, %s718
    %s735 = sphi 0, %s719
  $region4: #{decoder_forward.2} parent=0 // loop_header_branch
    %35 = sbr.rel (%p33) target = $region8
  $region5: #{decoder_forward.2} parent=0 // loop_body
    %s37 = ssub.s32 %s32, 1
    %s38 = ssub.s32 %s32, 2
    %s45 = sadd.s32 1, %s40
    %p46 = scmp.ge.s32.totalorder %s45, 2
    %s47 = scalar_select %p46, 0, %s45
    %s48 = sadd.s32 1, %s39
    %s49 = scalar_select %p46, %s48, %s39
    %p50 = scmp.ge.s32.totalorder %s49, 2
    %s51 = scalar_select %p50, 0, %s49
    %s52 = ssub.s32 %s39, %s51
    %p53 = scmp.eq.s32.totalorder %s52, 0
    %s55 = sadd.s32 %s54, 1
    %s56 = scalar_select %p53, %s54, %s55
    %p59 = pneg %p53
    %p60 = scmp.eq.s32.totalorder %s32, 3
    %p61 = por %p59, %p60
    %p62 = scmp.ne.s32.totalorder %s54, %s57
    %p63 = scmp.eq.s32.totalorder %s32, 0
    %p64 = por %p62, %p63
    %p65 = scmp.ne.s32.totalorder %s54, %s57
    %p66 = scmp.eq.s32.totalorder %s37, 3
    %p67 = por %p65, %p66
    %p68 = scmp.ne.s32.totalorder %s57, %s58
    %p69 = scmp.eq.s32.totalorder %s37, 0
    %p70 = por %p68, %p69
    %p71 = scmp.ne.s32.totalorder %s57, %s58
    %p72 = scmp.eq.s32.totalorder %s38, 3
    %p73 = por %p71, %p72
    %p75 = scmp.ne.s32.totalorder %s58, %s74
    %p76 = scmp.eq.s32.totalorder %s38, 0
    %p77 = por %p75, %p76
    %s78 = ssub.s32 %s39, %s51
    %p79 = scmp.eq.s32.totalorder %s78, 0
    %s81 = sadd.s32 %s80, 1
    %s82 = scalar_select %p79, %s80, %s81
    %p85 = pneg %p79
    %p86 = scmp.eq.s32.totalorder %s32, 3
    %p87 = por %p85, %p86
    %p88 = scmp.ne.s32.totalorder %s80, %s83
    %p89 = scmp.eq.s32.totalorder %s32, 0
    %p90 = por %p88, %p89
    %p91 = scmp.ne.s32.totalorder %s80, %s83
    %p92 = scmp.eq.s32.totalorder %s37, 3
    %p93 = por %p91, %p92
    %p94 = scmp.ne.s32.totalorder %s83, %s84
    %p95 = scmp.eq.s32.totalorder %s37, 0
    %p96 = por %p94, %p95
    %p97 = scmp.ne.s32.totalorder %s83, %s84
    %p98 = scmp.eq.s32.totalorder %s38, 3
    %p99 = por %p97, %p98
    %p101 = scmp.ne.s32.totalorder %s84, %s100
    %p102 = scmp.eq.s32.totalorder %s38, 0
    %p103 = por %p101, %p102
    %s105 = sadd.s32 %s104, 1
    %p108 = scmp.eq.s32.totalorder %s32, 3
    %p109 = scmp.ne.s32.totalorder %s104, %s106
    %p110 = scmp.eq.s32.totalorder %s32, 0
    %p111 = por %p109, %p110
    %p112 = scmp.ne.s32.totalorder %s104, %s106
    %p113 = scmp.eq.s32.totalorder %s37, 3
    %p114 = por %p112, %p113
    %p115 = scmp.ne.s32.totalorder %s106, %s107
    %p116 = scmp.eq.s32.totalorder %s37, 0
    %p117 = por %p115, %p116
    %p118 = scmp.ne.s32.totalorder %s106, %s107
    %p119 = scmp.eq.s32.totalorder %s38, 3
    %p120 = por %p118, %p119
    %p122 = scmp.ne.s32.totalorder %s107, %s121
    %p123 = scmp.eq.s32.totalorder %s38, 0
    %p124 = por %p122, %p123
    %s126 = sadd.s32 %s125, 1
    %p129 = scmp.eq.s32.totalorder %s32, 3
    %p130 = scmp.ne.s32.totalorder %s125, %s127
    %p131 = scmp.eq.s32.totalorder %s32, 0
    %p132 = por %p130, %p131
    %p133 = scmp.ne.s32.totalorder %s125, %s127
    %p134 = scmp.eq.s32.totalorder %s37, 3
    %p135 = por %p133, %p134
    %p136 = scmp.ne.s32.totalorder %s127, %s128
    %p137 = scmp.eq.s32.totalorder %s37, 0
    %p138 = por %p136, %p137
    %p139 = scmp.ne.s32.totalorder %s127, %s128
    %p140 = scmp.eq.s32.totalorder %s38, 3
    %p141 = por %p139, %p140
    %p143 = scmp.ne.s32.totalorder %s128, %s142
    %p144 = scmp.eq.s32.totalorder %s38, 0
    %p145 = por %p143, %p144
    %s147 = sadd.s32 %s146, 1
    %p150 = scmp.eq.s32.totalorder %s32, 3
    %p151 = scmp.ne.s32.totalorder %s146, %s148
    %p152 = scmp.eq.s32.totalorder %s32, 0
    %p153 = por %p151, %p152
    %p154 = scmp.ne.s32.totalorder %s146, %s148
    %p155 = scmp.eq.s32.totalorder %s37, 3
    %p156 = por %p154, %p155
    %p157 = scmp.ne.s32.totalorder %s148, %s149
    %p158 = scmp.eq.s32.totalorder %s37, 0
    %p159 = por %p157, %p158
    %p160 = scmp.ne.s32.totalorder %s148, %s149
    %p161 = scmp.eq.s32.totalorder %s38, 3
    %p162 = por %p160, %p161
    %p164 = scmp.ne.s32.totalorder %s149, %s163
    %p165 = scmp.eq.s32.totalorder %s38, 0
    %p166 = por %p164, %p165
    %s167 = ssub.s32 %s39, %s51
    %p168 = scmp.eq.s32.totalorder %s167, 0
    %s170 = sadd.s32 %s169, 1
    %s171 = scalar_select %p168, %s169, %s170
    %p174 = pneg %p168
    %p175 = scmp.eq.s32.totalorder %s32, 3
    %p176 = por %p174, %p175
    %p177 = scmp.ne.s32.totalorder %s169, %s172
    %p178 = scmp.eq.s32.totalorder %s32, 0
    %p179 = por %p177, %p178
    %p180 = scmp.ne.s32.totalorder %s169, %s172
    %p181 = scmp.eq.s32.totalorder %s37, 3
    %p182 = por %p180, %p181
    %p183 = scmp.ne.s32.totalorder %s172, %s173
    %p184 = scmp.eq.s32.totalorder %s37, 0
    %p185 = por %p183, %p184
    %p186 = scmp.ne.s32.totalorder %s172, %s173
    %p187 = scmp.eq.s32.totalorder %s38, 3
    %p188 = por %p186, %p187
    %p190 = scmp.ne.s32.totalorder %s173, %s189
    %p191 = scmp.eq.s32.totalorder %s38, 0
    %p192 = por %p190, %p191
    %s193 = ssub.s32 %s40, %s47
    %p194 = scmp.eq.s32.totalorder %s193, 0
    %s196 = sadd.s32 %s195, 1
    %s197 = scalar_select %p194, %s195, %s196
    %p200 = pneg %p194
    %p201 = scmp.eq.s32.totalorder %s32, 3
    %p202 = por %p200, %p201
    %p203 = scmp.ne.s32.totalorder %s195, %s198
    %p204 = scmp.eq.s32.totalorder %s32, 0
    %p205 = por %p203, %p204
    %p206 = scmp.ne.s32.totalorder %s195, %s198
    %p207 = scmp.eq.s32.totalorder %s37, 3
    %p208 = por %p206, %p207
    %p209 = scmp.ne.s32.totalorder %s198, %s199
    %p210 = scmp.eq.s32.totalorder %s37, 0
    %p211 = por %p209, %p210
    %p212 = scmp.ne.s32.totalorder %s198, %s199
    %p213 = scmp.eq.s32.totalorder %s38, 3
    %p214 = por %p212, %p213
    %p216 = scmp.ne.s32.totalorder %s199, %s215
    %p217 = scmp.eq.s32.totalorder %s38, 0
    %p218 = por %p216, %p217
    %s219 = ssub.s32 %s40, %s47
    %p220 = scmp.eq.s32.totalorder %s219, 0
    %s222 = sadd.s32 %s221, 1
    %s223 = scalar_select %p220, %s221, %s222
    %p226 = pneg %p220
    %p227 = scmp.eq.s32.totalorder %s32, 3
    %p228 = por %p226, %p227
    %p229 = scmp.ne.s32.totalorder %s221, %s224
    %p230 = scmp.eq.s32.totalorder %s32, 0
    %p231 = por %p229, %p230
    %p232 = scmp.ne.s32.totalorder %s221, %s224
    %p233 = scmp.eq.s32.totalorder %s37, 3
    %p234 = por %p232, %p233
    %p235 = scmp.ne.s32.totalorder %s224, %s225
    %p236 = scmp.eq.s32.totalorder %s37, 0
    %p237 = por %p235, %p236
    %p238 = scmp.ne.s32.totalorder %s224, %s225
    %p239 = scmp.eq.s32.totalorder %s38, 3
    %p240 = por %p238, %p239
    %p242 = scmp.ne.s32.totalorder %s225, %s241
    %p243 = scmp.eq.s32.totalorder %s38, 0
    %p244 = por %p242, %p243
    %s245 = ssub.s32 %s40, %s47
    %p246 = scmp.eq.s32.totalorder %s245, 0
    %s248 = sadd.s32 %s247, 1
    %s249 = scalar_select %p246, %s247, %s248
    %p252 = pneg %p246
    %p253 = scmp.eq.s32.totalorder %s32, 3
    %p254 = por %p252, %p253
    %p255 = scmp.ne.s32.totalorder %s247, %s250
    %p256 = scmp.eq.s32.totalorder %s32, 0
    %p257 = por %p255, %p256
    %p258 = scmp.ne.s32.totalorder %s247, %s250
    %p259 = scmp.eq.s32.totalorder %s37, 3
    %p260 = por %p258, %p259
    %p261 = scmp.ne.s32.totalorder %s250, %s251
    %p262 = scmp.eq.s32.totalorder %s37, 0
    %p263 = por %p261, %p262
    %p264 = scmp.ne.s32.totalorder %s250, %s251
    %p265 = scmp.eq.s32.totalorder %s38, 3
    %p266 = por %p264, %p265
    %p268 = scmp.ne.s32.totalorder %s251, %s267
    %p269 = scmp.eq.s32.totalorder %s38, 0
    %p270 = por %p268, %p269
    %s271 = ssub.s32 %s40, %s47
    %p272 = scmp.eq.s32.totalorder %s271, 0
    %s274 = sadd.s32 %s273, 1
    %s275 = scalar_select %p272, %s273, %s274
    %p278 = pneg %p272
    %p279 = scmp.eq.s32.totalorder %s32, 3
    %p280 = por %p278, %p279
    %p281 = scmp.ne.s32.totalorder %s273, %s276
    %p282 = scmp.eq.s32.totalorder %s32, 0
    %p283 = por %p281, %p282
    %p284 = scmp.ne.s32.totalorder %s273, %s276
    %p285 = scmp.eq.s32.totalorder %s37, 3
    %p286 = por %p284, %p285
    %p287 = scmp.ne.s32.totalorder %s276, %s277
    %p288 = scmp.eq.s32.totalorder %s37, 0
    %p289 = por %p287, %p288
    %p290 = scmp.ne.s32.totalorder %s276, %s277
    %p291 = scmp.eq.s32.totalorder %s38, 3
    %p292 = por %p290, %p291
    %p294 = scmp.ne.s32.totalorder %s277, %s293
    %p295 = scmp.eq.s32.totalorder %s38, 0
    %p296 = por %p294, %p295
    %s297 = ssub.s32 %s40, %s47
    %p298 = scmp.eq.s32.totalorder %s297, 0
    %s300 = sadd.s32 %s299, 1
    %s301 = scalar_select %p298, %s299, %s300
    %p304 = pneg %p298
    %p305 = scmp.eq.s32.totalorder %s32, 3
    %p306 = por %p304, %p305
    %p307 = scmp.ne.s32.totalorder %s299, %s302
    %p308 = scmp.eq.s32.totalorder %s32, 0
    %p309 = por %p307, %p308
    %p310 = scmp.ne.s32.totalorder %s299, %s302
    %p311 = scmp.eq.s32.totalorder %s37, 3
    %p312 = por %p310, %p311
    %p313 = scmp.ne.s32.totalorder %s302, %s303
    %p314 = scmp.eq.s32.totalorder %s37, 0
    %p315 = por %p313, %p314
    %p316 = scmp.ne.s32.totalorder %s302, %s303
    %p317 = scmp.eq.s32.totalorder %s38, 3
    %p318 = por %p316, %p317
    %p320 = scmp.ne.s32.totalorder %s303, %s319
    %p321 = scmp.eq.s32.totalorder %s38, 0
    %p322 = por %p320, %p321
    %s323 = ssub.s32 %s40, %s47
    %p324 = scmp.eq.s32.totalorder %s323, 0
    %s326 = sadd.s32 %s325, 1
    %s327 = scalar_select %p324, %s325, %s326
    %p330 = pneg %p324
    %p331 = scmp.eq.s32.totalorder %s32, 3
    %p332 = por %p330, %p331
    %p333 = scmp.ne.s32.totalorder %s325, %s328
    %p334 = scmp.eq.s32.totalorder %s32, 0
    %p335 = por %p333, %p334
    %p336 = scmp.ne.s32.totalorder %s325, %s328
    %p337 = scmp.eq.s32.totalorder %s37, 3
    %p338 = por %p336, %p337
    %p339 = scmp.ne.s32.totalorder %s328, %s329
    %p340 = scmp.eq.s32.totalorder %s37, 0
    %p341 = por %p339, %p340
    %p342 = scmp.ne.s32.totalorder %s328, %s329
    %p343 = scmp.eq.s32.totalorder %s38, 3
    %p344 = por %p342, %p343
    %p346 = scmp.ne.s32.totalorder %s329, %s345
    %p347 = scmp.eq.s32.totalorder %s38, 0
    %p348 = por %p346, %p347
    %s349 = ssub.s32 %s40, %s47
    %p350 = scmp.eq.s32.totalorder %s349, 0
    %s352 = sadd.s32 %s351, 1
    %s353 = scalar_select %p350, %s351, %s352
    %p356 = pneg %p350
    %p357 = scmp.eq.s32.totalorder %s32, 3
    %p358 = por %p356, %p357
    %p359 = scmp.ne.s32.totalorder %s351, %s354
    %p360 = scmp.eq.s32.totalorder %s32, 0
    %p361 = por %p359, %p360
    %p362 = scmp.ne.s32.totalorder %s351, %s354
    %p363 = scmp.eq.s32.totalorder %s37, 3
    %p364 = por %p362, %p363
    %p365 = scmp.ne.s32.totalorder %s354, %s355
    %p366 = scmp.eq.s32.totalorder %s37, 0
    %p367 = por %p365, %p366
    %p368 = scmp.ne.s32.totalorder %s354, %s355
    %p369 = scmp.eq.s32.totalorder %s38, 3
    %p370 = por %p368, %p369
    %p372 = scmp.ne.s32.totalorder %s355, %s371
    %p373 = scmp.eq.s32.totalorder %s38, 0
    %p374 = por %p372, %p373
    %s375 = ssub.s32 %s40, %s47
    %p376 = scmp.eq.s32.totalorder %s375, 0
    %s378 = sadd.s32 %s377, 1
    %s379 = scalar_select %p376, %s377, %s378
    %p382 = pneg %p376
    %p383 = scmp.eq.s32.totalorder %s32, 3
    %p384 = por %p382, %p383
    %p385 = scmp.ne.s32.totalorder %s377, %s380
    %p386 = scmp.eq.s32.totalorder %s32, 0
    %p387 = por %p385, %p386
    %p388 = scmp.ne.s32.totalorder %s377, %s380
    %p389 = scmp.eq.s32.totalorder %s37, 3
    %p390 = por %p388, %p389
    %p391 = scmp.ne.s32.totalorder %s380, %s381
    %p392 = scmp.eq.s32.totalorder %s37, 0
    %p393 = por %p391, %p392
    %p394 = scmp.ne.s32.totalorder %s380, %s381
    %p395 = scmp.eq.s32.totalorder %s38, 3
    %p396 = por %p394, %p395
    %p398 = scmp.ne.s32.totalorder %s381, %s397
    %p399 = scmp.eq.s32.totalorder %s38, 0
    %p400 = por %p398, %p399
    %s401 = ssub.s32 %s40, %s47
    %p402 = scmp.eq.s32.totalorder %s401, 0
    %s404 = sadd.s32 %s403, 1
    %s405 = scalar_select %p402, %s403, %s404
    %p408 = pneg %p402
    %p409 = scmp.eq.s32.totalorder %s32, 3
    %p410 = por %p408, %p409
    %p411 = scmp.ne.s32.totalorder %s403, %s406
    %p412 = scmp.eq.s32.totalorder %s32, 0
    %p413 = por %p411, %p412
    %p414 = scmp.ne.s32.totalorder %s403, %s406
    %p415 = scmp.eq.s32.totalorder %s37, 3
    %p416 = por %p414, %p415
    %p417 = scmp.ne.s32.totalorder %s406, %s407
    %p418 = scmp.eq.s32.totalorder %s37, 0
    %p419 = por %p417, %p418
    %p420 = scmp.ne.s32.totalorder %s406, %s407
    %p421 = scmp.eq.s32.totalorder %s38, 3
    %p422 = por %p420, %p421
    %p424 = scmp.ne.s32.totalorder %s407, %s423
    %p425 = scmp.eq.s32.totalorder %s38, 0
    %p426 = por %p424, %p425
    %s427 = ssub.s32 %s40, %s47
    %p428 = scmp.eq.s32.totalorder %s427, 0
    %s430 = sadd.s32 %s429, 1
    %s431 = scalar_select %p428, %s429, %s430
    %p434 = pneg %p428
    %p435 = scmp.eq.s32.totalorder %s32, 3
    %p436 = por %p434, %p435
    %p437 = scmp.ne.s32.totalorder %s429, %s432
    %p438 = scmp.eq.s32.totalorder %s32, 0
    %p439 = por %p437, %p438
    %p440 = scmp.ne.s32.totalorder %s429, %s432
    %p441 = scmp.eq.s32.totalorder %s37, 3
    %p442 = por %p440, %p441
    %p443 = scmp.ne.s32.totalorder %s432, %s433
    %p444 = scmp.eq.s32.totalorder %s37, 0
    %p445 = por %p443, %p444
    %p446 = scmp.ne.s32.totalorder %s432, %s433
    %p447 = scmp.eq.s32.totalorder %s38, 3
    %p448 = por %p446, %p447
    %p450 = scmp.ne.s32.totalorder %s433, %s449
    %p451 = scmp.eq.s32.totalorder %s38, 0
    %p452 = por %p450, %p451
    %s453 = ssub.s32 %s40, %s47
    %p454 = scmp.eq.s32.totalorder %s453, 0
    %s456 = sadd.s32 %s455, 1
    %s457 = scalar_select %p454, %s455, %s456
    %p460 = pneg %p454
    %p461 = scmp.eq.s32.totalorder %s32, 3
    %p462 = por %p460, %p461
    %p463 = scmp.ne.s32.totalorder %s455, %s458
    %p464 = scmp.eq.s32.totalorder %s32, 0
    %p465 = por %p463, %p464
    %p466 = scmp.ne.s32.totalorder %s455, %s458
    %p467 = scmp.eq.s32.totalorder %s37, 3
    %p468 = por %p466, %p467
    %p469 = scmp.ne.s32.totalorder %s458, %s459
    %p470 = scmp.eq.s32.totalorder %s37, 0
    %p471 = por %p469, %p470
    %p472 = scmp.ne.s32.totalorder %s458, %s459
    %p473 = scmp.eq.s32.totalorder %s38, 3
    %p474 = por %p472, %p473
    %p476 = scmp.ne.s32.totalorder %s459, %s475
    %p477 = scmp.eq.s32.totalorder %s38, 0
    %p478 = por %p476, %p477
    %s479 = ssub.s32 %s40, %s47
    %p480 = scmp.eq.s32.totalorder %s479, 0
    %s482 = sadd.s32 %s481, 1
    %s483 = scalar_select %p480, %s481, %s482
    %p486 = pneg %p480
    %p487 = scmp.eq.s32.totalorder %s32, 3
    %p488 = por %p486, %p487
    %p489 = scmp.ne.s32.totalorder %s481, %s484
    %p490 = scmp.eq.s32.totalorder %s32, 0
    %p491 = por %p489, %p490
    %p492 = scmp.ne.s32.totalorder %s481, %s484
    %p493 = scmp.eq.s32.totalorder %s37, 3
    %p494 = por %p492, %p493
    %p495 = scmp.ne.s32.totalorder %s484, %s485
    %p496 = scmp.eq.s32.totalorder %s37, 0
    %p497 = por %p495, %p496
    %p498 = scmp.ne.s32.totalorder %s484, %s485
    %p499 = scmp.eq.s32.totalorder %s38, 3
    %p500 = por %p498, %p499
    %p502 = scmp.ne.s32.totalorder %s485, %s501
    %p503 = scmp.eq.s32.totalorder %s38, 0
    %p504 = por %p502, %p503
    %s505 = ssub.s32 %s40, %s47
    %p506 = scmp.eq.s32.totalorder %s505, 0
    %s508 = sadd.s32 %s507, 1
    %s509 = scalar_select %p506, %s507, %s508
    %p512 = pneg %p506
    %p513 = scmp.eq.s32.totalorder %s32, 3
    %p514 = por %p512, %p513
    %p515 = scmp.ne.s32.totalorder %s507, %s510
    %p516 = scmp.eq.s32.totalorder %s32, 0
    %p517 = por %p515, %p516
    %p518 = scmp.ne.s32.totalorder %s507, %s510
    %p519 = scmp.eq.s32.totalorder %s37, 3
    %p520 = por %p518, %p519
    %p521 = scmp.ne.s32.totalorder %s510, %s511
    %p522 = scmp.eq.s32.totalorder %s37, 0
    %p523 = por %p521, %p522
    %p524 = scmp.ne.s32.totalorder %s510, %s511
    %p525 = scmp.eq.s32.totalorder %s38, 3
    %p526 = por %p524, %p525
    %p528 = scmp.ne.s32.totalorder %s511, %s527
    %p529 = scmp.eq.s32.totalorder %s38, 0
    %p530 = por %p528, %p529
    %s531 = ssub.s32 %s40, %s47
    %p532 = scmp.eq.s32.totalorder %s531, 0
    %s534 = sadd.s32 %s533, 1
    %s535 = scalar_select %p532, %s533, %s534
    %p538 = pneg %p532
    %p539 = scmp.eq.s32.totalorder %s32, 3
    %p540 = por %p538, %p539
    %p541 = scmp.ne.s32.totalorder %s533, %s536
    %p542 = scmp.eq.s32.totalorder %s32, 0
    %p543 = por %p541, %p542
    %p544 = scmp.ne.s32.totalorder %s533, %s536
    %p545 = scmp.eq.s32.totalorder %s37, 3
    %p546 = por %p544, %p545
    %p547 = scmp.ne.s32.totalorder %s536, %s537
    %p548 = scmp.eq.s32.totalorder %s37, 0
    %p549 = por %p547, %p548
    %p550 = scmp.ne.s32.totalorder %s536, %s537
    %p551 = scmp.eq.s32.totalorder %s38, 3
    %p552 = por %p550, %p551
    %p554 = scmp.ne.s32.totalorder %s537, %s553
    %p555 = scmp.eq.s32.totalorder %s38, 0
    %p556 = por %p554, %p555
    %s557 = ssub.s32 %s40, %s47
    %p558 = scmp.eq.s32.totalorder %s557, 0
    %s560 = sadd.s32 %s559, 1
    %s561 = scalar_select %p558, %s559, %s560
    %p564 = pneg %p558
    %p565 = scmp.eq.s32.totalorder %s32, 3
    %p566 = por %p564, %p565
    %p567 = scmp.ne.s32.totalorder %s559, %s562
    %p568 = scmp.eq.s32.totalorder %s32, 0
    %p569 = por %p567, %p568
    %p570 = scmp.ne.s32.totalorder %s559, %s562
    %p571 = scmp.eq.s32.totalorder %s37, 3
    %p572 = por %p570, %p571
    %p573 = scmp.ne.s32.totalorder %s562, %s563
    %p574 = scmp.eq.s32.totalorder %s37, 0
    %p575 = por %p573, %p574
    %p576 = scmp.ne.s32.totalorder %s562, %s563
    %p577 = scmp.eq.s32.totalorder %s38, 3
    %p578 = por %p576, %p577
    %p580 = scmp.ne.s32.totalorder %s563, %s579
    %p581 = scmp.eq.s32.totalorder %s38, 0
    %p582 = por %p580, %p581
    %s583 = ssub.s32 %s40, %s47
    %p584 = scmp.eq.s32.totalorder %s583, 0
    %s586 = sadd.s32 %s585, 1
    %s587 = scalar_select %p584, %s585, %s586
    %p590 = pneg %p584
    %p591 = scmp.eq.s32.totalorder %s32, 3
    %p592 = por %p590, %p591
    %p593 = scmp.ne.s32.totalorder %s585, %s588
    %p594 = scmp.eq.s32.totalorder %s32, 0
    %p595 = por %p593, %p594
    %p596 = scmp.ne.s32.totalorder %s585, %s588
    %p597 = scmp.eq.s32.totalorder %s37, 3
    %p598 = por %p596, %p597
    %p599 = scmp.ne.s32.totalorder %s588, %s589
    %p600 = scmp.eq.s32.totalorder %s37, 0
    %p601 = por %p599, %p600
    %p602 = scmp.ne.s32.totalorder %s588, %s589
    %p603 = scmp.eq.s32.totalorder %s38, 3
    %p604 = por %p602, %p603
    %p606 = scmp.ne.s32.totalorder %s589, %s605
    %p607 = scmp.eq.s32.totalorder %s38, 0
    %p608 = por %p606, %p607
    %s609 = ssub.s32 %s40, %s47
    %p610 = scmp.eq.s32.totalorder %s609, 0
    %s612 = sadd.s32 %s611, 1
    %s613 = scalar_select %p610, %s611, %s612
    %p616 = pneg %p610
    %p617 = scmp.eq.s32.totalorder %s32, 3
    %p618 = por %p616, %p617
    %p619 = scmp.ne.s32.totalorder %s611, %s614
    %p620 = scmp.eq.s32.totalorder %s32, 0
    %p621 = por %p619, %p620
    %p622 = scmp.ne.s32.totalorder %s611, %s614
    %p623 = scmp.eq.s32.totalorder %s37, 3
    %p624 = por %p622, %p623
    %p625 = scmp.ne.s32.totalorder %s614, %s615
    %p626 = scmp.eq.s32.totalorder %s37, 0
    %p627 = por %p625, %p626
    %p628 = scmp.ne.s32.totalorder %s614, %s615
    %p629 = scmp.eq.s32.totalorder %s38, 3
    %p630 = por %p628, %p629
    %p632 = scmp.ne.s32.totalorder %s615, %s631
    %p633 = scmp.eq.s32.totalorder %s38, 0
    %p634 = por %p632, %p633
    %s635 = ssub.s32 %s40, %s47
    %p636 = scmp.eq.s32.totalorder %s635, 0
    %s638 = sadd.s32 %s637, 1
    %s639 = scalar_select %p636, %s637, %s638
    %p642 = pneg %p636
    %p643 = scmp.eq.s32.totalorder %s32, 3
    %p644 = por %p642, %p643
    %p645 = scmp.ne.s32.totalorder %s637, %s640
    %p646 = scmp.eq.s32.totalorder %s32, 0
    %p647 = por %p645, %p646
    %p648 = scmp.ne.s32.totalorder %s637, %s640
    %p649 = scmp.eq.s32.totalorder %s37, 3
    %p650 = por %p648, %p649
    %p651 = scmp.ne.s32.totalorder %s640, %s641
    %p652 = scmp.eq.s32.totalorder %s37, 0
    %p653 = por %p651, %p652
    %p654 = scmp.ne.s32.totalorder %s640, %s641
    %p655 = scmp.eq.s32.totalorder %s38, 3
    %p656 = por %p654, %p655
    %p658 = scmp.ne.s32.totalorder %s641, %s657
    %p659 = scmp.eq.s32.totalorder %s38, 0
    %p660 = por %p658, %p659
    %s661 = ssub.s32 %s40, %s47
    %p662 = scmp.eq.s32.totalorder %s661, 0
    %s664 = sadd.s32 %s663, 1
    %s665 = scalar_select %p662, %s663, %s664
    %p668 = pneg %p662
    %p669 = scmp.eq.s32.totalorder %s32, 3
    %p670 = por %p668, %p669
    %p671 = scmp.ne.s32.totalorder %s663, %s666
    %p672 = scmp.eq.s32.totalorder %s32, 0
    %p673 = por %p671, %p672
    %p674 = scmp.ne.s32.totalorder %s663, %s666
    %p675 = scmp.eq.s32.totalorder %s37, 3
    %p676 = por %p674, %p675
    %p677 = scmp.ne.s32.totalorder %s666, %s667
    %p678 = scmp.eq.s32.totalorder %s37, 0
    %p679 = por %p677, %p678
    %p680 = scmp.ne.s32.totalorder %s666, %s667
    %p681 = scmp.eq.s32.totalorder %s38, 3
    %p682 = por %p680, %p681
    %p684 = scmp.ne.s32.totalorder %s667, %s683
    %p685 = scmp.eq.s32.totalorder %s38, 0
    %p686 = por %p684, %p685
    %s687 = ssub.s32 %s40, %s47
    %p688 = scmp.eq.s32.totalorder %s687, 0
    %s690 = sadd.s32 %s689, 1
    %s691 = scalar_select %p688, %s689, %s690
    %p694 = pneg %p688
    %p695 = scmp.eq.s32.totalorder %s32, 3
    %p696 = por %p694, %p695
    %p697 = scmp.ne.s32.totalorder %s689, %s692
    %p698 = scmp.eq.s32.totalorder %s32, 0
    %p699 = por %p697, %p698
    %p700 = scmp.ne.s32.totalorder %s689, %s692
    %p701 = scmp.eq.s32.totalorder %s37, 3
    %p702 = por %p700, %p701
    %p703 = scmp.ne.s32.totalorder %s692, %s693
    %p704 = scmp.eq.s32.totalorder %s37, 0
    %p705 = por %p703, %p704
    %p706 = scmp.ne.s32.totalorder %s692, %s693
    %p707 = scmp.eq.s32.totalorder %s38, 3
    %p708 = por %p706, %p707
    %p710 = scmp.ne.s32.totalorder %s693, %s709
    %p711 = scmp.eq.s32.totalorder %s38, 0
    %p712 = por %p710, %p711
    %s713 = ssub.s32 %s39, %s51
    %p714 = scmp.eq.s32.totalorder %s713, 0
    %s716 = sadd.s32 %s715, 1
    %s717 = scalar_select %p714, %s715, %s716
    %p720 = pneg %p714
    %p721 = scmp.eq.s32.totalorder %s32, 3
    %p722 = por %p720, %p721
    %p723 = scmp.ne.s32.totalorder %s715, %s718
    %p724 = scmp.eq.s32.totalorder %s32, 0
    %p725 = por %p723, %p724
    %p726 = scmp.ne.s32.totalorder %s715, %s718
    %p727 = scmp.eq.s32.totalorder %s37, 3
    %p728 = por %p726, %p727
    %p729 = scmp.ne.s32.totalorder %s718, %s719
    %p730 = scmp.eq.s32.totalorder %s37, 0
    %p731 = por %p729, %p730
    %p732 = scmp.ne.s32.totalorder %s718, %s719
    %p733 = scmp.eq.s32.totalorder %s38, 3
    %p734 = por %p732, %p733
    %p736 = scmp.ne.s32.totalorder %s719, %s735
    %p737 = scmp.eq.s32.totalorder %s38, 0
    %p738 = por %p736, %p737
    %p739 = scmp.le.s32.totalorder 1, %s32
    %p740 = scmp.lt.s32.totalorder %s32, 5
    %p741 = pnand %p739, %p740
    %p742 = pneg %p741
    // Predicated region
    $region9: #{decoder_forward.2} parent=5 // pred_check
      _
    $region10: #{decoder_forward.2} parent=5 // pred_check_branch
      %744 = sbr.rel (%p741) target = $region12
    $region11: #{decoder_forward.2} parent=5 // pred_region
      %s745 = ssub.s32 %s32, 1
      // Predicated region
      $region13: #{decoder_forward.2} parent=11 // pred_check
        %p746 = pneg %p117
      $region14: #{decoder_forward.2} parent=11 // pred_check_branch
        %748 = sbr.rel (%p746) target = $region16
      $region15: #{decoder_forward.2} parent=11 // pred_region
        _
      $region16: #{decoder_forward.2} parent=11 // pred_fallthru
        _
      // Predicated region
      $region17: #{decoder_forward.2} parent=11 // pred_check
        %p749 = pneg %p138
      $region18: #{decoder_forward.2} parent=11 // pred_check_branch
        %751 = sbr.rel (%p749) target = $region20
      $region19: #{decoder_forward.2} parent=11 // pred_region
        _
      $region20: #{decoder_forward.2} parent=11 // pred_fallthru
        _
      // Predicated region
      $region21: #{decoder_forward.2} parent=11 // pred_check
        %p752 = pneg %p159
      $region22: #{decoder_forward.2} parent=11 // pred_check_branch
        %754 = sbr.rel (%p752) target = $region24
      $region23: #{decoder_forward.2} parent=11 // pred_region
        _
      $region24: #{decoder_forward.2} parent=11 // pred_fallthru
        _
    $region12: #{decoder_forward.2} parent=5 // pred_fallthru
      _
    %p755 = scmp.lt.s32.totalorder %s32, 4
    // Predicated region
    $region25: #{decoder_forward.2} parent=5 // pred_check
      %p756 = pneg %p755
    $region26: #{decoder_forward.2} parent=5 // pred_check_branch
      %758 = sbr.rel (%p756) target = $region28
    $region27: #{decoder_forward.2} parent=5 // pred_region
      // Predicated region
      $region29: #{decoder_forward.2} parent=27 // pred_check
        %p759 = pneg %p64
      $region30: #{decoder_forward.2} parent=27 // pred_check_branch
        %761 = sbr.rel (%p759) target = $region32
      $region31: #{decoder_forward.2} parent=27 // pred_region
        %p762 = scmp.lt.s32.totalorder %s39, 1
        %s763 = scalar_select %p762, %s39, 1
        %s764 = scalar_lea.vmem %s0, %s763
      $region32: #{decoder_forward.2} parent=27 // pred_fallthru
        _
      // Predicated region
      $region33: #{decoder_forward.2} parent=27 // pred_check
        %p765 = pneg %p90
      $region34: #{decoder_forward.2} parent=27 // pred_check_branch
        %767 = sbr.rel (%p765) target = $region36
      $region35: #{decoder_forward.2} parent=27 // pred_region
        %p768 = scmp.lt.s32.totalorder %s39, 1
        %s769 = scalar_select %p768, %s39, 1
        %s770 = smul.addr %s769, 8
        %s771 = scalar_lea.vmem %s1, %s770
      $region36: #{decoder_forward.2} parent=27 // pred_fallthru
        _
      // Predicated region
      $region37: #{decoder_forward.2} parent=27 // pred_check
        %p772 = pneg %p179
      $region38: #{decoder_forward.2} parent=27 // pred_check_branch
        %774 = sbr.rel (%p772) target = $region40
      $region39: #{decoder_forward.2} parent=27 // pred_region
        %p775 = scmp.lt.s32.totalorder %s39, 1
        %s776 = scalar_select %p775, %s39, 1
        %s777 = smul.addr %s776, 2
        %s778 = smul.addr %s777, 8
        %s779 = scalar_lea.vmem %s5, %s778
      $region40: #{decoder_forward.2} parent=27 // pred_fallthru
        _
      // Predicated region
      $region41: #{decoder_forward.2} parent=27 // pred_check
        %p780 = pneg %p205
      $region42: #{decoder_forward.2} parent=27 // pred_check_branch
        %782 = sbr.rel (%p780) target = $region44
      $region43: #{decoder_forward.2} parent=27 // pred_region
        %p783 = scmp.lt.s32.totalorder %s40, 1
        %s784 = scalar_select %p783, %s40, 1
        %s785 = smul.addr %s784, 4
        %s786 = smul.addr %s785, 4
        %s787 = scalar_lea.vmem %s6, %s786
      $region44: #{decoder_forward.2} parent=27 // pred_fallthru
        _
      // Predicated region
      $region45: #{decoder_forward.2} parent=27 // pred_check
        %p788 = pneg %p231
      $region46: #{decoder_forward.2} parent=27 // pred_check_branch
        %790 = sbr.rel (%p788) target = $region48
      $region47: #{decoder_forward.2} parent=27 // pred_region
        %p791 = scmp.lt.s32.totalorder %s40, 1
        %s792 = scalar_select %p791, %s40, 1
        %s793 = scalar_lea.vmem %s7, %s792
      $region48: #{decoder_forward.2} parent=27 // pred_fallthru
        _
      // Predicated region
      $region49: #{decoder_forward.2} parent=27 // pred_check
        %p794 = pneg %p257
      $region50: #{decoder_forward.2} parent=27 // pred_check_branch
        %796 = sbr.rel (%p794) target = $region52
      $region51: #{decoder_forward.2} parent=27 // pred_region
        %p797 = scmp.lt.s32.totalorder %s40, 1
        %s798 = scalar_select %p797, %s40, 1
        %s799 = smul.addr %s798, 4
        %s800 = smul.addr %s799, 4
        %s801 = scalar_lea.vmem %s8, %s800
      $region52: #{decoder_forward.2} parent=27 // pred_fallthru
        _
      // Predicated region
      $region53: #{decoder_forward.2} parent=27 // pred_check
        %p802 = pneg %p283
      $region54: #{decoder_forward.2} parent=27 // pred_check_branch
        %804 = sbr.rel (%p802) target = $region56
      $region55: #{decoder_forward.2} parent=27 // pred_region
        %p805 = scmp.lt.s32.totalorder %s40, 1
        %s806 = scalar_select %p805, %s40, 1
        %s807 = scalar_lea.vmem %s9, %s806
      $region56: #{decoder_forward.2} parent=27 // pred_fallthru
        _
      // Predicated region
      $region57: #{decoder_forward.2} parent=27 // pred_check
        %p808 = pneg %p309
      $region58: #{decoder_forward.2} parent=27 // pred_check_branch
        %810 = sbr.rel (%p808) target = $region60
      $region59: #{decoder_forward.2} parent=27 // pred_region
        %p811 = scmp.lt.s32.totalorder %s40, 1
        %s812 = scalar_select %p811, %s40, 1
        %s813 = scalar_lea.vmem %s10, %s812
      $region60: #{decoder_forward.2} parent=27 // pred_fallthru
        _
      // Predicated region
      $region61: #{decoder_forward.2} parent=27 // pred_check
        %p814 = pneg %p335
      $region62: #{decoder_forward.2} parent=27 // pred_check_branch
        %816 = sbr.rel (%p814) target = $region64
      $region63: #{decoder_forward.2} parent=27 // pred_region
        %p817 = scmp.lt.s32.totalorder %s40, 1
        %s818 = scalar_select %p817, %s40, 1
        %s819 = scalar_lea.vmem %s11, %s818
      $region64: #{decoder_forward.2} parent=27 // pred_fallthru
        _
      // Predicated region
      $region65: #{decoder_forward.2} parent=27 // pred_check
        %p820 = pneg %p361
      $region66: #{decoder_forward.2} parent=27 // pred_check_branch
        %822 = sbr.rel (%p820) target = $region68
      $region67: #{decoder_forward.2} parent=27 // pred_region
        %p823 = scmp.lt.s32.totalorder %s40, 1
        %s824 = scalar_select %p823, %s40, 1
        %s825 = smul.addr %s824, 4
        %s826 = smul.addr %s825, 4
        %s827 = scalar_lea.vmem %s12, %s826
      $region68: #{decoder_forward.2} parent=27 // pred_fallthru
        _
      // Predicated region
      $region69: #{decoder_forward.2} parent=27 // pred_check
        %p828 = pneg %p387
      $region70: #{decoder_forward.2} parent=27 // pred_check_branch
        %830 = sbr.rel (%p828) target = $region72
      $region71: #{decoder_forward.2} parent=27 // pred_region
        %p831 = scmp.lt.s32.totalorder %s40, 1
        %s832 = scalar_select %p831, %s40, 1
        %s833 = scalar_lea.vmem %s13, %s832
      $region72: #{decoder_forward.2} parent=27 // pred_fallthru
        _
      // Predicated region
      $region73: #{decoder_forward.2} parent=27 // pred_check
        %p834 = pneg %p413
      $region74: #{decoder_forward.2} parent=27 // pred_check_branch
        %836 = sbr.rel (%p834) target = $region76
      $region75: #{decoder_forward.2} parent=27 // pred_region
        %p837 = scmp.lt.s32.totalorder %s40, 1
        %s838 = scalar_select %p837, %s40, 1
        %s839 = smul.addr %s838, 4
        %s840 = smul.addr %s839, 4
        %s841 = scalar_lea.vmem %s14, %s840
      $region76: #{decoder_forward.2} parent=27 // pred_fallthru
        _
      // Predicated region
      $region77: #{decoder_forward.2} parent=27 // pred_check
        %p842 = pneg %p439
      $region78: #{decoder_forward.2} parent=27 // pred_check_branch
        %844 = sbr.rel (%p842) target = $region80
      $region79: #{decoder_forward.2} parent=27 // pred_region
        %p845 = scmp.lt.s32.totalorder %s40, 1
        %s846 = scalar_select %p845, %s40, 1
        %s847 = scalar_lea.vmem %s15, %s846
      $region80: #{decoder_forward.2} parent=27 // pred_fallthru
        _
      // Predicated region
      $region81: #{decoder_forward.2} parent=27 // pred_check
        %p848 = pneg %p465
      $region82: #{decoder_forward.2} parent=27 // pred_check_branch
        %850 = sbr.rel (%p848) target = $region84
      $region83: #{decoder_forward.2} parent=27 // pred_region
        %p851 = scmp.lt.s32.totalorder %s40, 1
        %s852 = scalar_select %p851, %s40, 1
        %s853 = smul.addr %s852, 4
        %s854 = smul.addr %s853, 4
        %s855 = scalar_lea.vmem %s16, %s854
      $region84: #{decoder_forward.2} parent=27 // pred_fallthru
        _
      // Predicated region
      $region85: #{decoder_forward.2} parent=27 // pred_check
        %p856 = pneg %p491
      $region86: #{decoder_forward.2} parent=27 // pred_check_branch
        %858 = sbr.rel (%p856) target = $region88
      $region87: #{decoder_forward.2} parent=27 // pred_region
        %p859 = scmp.lt.s32.totalorder %s40, 1
        %s860 = scalar_select %p859, %s40, 1
        %s861 = scalar_lea.vmem %s17, %s860
      $region88: #{decoder_forward.2} parent=27 // pred_fallthru
        _
      // Predicated region
      $region89: #{decoder_forward.2} parent=27 // pred_check
        %p862 = pneg %p517
      $region90: #{decoder_forward.2} parent=27 // pred_check_branch
        %864 = sbr.rel (%p862) target = $region92
      $region91: #{decoder_forward.2} parent=27 // pred_region
        %p865 = scmp.lt.s32.totalorder %s40, 1
        %s866 = scalar_select %p865, %s40, 1
        %s867 = scalar_lea.vmem %s18, %s866
      $region92: #{decoder_forward.2} parent=27 // pred_fallthru
        _
      // Predicated region
      $region93: #{decoder_forward.2} parent=27 // pred_check
        %p868 = pneg %p543
      $region94: #{decoder_forward.2} parent=27 // pred_check_branch
        %870 = sbr.rel (%p868) target = $region96
      $region95: #{decoder_forward.2} parent=27 // pred_region
        %p871 = scmp.lt.s32.totalorder %s40, 1
        %s872 = scalar_select %p871, %s40, 1
        %s873 = scalar_lea.vmem %s19, %s872
      $region96: #{decoder_forward.2} parent=27 // pred_fallthru
        _
      // Predicated region
      $region97: #{decoder_forward.2} parent=27 // pred_check
        %p874 = pneg %p569
      $region98: #{decoder_forward.2} parent=27 // pred_check_branch
        %876 = sbr.rel (%p874) target = $region100
      $region99: #{decoder_forward.2} parent=27 // pred_region
        %p877 = scmp.lt.s32.totalorder %s40, 1
        %s878 = scalar_select %p877, %s40, 1
        %s879 = smul.addr %s878, 4
        %s880 = smul.addr %s879, 4
        %s881 = scalar_lea.vmem %s20, %s880
      $region100: #{decoder_forward.2} parent=27 // pred_fallthru
        _
      // Predicated region
      $region101: #{decoder_forward.2} parent=27 // pred_check
        %p882 = pneg %p595
      $region102: #{decoder_forward.2} parent=27 // pred_check_branch
        %884 = sbr.rel (%p882) target = $region104
      $region103: #{decoder_forward.2} parent=27 // pred_region
        %p885 = scmp.lt.s32.totalorder %s40, 1
        %s886 = scalar_select %p885, %s40, 1
        %s887 = scalar_lea.vmem %s21, %s886
      $region104: #{decoder_forward.2} parent=27 // pred_fallthru
        _
      // Predicated region
      $region105: #{decoder_forward.2} parent=27 // pred_check
        %p888 = pneg %p621
      $region106: #{decoder_forward.2} parent=27 // pred_check_branch
        %890 = sbr.rel (%p888) target = $region108
      $region107: #{decoder_forward.2} parent=27 // pred_region
        %p891 = scmp.lt.s32.totalorder %s40, 1
        %s892 = scalar_select %p891, %s40, 1
        %s893 = smul.addr %s892, 8
        %s894 = smul.addr %s893, 4
        %s895 = scalar_lea.vmem %s22, %s894
      $region108: #{decoder_forward.2} parent=27 // pred_fallthru
        _
      // Predicated region
      $region109: #{decoder_forward.2} parent=27 // pred_check
        %p896 = pneg %p647
      $region110: #{decoder_forward.2} parent=27 // pred_check_branch
        %898 = sbr.rel (%p896) target = $region112
      $region111: #{decoder_forward.2} parent=27 // pred_region
        %p899 = scmp.lt.s32.totalorder %s40, 1
        %s900 = scalar_select %p899, %s40, 1
        %s901 = scalar_lea.vmem %s23, %s900
      $region112: #{decoder_forward.2} parent=27 // pred_fallthru
        _
      // Predicated region
      $region113: #{decoder_forward.2} parent=27 // pred_check
        %p902 = pneg %p673
      $region114: #{decoder_forward.2} parent=27 // pred_check_branch
        %904 = sbr.rel (%p902) target = $region116
      $region115: #{decoder_forward.2} parent=27 // pred_region
        %p905 = scmp.lt.s32.totalorder %s40, 1
        %s906 = scalar_select %p905, %s40, 1
        %s907 = scalar_lea.vmem %s24, %s906
      $region116: #{decoder_forward.2} parent=27 // pred_fallthru
        _
      // Predicated region
      $region117: #{decoder_forward.2} parent=27 // pred_check
        %p908 = pneg %p699
      $region118: #{decoder_forward.2} parent=27 // pred_check_branch
        %910 = sbr.rel (%p908) target = $region120
      $region119: #{decoder_forward.2} parent=27 // pred_region
        %p911 = scmp.lt.s32.totalorder %s40, 1
        %s912 = scalar_select %p911, %s40, 1
        %s913 = scalar_lea.vmem %s25, %s912
      $region120: #{decoder_forward.2} parent=27 // pred_fallthru
        _
    $region28: #{decoder_forward.2} parent=5 // pred_fallthru
      _
    %p914 = scmp.le.s32.totalorder 1, %s32
    %p915 = scmp.lt.s32.totalorder %s32, 5
    %p916 = pnand %p914, %p915
    %p917 = pneg %p916
    // Predicated region
    $region121: #{decoder_forward.2} parent=5 // pred_check
      _
    $region122: #{decoder_forward.2} parent=5 // pred_check_branch
      %919 = sbr.rel (%p916) target = $region124
    $region123: #{decoder_forward.2} parent=5 // pred_region
      %s920 = ssub.s32 %s32, 1
      %p921 = scmp.lt.s32.totalorder %s41, 1
      %s922 = scalar_select %p921, %s41, 1
      %s923 = scalar_lea.vmem %s0, %s922
      %p924 = pneg %p70
      %p925 = pneg %p67
      %p926 = scmp.lt.s32.totalorder %s41, 1
      %s927 = scalar_select %p926, %s41, 1
      %s928 = smul.addr %s927, 8
      %s929 = scalar_lea.vmem %s1, %s928
      %p930 = pneg %p96
      %p931 = pneg %p93
      %p932 = pneg %p117
      %p933 = pneg %p114
      %p934 = pneg %p138
      %p935 = pneg %p135
      %p936 = pneg %p159
      %p937 = pneg %p156
      %p938 = scmp.lt.s32.totalorder %s41, 1
      %s939 = scalar_select %p938, %s41, 1
      %s940 = smul.addr %s939, 2
      %s941 = smul.addr %s940, 8
      %s942 = scalar_lea.vmem %s5, %s941
      %p943 = pneg %p185
      %p944 = pneg %p182
      %p945 = scmp.lt.s32.totalorder %s42, 1
      %s946 = scalar_select %p945, %s42, 1
      %s947 = smul.addr %s946, 4
      %s948 = smul.addr %s947, 4
      %s949 = scalar_lea.vmem %s6, %s948
      %p950 = pneg %p211
      %p951 = pneg %p208
      %p952 = scmp.lt.s32.totalorder %s42, 1
      %s953 = scalar_select %p952, %s42, 1
      %s954 = scalar_lea.vmem %s7, %s953
      %p955 = pneg %p237
      %p956 = pneg %p234
      %p957 = scmp.lt.s32.totalorder %s42, 1
      %s958 = scalar_select %p957, %s42, 1
      %s959 = smul.addr %s958, 4
      %s960 = smul.addr %s959, 4
      %s961 = scalar_lea.vmem %s8, %s960
      %p962 = pneg %p263
      %p963 = pneg %p260
      %p964 = scmp.lt.s32.totalorder %s42, 1
      %s965 = scalar_select %p964, %s42, 1
      %s966 = scalar_lea.vmem %s9, %s965
      %p967 = pneg %p289
      %p968 = pneg %p286
      %p969 = scmp.lt.s32.totalorder %s42, 1
      %s970 = scalar_select %p969, %s42, 1
      %s971 = scalar_lea.vmem %s10, %s970
      %p972 = pneg %p315
      %p973 = pneg %p312
      %p974 = scmp.lt.s32.totalorder %s42, 1
      %s975 = scalar_select %p974, %s42, 1
      %s976 = scalar_lea.vmem %s11, %s975
      %p977 = pneg %p341
      %p978 = pneg %p338
      %p979 = scmp.lt.s32.totalorder %s42, 1
      %s980 = scalar_select %p979, %s42, 1
      %s981 = smul.addr %s980, 4
      %s982 = smul.addr %s981, 4
      %s983 = scalar_lea.vmem %s12, %s982
      %p984 = pneg %p367
      %p985 = pneg %p364
      %p986 = scmp.lt.s32.totalorder %s42, 1
      %s987 = scalar_select %p986, %s42, 1
      %s988 = scalar_lea.vmem %s13, %s987
      %p989 = pneg %p393
      %p990 = pneg %p390
      %p991 = scmp.lt.s32.totalorder %s42, 1
      %s992 = scalar_select %p991, %s42, 1
      %s993 = smul.addr %s992, 4
      %s994 = smul.addr %s993, 4
      %s995 = scalar_lea.vmem %s14, %s994
      %p996 = pneg %p419
      %p997 = pneg %p416
      %p998 = scmp.lt.s32.totalorder %s42, 1
      %s999 = scalar_select %p998, %s42, 1
      %s1000 = scalar_lea.vmem %s15, %s999
      %p1001 = pneg %p445
      %p1002 = pneg %p442
      %p1003 = scmp.lt.s32.totalorder %s42, 1
      %s1004 = scalar_select %p1003, %s42, 1
      %s1005 = smul.addr %s1004, 4
      %s1006 = smul.addr %s1005, 4
      %s1007 = scalar_lea.vmem %s16, %s1006
      %p1008 = pneg %p471
      %p1009 = pneg %p468
      %p1010 = scmp.lt.s32.totalorder %s42, 1
      %s1011 = scalar_select %p1010, %s42, 1
      %s1012 = scalar_lea.vmem %s17, %s1011
      %p1013 = pneg %p497
      %p1014 = pneg %p494
      %p1015 = scmp.lt.s32.totalorder %s42, 1
      %s1016 = scalar_select %p1015, %s42, 1
      %s1017 = scalar_lea.vmem %s18, %s1016
      %p1018 = pneg %p523
      %p1019 = pneg %p520
      %p1020 = scmp.lt.s32.totalorder %s42, 1
      %s1021 = scalar_select %p1020, %s42, 1
      %s1022 = scalar_lea.vmem %s19, %s1021
      %p1023 = pneg %p549
      %p1024 = pneg %p546
      %p1025 = scmp.lt.s32.totalorder %s42, 1
      %s1026 = scalar_select %p1025, %s42, 1
      %s1027 = smul.addr %s1026, 4
      %s1028 = smul.addr %s1027, 4
      %s1029 = scalar_lea.vmem %s20, %s1028
      %p1030 = pneg %p575
      %p1031 = pneg %p572
      %p1032 = scmp.lt.s32.totalorder %s42, 1
      %s1033 = scalar_select %p1032, %s42, 1
      %s1034 = scalar_lea.vmem %s21, %s1033
      %p1035 = pneg %p601
      %p1036 = pneg %p598
      %p1037 = scmp.lt.s32.totalorder %s42, 1
      %s1038 = scalar_select %p1037, %s42, 1
      %s1039 = smul.addr %s1038, 8
      %s1040 = smul.addr %s1039, 4
      %s1041 = scalar_lea.vmem %s22, %s1040
      %p1042 = pneg %p627
      %p1043 = pneg %p624
      %p1044 = scmp.lt.s32.totalorder %s42, 1
      %s1045 = scalar_select %p1044, %s42, 1
      %s1046 = scalar_lea.vmem %s23, %s1045
      %p1047 = pneg %p653
      %p1048 = pneg %p650
      %p1049 = scmp.lt.s32.totalorder %s42, 1
      %s1050 = scalar_select %p1049, %s42, 1
      %s1051 = scalar_lea.vmem %s24, %s1050
      %p1052 = pneg %p679
      %p1053 = pneg %p676
      %p1054 = scmp.lt.s32.totalorder %s42, 1
      %s1055 = scalar_select %p1054, %s42, 1
      %s1056 = scalar_lea.vmem %s25, %s1055
      %p1057 = pneg %p705
      %p1058 = pneg %p702
      %p1059 = pneg %p731
      %p1060 = pneg %p728
      %p1061 = scmp.lt.s32.totalorder %s41, 1
      %s1062 = scalar_select %p1061, %s41, 1
      %s1063 = smul.addr %s1062, 8
      %s1064 = scalar_lea.vmem %s26, %s1063
      %p1065 = scmp.lt.s32.totalorder %s41, 1
      %s1066 = scalar_select %p1065, %s41, 1
      %s1067 = scalar_lea.vmem %s0, %s1066
      %p1068 = scmp.lt.s32.totalorder %s41, 1
      %s1069 = scalar_select %p1068, %s41, 1
      %s1070 = smul.addr %s1069, 8
      %s1071 = scalar_lea.vmem %s1, %s1070
      %p1072 = scmp.lt.s32.totalorder %s41, 1
      %s1073 = scalar_select %p1072, %s41, 1
      %s1074 = smul.addr %s1073, 2
      %s1075 = smul.addr %s1074, 8
      %s1076 = scalar_lea.vmem %s5, %s1075
      %p1077 = scmp.lt.s32.totalorder %s42, 1
      %s1078 = scalar_select %p1077, %s42, 1
      %s1079 = smul.addr %s1078, 4
      %s1080 = smul.addr %s1079, 4
      %s1081 = scalar_lea.vmem %s6, %s1080
      %p1082 = scmp.lt.s32.totalorder %s42, 1
      %s1083 = scalar_select %p1082, %s42, 1
      %s1084 = scalar_lea.vmem %s7, %s1083
      %p1085 = scmp.lt.s32.totalorder %s42, 1
      %s1086 = scalar_select %p1085, %s42, 1
      %s1087 = smul.addr %s1086, 4
      %s1088 = smul.addr %s1087, 4
      %s1089 = scalar_lea.vmem %s8, %s1088
      %p1090 = scmp.lt.s32.totalorder %s42, 1
      %s1091 = scalar_select %p1090, %s42, 1
      %s1092 = scalar_lea.vmem %s9, %s1091
      %p1093 = scmp.lt.s32.totalorder %s42, 1
      %s1094 = scalar_select %p1093, %s42, 1
      %s1095 = scalar_lea.vmem %s10, %s1094
      %p1096 = scmp.lt.s32.totalorder %s42, 1
      %s1097 = scalar_select %p1096, %s42, 1
      %s1098 = scalar_lea.vmem %s11, %s1097
      %p1099 = scmp.lt.s32.totalorder %s42, 1
      %s1100 = scalar_select %p1099, %s42, 1
      %s1101 = smul.addr %s1100, 4
      %s1102 = smul.addr %s1101, 4
      %s1103 = scalar_lea.vmem %s12, %s1102
      %p1104 = scmp.lt.s32.totalorder %s42, 1
      %s1105 = scalar_select %p1104, %s42, 1
      %s1106 = scalar_lea.vmem %s13, %s1105
      %p1107 = scmp.lt.s32.totalorder %s42, 1
      %s1108 = scalar_select %p1107, %s42, 1
      %s1109 = smul.addr %s1108, 4
      %s1110 = smul.addr %s1109, 4
      %s1111 = scalar_lea.vmem %s14, %s1110
      %p1112 = scmp.lt.s32.totalorder %s42, 1
      %s1113 = scalar_select %p1112, %s42, 1
      %s1114 = scalar_lea.vmem %s15, %s1113
      %p1115 = scmp.lt.s32.totalorder %s42, 1
      %s1116 = scalar_select %p1115, %s42, 1
      %s1117 = smul.addr %s1116, 4
      %s1118 = smul.addr %s1117, 4
      %s1119 = scalar_lea.vmem %s16, %s1118
      %p1120 = scmp.lt.s32.totalorder %s42, 1
      %s1121 = scalar_select %p1120, %s42, 1
      %s1122 = scalar_lea.vmem %s17, %s1121
      %p1123 = scmp.lt.s32.totalorder %s42, 1
      %s1124 = scalar_select %p1123, %s42, 1
      %s1125 = scalar_lea.vmem %s18, %s1124
      %p1126 = scmp.lt.s32.totalorder %s42, 1
      %s1127 = scalar_select %p1126, %s42, 1
      %s1128 = scalar_lea.vmem %s19, %s1127
      %p1129 = scmp.lt.s32.totalorder %s42, 1
      %s1130 = scalar_select %p1129, %s42, 1
      %s1131 = smul.addr %s1130, 4
      %s1132 = smul.addr %s1131, 4
      %s1133 = scalar_lea.vmem %s20, %s1132
      %p1134 = scmp.lt.s32.totalorder %s42, 1
      %s1135 = scalar_select %p1134, %s42, 1
      %s1136 = scalar_lea.vmem %s21, %s1135
      %p1137 = scmp.lt.s32.totalorder %s42, 1
      %s1138 = scalar_select %p1137, %s42, 1
      %s1139 = smul.addr %s1138, 8
      %s1140 = smul.addr %s1139, 4
      %s1141 = scalar_lea.vmem %s22, %s1140
      %p1142 = scmp.lt.s32.totalorder %s42, 1
      %s1143 = scalar_select %p1142, %s42, 1
      %s1144 = scalar_lea.vmem %s23, %s1143
      %p1145 = scmp.lt.s32.totalorder %s42, 1
      %s1146 = scalar_select %p1145, %s42, 1
      %s1147 = scalar_lea.vmem %s24, %s1146
      %p1148 = scmp.lt.s32.totalorder %s42, 1
      %s1149 = scalar_select %p1148, %s42, 1
      %s1150 = scalar_lea.vmem %s25, %s1149
      %p1151 = scmp.lt.s32.totalorder %s41, 1
      %s1152 = scalar_select %p1151, %s41, 1
      %s1153 = smul.addr %s1152, 8
      %s1154 = scalar_lea.vmem %s26, %s1153
      %p1156 = scmp.eq.s32.totalorder %s42, 0
      // Predicated region
      $region125: #{decoder_forward.2} parent=123 // pred_check
        %p1157 = pneg %p1156
      $region126: #{decoder_forward.2} parent=123 // pred_check_branch
        %1159 = sbr.rel (%p1157) target = $region128
      $region127: #{decoder_forward.2} parent=123 // pred_region
        %v1160 = vlaneseq
        %v1161 = vshrl.u32 %v1160, 7
        %v1162 = vlaneseq
        %v1163 = vand.u32 %v1162, 127
        %vm1164 = vcmp.ge.s32.totalorder %v1161, %v1163
        %v1165 = vld [vmem:[%s1067] sm:$0x1]
        %vm1166 = vcmp.ne.s32.totalorder %v1165, 0
        %v1167 = vsel %vm1166, 1, 0
        %v1168 = vperm.slane %v1167, 0
        %vm1169 = vcmp.eq.s32.totalorder %v1168, 1
        %vm1170 = vmand %vm1164, %vm1169
        %v1171 = vsel %vm1170, 1, 0
        %v1172 = vcvt.s32.f32 %v1171
        %vm1173 = vcmask 64512
        %1174 = vst.msk [vmem:[#allocation2] sm:$0xff] %vm1173, %v1172
        %v1175 = vld [vmem:[%s1071] sm:$0xff]
        %v1176 = vmul.f32 %v1175, 5.656854
        %v1177 = vld [vmem:[%s2] sm:$0xff]
        %v1178 = vadd.f32 %v1176, %v1177
        %v1179 = vld [vmem:[%s3] sm:$0x1]
        %v1180 = vld [vmem:[%s4] sm:$0x1]
        %vm1181 = vcmask 261120
        %v1182 = vsel %vm1181, %v1178, 0.0
        %1183 = vadd.xlane.f32.xlu0 %v1182
        %v1184 = vpop.xlane.xlu0 %1183
        %v1185 = vrcp.pop 32.0
        %v1186 = vmul.f32 32.0, %v1185
        %v1187 = vsub.f32 1.0, %v1186
        %v1188 = vmul.f32 %v1185, %v1187
        %v1189 = vadd.f32 %v1185, %v1188
        %vm1190 = vweird.f32 %v1185
        %v1191 = vsel %vm1190, %v1185, %v1189
        %v1192 = vmul.f32 %v1184, %v1191
        %v1193 = vsub.f32 %v1178, %v1192
        %v1194 = vmul.f32 %v1193, %v1193
        %v1195 = vsel %vm1181, %v1194, 0.0
        %1196 = vadd.xlane.f32.xlu0 %v1195
        %v1197 = vpop.xlane.xlu0 %1196
        %v1198 = vmul.f32 %v1197, %v1191
        %v1199 = vadd.f32 %v1198, 1e-05
        %v1200 = vrsqrt.pop %v1199
        %v1201 = vmul.f32 %v1200, %v1199
        %v1202 = vmul.f32 %v1201, %v1200
        %v1203 = vmul.f32 0.5, %v1202
        %v1204 = vsub.f32 1.5, %v1203
        %v1205 = vmul.f32 %v1200, %v1204
        %vm1206 = vweird.f32 %v1199
        %vm1207 = vweird.f32 %v1200
        %vm1208 = vmor %vm1206, %vm1207
        %v1209 = vsel %vm1208, %v1200, %v1205
        %v1210 = vmul.f32 %v1193, %v1209
        %v1212 = vperm.slane %v1179, 0
        %v1214 = vmul.f32 %v1210, %v1212
        %v1216 = vperm.slane %v1180, 0
        %v1218 = vadd.f32 %v1214, %v1216
        %1219 = vst.msk [vmem:[%s1154] sm:$0xff] %vm1181, %v1218
      $region128: #{decoder_forward.2} parent=123 // pred_fallthru
        _
      %v1220 = vld [vmem:[%s1154] sm:$0xff]
      %v1221 = vld [vmem:[%s1076] sm:$0xff]
      %v1222 = vld [vmem:[%s1076 + $0x8] sm:$0xff]
      %v1223 = vld [vmem:[#allocation2] sm:$0xff]
      %vm1224 = vcmp.ne.f32.partialorder %v1223, 0.0
      %v1225 = vld [vmem:[%s1081] sm:$0xf]
      %v1226 = vld [vmem:[%s1081 + $0x4] sm:$0xf]
      %v1227 = vld [vmem:[%s1081 + $0x8] sm:$0xf]
      %v1228 = vld [vmem:[%s1081 + $0xc] sm:$0xf]
      %v1229 = vld [vmem:[%s1084] sm:$0x1]
      %v1230 = vpack.c.bf16 %v1220, %v1220
      %v1232 = vperm.slane %v1229, 0
      %v1238 = vunpack.c.l.b16 %v1225
      %v1239 = vunpack.c.l.b16 %v1226
      %v1240 = vunpack.c.l.b16 %v1227
      %v1241 = vunpack.c.l.b16 %v1228
      %v1242 = vpack.c.b16 %v1239, %v1238
      %v1243 = vpack.c.b16 %v1241, %v1240
      %vm1246 = vcmask 261120
      %v1248 = vsel %vm1246, %v1230, 0
      %1250 = vmatpush.bf16.msra.mxu0 0
      %1251 = vmatpush.bf16.msra.mxu0 0
      %1252 = vmatpush.bf16.msra.mxu0 0
      %1253 = vmatpush.bf16.msra.mxu0 0
      %1254 = vmatpush.bf16.msra.mxu0 0
      %1255 = vmatpush.bf16.msra.mxu0 0
      %1256 = vmatpush.bf16.msra.mxu0 %v1243
      %1257 = vmatpush.bf16.msra.mxu0 %v1242
      %1258 = vmatmul.bf16.gmra.mxu0 %v1248
      %v1259 = vpop.f32.mrf.mxu0
      %v1260 = vadd.f32 %v1232, %v1259
      %v1261 = vpop.f32.mrf.mxu0
      %1262 = vdwg.mxu0
      %v1263 = vld [vmem:[%s1089] sm:$0xf]
      %v1264 = vld [vmem:[%s1089 + $0x4] sm:$0xf]
      %v1265 = vld [vmem:[%s1089 + $0x8] sm:$0xf]
      %v1266 = vld [vmem:[%s1089 + $0xc] sm:$0xf]
      %v1267 = vmul.f32 %v1260, 0.35355338
      %v1268 = vpack.c.bf16 %v1267, %v1267
      %v1269 = vpack.c.bf16 %v1260, %v1260
      %1271 = vrot.lane.b32.xlu0 %v1269, 96
      %v1272 = vpop.permute.xlu0 %1271
      %vm1273 = vcmask 64512
      %v1275 = vsel %vm1273, %v1268, 0
      %v1278 = vsel %vm1273, %v1272, 0
      %1280 = vmatpush.bf16.xpose.msra.mxu0 0
      %1281 = vmatpush.bf16.xpose.msra.mxu0 0
      %1282 = vmatpush.bf16.xpose.msra.mxu0 0
      %1283 = vmatpush.bf16.xpose.msra.mxu0 0
      %1284 = vmatpush.bf16.xpose.msra.mxu0 0
      %1285 = vmatpush.bf16.xpose.msra.mxu0 0
      %1286 = vmatpush.bf16.xpose.msra.mxu0 0
      %1287 = vmatpush.bf16.xpose.msra.mxu0 %v1278
      %1288 = vmatmul.bf16.gmra.mxu0 %v1275
      %v1289 = vpop.f32.mrf.mxu0
      %v1290 = vadd.f32 0.0, %v1289
      %v1291 = vpop.f32.mrf.mxu0
      %1292 = vdwg.mxu0
      %v1293 = vsel %vm1224, %v1290, -1e+09
      %v1294 = vsel %vm1273, %v1293, -inf
      %1295 = vmax.xlane.f32.xlu0 %v1294
      %v1296 = vpop.xlane.xlu0 %1295
      %v1297 = vsub.f32 %v1293, %v1296
      %v1298 = vmul.f32 %v1297, 1.442695
      %v1299 = vpow.pop %v1298
      %v1300 = vsel %vm1273, %v1299, 0.0
      %1301 = vadd.xlane.f32.xlu0 %v1300
      %v1302 = vpop.xlane.xlu0 %1301
      %v1303 = vrcp.pop %v1302
      %v1304 = vmul.f32 %v1299, %v1303
      %v1305 = vpack.c.bf16 %v1304, %v1304
      %1306 = vrot.lane.b32.xlu0 %v1269, 64
      %v1307 = vpop.permute.xlu0 %1306
      %v1309 = vsel %vm1273, %v1305, 0
      %vm1311 = vcmask 1043456
      %v1313 = vsel %vm1311, %v1307, 0
      %1315 = vmatpush.bf16.msra.mxu0 0
      %1316 = vmatpush.bf16.msra.mxu0 0
      %1317 = vmatpush.bf16.msra.mxu0 0
      %1318 = vmatpush.bf16.msra.mxu0 0
      %1319 = vmatpush.bf16.msra.mxu0 0
      %1320 = vmatpush.bf16.msra.mxu0 0
      %1321 = vmatpush.bf16.msra.mxu0 0
      %1322 = vmatpush.bf16.msra.mxu0 %v1313
      %1323 = vmatmul.bf16.gmra.mxu0 %v1309
      %v1324 = vpop.f32.mrf.mxu0
      %v1325 = vadd.f32 0.0, %v1324
      %v1326 = vpop.f32.mrf.mxu0
      %1327 = vdwg.mxu0
      %v1328 = vpack.c.bf16 %v1325, %v1325
      %1330 = vrot.lane.b32.xlu0 %v1268, 120
      %v1331 = vpop.permute.xlu0 %1330
      %1332 = vrot.lane.b32.xlu0 %v1269, 88
      %v1333 = vpop.permute.xlu0 %1332
      %v1335 = vsel %vm1273, %v1331, 0
      %v1338 = vsel %vm1273, %v1333, 0
      %1340 = vmatpush.bf16.xpose.msra.mxu0 0
      %1341 = vmatpush.bf16.xpose.msra.mxu0 0
      %1342 = vmatpush.bf16.xpose.msra.mxu0 0
      %1343 = vmatpush.bf16.xpose.msra.mxu0 0
      %1344 = vmatpush.bf16.xpose.msra.mxu0 0
      %1345 = vmatpush.bf16.xpose.msra.mxu0 0
      %1346 = vmatpush.bf16.xpose.msra.mxu0 0
      %1347 = vmatpush.bf16.xpose.msra.mxu0 %v1338
      %1348 = vmatmul.bf16.gmra.mxu0 %v1335
      %v1349 = vpop.f32.mrf.mxu0
      %v1350 = vadd.f32 0.0, %v1349
      %v1351 = vpop.f32.mrf.mxu0
      %1352 = vdwg.mxu0
      %v1353 = vsel %vm1224, %v1350, -1e+09
      %v1354 = vsel %vm1273, %v1353, -inf
      %1355 = vmax.xlane.f32.xlu0 %v1354
      %v1356 = vpop.xlane.xlu0 %1355
      %v1357 = vsub.f32 %v1353, %v1356
      %v1358 = vmul.f32 %v1357, 1.442695
      %v1359 = vpow.pop %v1358
      %v1360 = vsel %vm1273, %v1359, 0.0
      %1361 = vadd.xlane.f32.xlu0 %v1360
      %v1362 = vpop.xlane.xlu0 %1361
      %v1363 = vrcp.pop %v1362
      %v1364 = vmul.f32 %v1359, %v1363
      %v1365 = vpack.c.bf16 %v1364, %v1364
      %1366 = vrot.lane.b32.xlu0 %v1269, 56
      %v1367 = vpop.permute.xlu0 %1366
      %v1369 = vsel %vm1273, %v1365, 0
      %v1372 = vsel %vm1311, %v1367, 0
      %1374 = vmatpush.bf16.msra.mxu0 0
      %1375 = vmatpush.bf16.msra.mxu0 0
      %1376 = vmatpush.bf16.msra.mxu0 0
      %1377 = vmatpush.bf16.msra.mxu0 0
      %1378 = vmatpush.bf16.msra.mxu0 0
      %1379 = vmatpush.bf16.msra.mxu0 0
      %1380 = vmatpush.bf16.msra.mxu0 0
      %1381 = vmatpush.bf16.msra.mxu0 %v1372
      %1382 = vmatmul.bf16.gmra.mxu0 %v1369
      %v1383 = vpop.f32.mrf.mxu0
      %v1384 = vadd.f32 0.0, %v1383
      %v1385 = vpop.f32.mrf.mxu0
      %1386 = vdwg.mxu0
      %v1387 = vpack.c.bf16 %v1384, %v1384
      %v1389 = vsel %vm1273, %v1387, 0
      %v1392 = vsel %vm1311, %v1264, 0
      %1394 = vmatpush.bf16.msra.mxu0 0
      %1395 = vmatpush.bf16.msra.mxu0 0
      %1396 = vmatpush.bf16.msra.mxu0 0
      %1397 = vmatpush.bf16.msra.mxu0 0
      %1398 = vmatpush.bf16.msra.mxu0 0
      %1399 = vmatpush.bf16.msra.mxu0 0
      %1400 = vmatpush.bf16.msra.mxu0 0
      %1401 = vmatpush.bf16.msra.mxu0 %v1392
      %1402 = vmatmul.bf16.gmra.mxu0 %v1389
      %v1403 = vpop.f32.mrf.mxu0
      %v1404 = vadd.f32 0.0, %v1403
      %v1405 = vpop.f32.mrf.mxu0
      %1406 = vdwg.mxu0
      %v1408 = vsel %vm1273, %v1328, 0
      %v1411 = vsel %vm1311, %v1263, 0
      %1413 = vmatpush.bf16.msra.mxu0 0
      %1414 = vmatpush.bf16.msra.mxu0 0
      %1415 = vmatpush.bf16.msra.mxu0 0
      %1416 = vmatpush.bf16.msra.mxu0 0
      %1417 = vmatpush.bf16.msra.mxu0 0
      %1418 = vmatpush.bf16.msra.mxu0 0
      %1419 = vmatpush.bf16.msra.mxu0 0
      %1420 = vmatpush.bf16.msra.mxu0 %v1411
      %1421 = vmatmul.bf16.gmra.mxu0 %v1408
      %v1422 = vpop.f32.mrf.mxu0
      %v1423 = vadd.f32 %v1404, %v1422
      %v1424 = vpop.f32.mrf.mxu0
      %1425 = vdwg.mxu0
      %1426 = vrot.lane.b32.xlu0 %v1268, 112
      %v1427 = vpop.permute.xlu0 %1426
      %1428 = vrot.lane.b32.xlu0 %v1269, 80
      %v1429 = vpop.permute.xlu0 %1428
      %v1431 = vsel %vm1273, %v1427, 0
      %v1434 = vsel %vm1273, %v1429, 0
      %1436 = vmatpush.bf16.xpose.msra.mxu0 0
      %1437 = vmatpush.bf16.xpose.msra.mxu0 0
      %1438 = vmatpush.bf16.xpose.msra.mxu0 0
      %1439 = vmatpush.bf16.xpose.msra.mxu0 0
      %1440 = vmatpush.bf16.xpose.msra.mxu0 0
      %1441 = vmatpush.bf16.xpose.msra.mxu0 0
      %1442 = vmatpush.bf16.xpose.msra.mxu0 0
      %1443 = vmatpush.bf16.xpose.msra.mxu0 %v1434
      %1444 = vmatmul.bf16.gmra.mxu0 %v1431
      %v1445 = vpop.f32.mrf.mxu0
      %v1446 = vadd.f32 0.0, %v1445
      %v1447 = vpop.f32.mrf.mxu0
      %1448 = vdwg.mxu0
      %v1449 = vsel %vm1224, %v1446, -1e+09
      %v1450 = vsel %vm1273, %v1449, -inf
      %1451 = vmax.xlane.f32.xlu0 %v1450
      %v1452 = vpop.xlane.xlu0 %1451
      %v1453 = vsub.f32 %v1449, %v1452
      %v1454 = vmul.f32 %v1453, 1.442695
      %v1455 = vpow.pop %v1454
      %v1456 = vsel %vm1273, %v1455, 0.0
      %1457 = vadd.xlane.f32.xlu0 %v1456
      %v1458 = vpop.xlane.xlu0 %1457
      %v1459 = vrcp.pop %v1458
      %v1460 = vmul.f32 %v1455, %v1459
      %v1461 = vpack.c.bf16 %v1460, %v1460
      %1462 = vrot.lane.b32.xlu0 %v1269, 48
      %v1463 = vpop.permute.xlu0 %1462
      %v1465 = vsel %vm1273, %v1461, 0
      %v1468 = vsel %vm1311, %v1463, 0
      %1470 = vmatpush.bf16.msra.mxu0 0
      %1471 = vmatpush.bf16.msra.mxu0 0
      %1472 = vmatpush.bf16.msra.mxu0 0
      %1473 = vmatpush.bf16.msra.mxu0 0
      %1474 = vmatpush.bf16.msra.mxu0 0
      %1475 = vmatpush.bf16.msra.mxu0 0
      %1476 = vmatpush.bf16.msra.mxu0 0
      %1477 = vmatpush.bf16.msra.mxu0 %v1468
      %1478 = vmatmul.bf16.gmra.mxu0 %v1465
      %v1479 = vpop.f32.mrf.mxu0
      %v1480 = vadd.f32 0.0, %v1479
      %v1481 = vpop.f32.mrf.mxu0
      %1482 = vdwg.mxu0
      %v1483 = vpack.c.bf16 %v1480, %v1480
      %v1485 = vsel %vm1273, %v1483, 0
      %v1488 = vsel %vm1311, %v1265, 0
      %1490 = vmatpush.bf16.msra.mxu0 0
      %1491 = vmatpush.bf16.msra.mxu0 0
      %1492 = vmatpush.bf16.msra.mxu0 0
      %1493 = vmatpush.bf16.msra.mxu0 0
      %1494 = vmatpush.bf16.msra.mxu0 0
      %1495 = vmatpush.bf16.msra.mxu0 0
      %1496 = vmatpush.bf16.msra.mxu0 0
      %1497 = vmatpush.bf16.msra.mxu0 %v1488
      %1498 = vmatmul.bf16.gmra.mxu0 %v1485
      %v1499 = vpop.f32.mrf.mxu0
      %v1500 = vadd.f32 0.0, %v1499
      %v1501 = vpop.f32.mrf.mxu0
      %1502 = vdwg.mxu0
      %v1503 = vadd.f32 %v1423, %v1500
      %1504 = vrot.lane.b32.xlu0 %v1268, 104
      %v1505 = vpop.permute.xlu0 %1504
      %1506 = vrot.lane.b32.xlu0 %v1269, 72
      %v1507 = vpop.permute.xlu0 %1506
      %v1509 = vsel %vm1273, %v1505, 0
      %v1512 = vsel %vm1273, %v1507, 0
      %1514 = vmatpush.bf16.xpose.msra.mxu0 0
      %1515 = vmatpush.bf16.xpose.msra.mxu0 0
      %1516 = vmatpush.bf16.xpose.msra.mxu0 0
      %1517 = vmatpush.bf16.xpose.msra.mxu0 0
      %1518 = vmatpush.bf16.xpose.msra.mxu0 0
      %1519 = vmatpush.bf16.xpose.msra.mxu0 0
      %1520 = vmatpush.bf16.xpose.msra.mxu0 0
      %1521 = vmatpush.bf16.xpose.msra.mxu0 %v1512
      %1522 = vmatmul.bf16.gmra.mxu0 %v1509
      %v1523 = vpop.f32.mrf.mxu0
      %v1524 = vadd.f32 0.0, %v1523
      %v1525 = vpop.f32.mrf.mxu0
      %1526 = vdwg.mxu0
      %v1527 = vsel %vm1224, %v1524, -1e+09
      %v1528 = vsel %vm1273, %v1527, -inf
      %1529 = vmax.xlane.f32.xlu0 %v1528
      %v1530 = vpop.xlane.xlu0 %1529
      %v1531 = vsub.f32 %v1527, %v1530
      %v1532 = vmul.f32 %v1531, 1.442695
      %v1533 = vpow.pop %v1532
      %v1534 = vsel %vm1273, %v1533, 0.0
      %1535 = vadd.xlane.f32.xlu0 %v1534
      %v1536 = vpop.xlane.xlu0 %1535
      %v1537 = vrcp.pop %v1536
      %v1538 = vmul.f32 %v1533, %v1537
      %v1539 = vpack.c.bf16 %v1538, %v1538
      %1540 = vrot.lane.b32.xlu0 %v1269, 40
      %v1541 = vpop.permute.xlu0 %1540
      %v1543 = vsel %vm1273, %v1539, 0
      %v1546 = vsel %vm1311, %v1541, 0
      %1548 = vmatpush.bf16.msra.mxu0 0
      %1549 = vmatpush.bf16.msra.mxu0 0
      %1550 = vmatpush.bf16.msra.mxu0 0
      %1551 = vmatpush.bf16.msra.mxu0 0
      %1552 = vmatpush.bf16.msra.mxu0 0
      %1553 = vmatpush.bf16.msra.mxu0 0
      %1554 = vmatpush.bf16.msra.mxu0 0
      %1555 = vmatpush.bf16.msra.mxu0 %v1546
      %1556 = vmatmul.bf16.gmra.mxu0 %v1543
      %v1557 = vpop.f32.mrf.mxu0
      %v1558 = vadd.f32 0.0, %v1557
      %v1559 = vpop.f32.mrf.mxu0
      %1560 = vdwg.mxu0
      %v1561 = vpack.c.bf16 %v1558, %v1558
      %v1563 = vsel %vm1273, %v1561, 0
      %v1566 = vsel %vm1311, %v1266, 0
      %1568 = vmatpush.bf16.msra.mxu0 0
      %1569 = vmatpush.bf16.msra.mxu0 0
      %1570 = vmatpush.bf16.msra.mxu0 0
      %1571 = vmatpush.bf16.msra.mxu0 0
      %1572 = vmatpush.bf16.msra.mxu0 0
      %1573 = vmatpush.bf16.msra.mxu0 0
      %1574 = vmatpush.bf16.msra.mxu0 0
      %1575 = vmatpush.bf16.msra.mxu0 %v1566
      %1576 = vmatmul.bf16.gmra.mxu0 %v1563
      %v1577 = vpop.f32.mrf.mxu0
      %v1578 = vadd.f32 0.0, %v1577
      %v1579 = vpop.f32.mrf.mxu0
      %1580 = vdwg.mxu0
      %v1581 = vadd.f32 %v1503, %v1578
      %v1582 = vld [vmem:[%s1092] sm:$0x1]
      %v1584 = vperm.slane %v1582, 0
      %v1586 = vadd.f32 %v1581, %v1584
      %v1587 = vadd.f32 %v1586, %v1220
      %v1588 = vld [vmem:[%s1095] sm:$0x1]
      %v1589 = vld [vmem:[%s1098] sm:$0x1]
      %v1590 = vsel %vm1246, %v1587, 0.0
      %1591 = vadd.xlane.f32.xlu0 %v1590
      %v1592 = vpop.xlane.xlu0 %1591
      %v1593 = vrcp.pop 32.0
      %v1594 = vmul.f32 32.0, %v1593
      %v1595 = vsub.f32 1.0, %v1594
      %v1596 = vmul.f32 %v1593, %v1595
      %v1597 = vadd.f32 %v1593, %v1596
      %vm1598 = vweird.f32 %v1593
      %v1599 = vsel %vm1598, %v1593, %v1597
      %v1600 = vmul.f32 %v1592, %v1599
      %v1601 = vsub.f32 %v1587, %v1600
      %v1602 = vmul.f32 %v1601, %v1601
      %v1603 = vsel %vm1246, %v1602, 0.0
      %1604 = vadd.xlane.f32.xlu0 %v1603
      %v1605 = vpop.xlane.xlu0 %1604
      %v1606 = vmul.f32 %v1605, %v1599
      %v1607 = vadd.f32 %v1606, 1e-05
      %v1608 = vrsqrt.pop %v1607
      %v1609 = vmul.f32 %v1608, %v1607
      %v1610 = vmul.f32 %v1609, %v1608
      %v1611 = vmul.f32 0.5, %v1610
      %v1612 = vsub.f32 1.5, %v1611
      %v1613 = vmul.f32 %v1608, %v1612
      %vm1614 = vweird.f32 %v1607
      %vm1615 = vweird.f32 %v1608
      %vm1616 = vmor %vm1614, %vm1615
      %v1617 = vsel %vm1616, %v1608, %v1613
      %v1618 = vmul.f32 %v1601, %v1617
      %v1620 = vperm.slane %v1588, 0
      %v1622 = vmul.f32 %v1618, %v1620
      %v1624 = vperm.slane %v1589, 0
      %v1626 = vadd.f32 %v1622, %v1624
      %v1627 = vld [vmem:[%s1103] sm:$0xf]
      %v1628 = vld [vmem:[%s1103 + $0x4] sm:$0xf]
      %v1629 = vld [vmem:[%s1103 + $0x8] sm:$0xf]
      %v1630 = vld [vmem:[%s1103 + $0xc] sm:$0xf]
      %v1631 = vld [vmem:[%s1106] sm:$0x1]
      %v1632 = vpack.c.bf16 %v1626, %v1626
      %v1634 = vperm.slane %v1631, 0
      %v1640 = vunpack.c.l.b16 %v1627
      %v1641 = vunpack.c.l.b16 %v1628
      %v1642 = vunpack.c.l.b16 %v1629
      %v1643 = vunpack.c.l.b16 %v1630
      %v1644 = vpack.c.b16 %v1641, %v1640
      %v1645 = vpack.c.b16 %v1643, %v1642
      %v1649 = vsel %vm1246, %v1632, 0
      %1651 = vmatpush.bf16.msra.mxu0 0
      %1652 = vmatpush.bf16.msra.mxu0 0
      %1653 = vmatpush.bf16.msra.mxu0 0
      %1654 = vmatpush.bf16.msra.mxu0 0
      %1655 = vmatpush.bf16.msra.mxu0 0
      %1656 = vmatpush.bf16.msra.mxu0 0
      %1657 = vmatpush.bf16.msra.mxu0 %v1645
      %1658 = vmatpush.bf16.msra.mxu0 %v1644
      %1659 = vmatmul.bf16.gmra.mxu0 %v1649
      %v1660 = vpop.f32.mrf.mxu0
      %v1661 = vadd.f32 %v1634, %v1660
      %v1662 = vpop.f32.mrf.mxu0
      %1663 = vdwg.mxu0
      %v1664 = vld [vmem:[%s1111] sm:$0xf]
      %v1665 = vld [vmem:[%s1111 + $0x4] sm:$0xf]
      %v1666 = vld [vmem:[%s1111 + $0x8] sm:$0xf]
      %v1667 = vld [vmem:[%s1111 + $0xc] sm:$0xf]
      %v1668 = vld [vmem:[%s1114] sm:$0x1]
      %v1669 = vpack.c.bf16 %v1222, %v1221
      %v1671 = vperm.slane %v1668, 0
      %v1677 = vunpack.c.l.b16 %v1664
      %v1678 = vunpack.c.l.b16 %v1665
      %v1679 = vunpack.c.l.b16 %v1666
      %v1680 = vunpack.c.l.b16 %v1667
      %v1681 = vpack.c.b16 %v1678, %v1677
      %v1682 = vpack.c.b16 %v1680, %v1679
      %v1686 = vsel %vm1246, %v1669, 0
      %1688 = vmatpush.bf16.msra.mxu0 0
      %1689 = vmatpush.bf16.msra.mxu0 0
      %1690 = vmatpush.bf16.msra.mxu0 0
      %1691 = vmatpush.bf16.msra.mxu0 0
      %1692 = vmatpush.bf16.msra.mxu0 0
      %1693 = vmatpush.bf16.msra.mxu0 0
      %1694 = vmatpush.bf16.msra.mxu0 %v1682
      %1695 = vmatpush.bf16.msra.mxu0 %v1681
      %1696 = vmatmul.bf16.gmra.mxu0 %v1686
      %v1697 = vpop.f32.mrf.mxu0
      %v1698 = vadd.f32 %v1671, %v1697
      %v1699 = vpop.f32.mrf.mxu0
      %v1700 = vadd.f32 %v1671, %v1699
      %1701 = vdwg.mxu0
      %v1702 = vld [vmem:[%s1119] sm:$0xf]
      %v1703 = vld [vmem:[%s1119 + $0x4] sm:$0xf]
      %v1704 = vld [vmem:[%s1119 + $0x8] sm:$0xf]
      %v1705 = vld [vmem:[%s1119 + $0xc] sm:$0xf]
      %v1706 = vmul.f32 %v1661, 0.35355338
      %v1707 = vpack.c.bf16 %v1706, %v1706
      %v1708 = vpack.c.bf16 %v1700, %v1698
      %v1710 = vsel %vm1273, %v1707, 0
      %v1713 = vsel %vm1273, %v1708, 0
      %1715 = vmatpush.bf16.xpose.msra.mxu0 0
      %1716 = vmatpush.bf16.xpose.msra.mxu0 0
      %1717 = vmatpush.bf16.xpose.msra.mxu0 0
      %1718 = vmatpush.bf16.xpose.msra.mxu0 0
      %1719 = vmatpush.bf16.xpose.msra.mxu0 0
      %1720 = vmatpush.bf16.xpose.msra.mxu0 0
      %1721 = vmatpush.bf16.xpose.msra.mxu0 0
      %1722 = vmatpush.bf16.xpose.msra.mxu0 %v1713
      %1723 = vmatmul.bf16.gmra.mxu0 %v1710
      %v1724 = vpop.f32.mrf.mxu0
      %v1725 = vadd.f32 0.0, %v1724
      %v1726 = vpop.f32.mrf.mxu0
      %1727 = vdwg.mxu0
      %vm1728 = vcmask 130048
      %v1729 = vsel %vm1728, %v1725, -inf
      %1730 = vmax.xlane.f32.xlu0 %v1729
      %v1731 = vpop.xlane.xlu0 %1730
      %v1732 = vsub.f32 %v1725, %v1731
      %v1733 = vmul.f32 %v1732, 1.442695
      %v1734 = vpow.pop %v1733
      %v1735 = vsel %vm1728, %v1734, 0.0
      %1736 = vadd.xlane.f32.xlu0 %v1735
      %v1737 = vpop.xlane.xlu0 %1736
      %v1738 = vrcp.pop %v1737
      %v1739 = vmul.f32 %v1734, %v1738
      %v1740 = vpack.c.bf16 %v1739, %v1739
      %1742 = vrot.lane.b32.xlu0 %v1708, 96
      %v1743 = vpop.permute.xlu0 %1742
      %v1746 = vsel %vm1728, %v1740, 0
      %1748 = vmatpush.bf16.msra.mxu0 0
      %1749 = vmatpush.bf16.msra.mxu0 0
      %1750 = vmatpush.bf16.msra.mxu0 0
      %1751 = vmatpush.bf16.msra.mxu0 0
      %1752 = vmatpush.bf16.msra.mxu0 0
      %1753 = vmatpush.bf16.msra.mxu0 0
      %1754 = vmatpush.bf16.msra.mxu0 0
      %1755 = vmatpush.bf16.msra.mxu0 %v1743
      %1756 = vmatmul.bf16.gmra.mxu0 %v1746
      %v1757 = vpop.f32.mrf.mxu0
      %v1758 = vadd.f32 0.0, %v1757
      %v1759 = vpop.f32.mrf.mxu0
      %1760 = vdwg.mxu0
      %v1761 = vpack.c.bf16 %v1758, %v1758
      %1763 = vrot.lane.b32.xlu0 %v1707, 120
      %v1764 = vpop.permute.xlu0 %1763
      %1765 = vrot.lane.b32.xlu0 %v1708, 120
      %v1766 = vpop.permute.xlu0 %1765
      %v1768 = vsel %vm1273, %v1764, 0
      %v1771 = vsel %vm1273, %v1766, 0
      %1773 = vmatpush.bf16.xpose.msra.mxu0 0
      %1774 = vmatpush.bf16.xpose.msra.mxu0 0
      %1775 = vmatpush.bf16.xpose.msra.mxu0 0
      %1776 = vmatpush.bf16.xpose.msra.mxu0 0
      %1777 = vmatpush.bf16.xpose.msra.mxu0 0
      %1778 = vmatpush.bf16.xpose.msra.mxu0 0
      %1779 = vmatpush.bf16.xpose.msra.mxu0 0
      %1780 = vmatpush.bf16.xpose.msra.mxu0 %v1771
      %1781 = vmatmul.bf16.gmra.mxu0 %v1768
      %v1782 = vpop.f32.mrf.mxu0
      %v1783 = vadd.f32 0.0, %v1782
      %v1784 = vpop.f32.mrf.mxu0
      %1785 = vdwg.mxu0
      %v1786 = vsel %vm1728, %v1783, -inf
      %1787 = vmax.xlane.f32.xlu0 %v1786
      %v1788 = vpop.xlane.xlu0 %1787
      %v1789 = vsub.f32 %v1783, %v1788
      %v1790 = vmul.f32 %v1789, 1.442695
      %v1791 = vpow.pop %v1790
      %v1792 = vsel %vm1728, %v1791, 0.0
      %1793 = vadd.xlane.f32.xlu0 %v1792
      %v1794 = vpop.xlane.xlu0 %1793
      %v1795 = vrcp.pop %v1794
      %v1796 = vmul.f32 %v1791, %v1795
      %v1797 = vpack.c.bf16 %v1796, %v1796
      %1798 = vrot.lane.b32.xlu0 %v1708, 88
      %v1799 = vpop.permute.xlu0 %1798
      %v1802 = vsel %vm1728, %v1797, 0
      %1804 = vmatpush.bf16.msra.mxu0 0
      %1805 = vmatpush.bf16.msra.mxu0 0
      %1806 = vmatpush.bf16.msra.mxu0 0
      %1807 = vmatpush.bf16.msra.mxu0 0
      %1808 = vmatpush.bf16.msra.mxu0 0
      %1809 = vmatpush.bf16.msra.mxu0 0
      %1810 = vmatpush.bf16.msra.mxu0 0
      %1811 = vmatpush.bf16.msra.mxu0 %v1799
      %1812 = vmatmul.bf16.gmra.mxu0 %v1802
      %v1813 = vpop.f32.mrf.mxu0
      %v1814 = vadd.f32 0.0, %v1813
      %v1815 = vpop.f32.mrf.mxu0
      %1816 = vdwg.mxu0
      %v1817 = vpack.c.bf16 %v1814, %v1814
      %v1819 = vsel %vm1273, %v1817, 0
      %v1822 = vsel %vm1311, %v1703, 0
      %1824 = vmatpush.bf16.msra.mxu0 0
      %1825 = vmatpush.bf16.msra.mxu0 0
      %1826 = vmatpush.bf16.msra.mxu0 0
      %1827 = vmatpush.bf16.msra.mxu0 0
      %1828 = vmatpush.bf16.msra.mxu0 0
      %1829 = vmatpush.bf16.msra.mxu0 0
      %1830 = vmatpush.bf16.msra.mxu0 0
      %1831 = vmatpush.bf16.msra.mxu0 %v1822
      %1832 = vmatmul.bf16.gmra.mxu0 %v1819
      %v1833 = vpop.f32.mrf.mxu0
      %v1834 = vadd.f32 0.0, %v1833
      %v1835 = vpop.f32.mrf.mxu0
      %1836 = vdwg.mxu0
      %v1838 = vsel %vm1273, %v1761, 0
      %v1841 = vsel %vm1311, %v1702, 0
      %1843 = vmatpush.bf16.msra.mxu0 0
      %1844 = vmatpush.bf16.msra.mxu0 0
      %1845 = vmatpush.bf16.msra.mxu0 0
      %1846 = vmatpush.bf16.msra.mxu0 0
      %1847 = vmatpush.bf16.msra.mxu0 0
      %1848 = vmatpush.bf16.msra.mxu0 0
      %1849 = vmatpush.bf16.msra.mxu0 0
      %1850 = vmatpush.bf16.msra.mxu0 %v1841
      %1851 = vmatmul.bf16.gmra.mxu0 %v1838
      %v1852 = vpop.f32.mrf.mxu0
      %v1853 = vadd.f32 %v1834, %v1852
      %v1854 = vpop.f32.mrf.mxu0
      %1855 = vdwg.mxu0
      %1856 = vrot.lane.b32.xlu0 %v1707, 112
      %v1857 = vpop.permute.xlu0 %1856
      %1858 = vrot.lane.b32.xlu0 %v1708, 112
      %v1859 = vpop.permute.xlu0 %1858
      %v1861 = vsel %vm1273, %v1857, 0
      %v1864 = vsel %vm1273, %v1859, 0
      %1866 = vmatpush.bf16.xpose.msra.mxu0 0
      %1867 = vmatpush.bf16.xpose.msra.mxu0 0
      %1868 = vmatpush.bf16.xpose.msra.mxu0 0
      %1869 = vmatpush.bf16.xpose.msra.mxu0 0
      %1870 = vmatpush.bf16.xpose.msra.mxu0 0
      %1871 = vmatpush.bf16.xpose.msra.mxu0 0
      %1872 = vmatpush.bf16.xpose.msra.mxu0 0
      %1873 = vmatpush.bf16.xpose.msra.mxu0 %v1864
      %1874 = vmatmul.bf16.gmra.mxu0 %v1861
      %v1875 = vpop.f32.mrf.mxu0
      %v1876 = vadd.f32 0.0, %v1875
      %v1877 = vpop.f32.mrf.mxu0
      %1878 = vdwg.mxu0
      %v1879 = vsel %vm1728, %v1876, -inf
      %1880 = vmax.xlane.f32.xlu0 %v1879
      %v1881 = vpop.xlane.xlu0 %1880
      %v1882 = vsub.f32 %v1876, %v1881
      %v1883 = vmul.f32 %v1882, 1.442695
      %v1884 = vpow.pop %v1883
      %v1885 = vsel %vm1728, %v1884, 0.0
      %1886 = vadd.xlane.f32.xlu0 %v1885
      %v1887 = vpop.xlane.xlu0 %1886
      %v1888 = vrcp.pop %v1887
      %v1889 = vmul.f32 %v1884, %v1888
      %v1890 = vpack.c.bf16 %v1889, %v1889
      %1891 = vrot.lane.b32.xlu0 %v1708, 80
      %v1892 = vpop.permute.xlu0 %1891
      %v1895 = vsel %vm1728, %v1890, 0
      %1897 = vmatpush.bf16.msra.mxu0 0
      %1898 = vmatpush.bf16.msra.mxu0 0
      %1899 = vmatpush.bf16.msra.mxu0 0
      %1900 = vmatpush.bf16.msra.mxu0 0
      %1901 = vmatpush.bf16.msra.mxu0 0
      %1902 = vmatpush.bf16.msra.mxu0 0
      %1903 = vmatpush.bf16.msra.mxu0 0
      %1904 = vmatpush.bf16.msra.mxu0 %v1892
      %1905 = vmatmul.bf16.gmra.mxu0 %v1895
      %v1906 = vpop.f32.mrf.mxu0
      %v1907 = vadd.f32 0.0, %v1906
      %v1908 = vpop.f32.mrf.mxu0
      %1909 = vdwg.mxu0
      %v1910 = vpack.c.bf16 %v1907, %v1907
      %v1912 = vsel %vm1273, %v1910, 0
      %v1915 = vsel %vm1311, %v1704, 0
      %1917 = vmatpush.bf16.msra.mxu0 0
      %1918 = vmatpush.bf16.msra.mxu0 0
      %1919 = vmatpush.bf16.msra.mxu0 0
      %1920 = vmatpush.bf16.msra.mxu0 0
      %1921 = vmatpush.bf16.msra.mxu0 0
      %1922 = vmatpush.bf16.msra.mxu0 0
      %1923 = vmatpush.bf16.msra.mxu0 0
      %1924 = vmatpush.bf16.msra.mxu0 %v1915
      %1925 = vmatmul.bf16.gmra.mxu0 %v1912
      %v1926 = vpop.f32.mrf.mxu0
      %v1927 = vadd.f32 0.0, %v1926
      %v1928 = vpop.f32.mrf.mxu0
      %1929 = vdwg.mxu0
      %v1930 = vadd.f32 %v1853, %v1927
      %1931 = vrot.lane.b32.xlu0 %v1707, 104
      %v1932 = vpop.permute.xlu0 %1931
      %1933 = vrot.lane.b32.xlu0 %v1708, 104
      %v1934 = vpop.permute.xlu0 %1933
      %v1936 = vsel %vm1273, %v1932, 0
      %v1939 = vsel %vm1273, %v1934, 0
      %1941 = vmatpush.bf16.xpose.msra.mxu0 0
      %1942 = vmatpush.bf16.xpose.msra.mxu0 0
      %1943 = vmatpush.bf16.xpose.msra.mxu0 0
      %1944 = vmatpush.bf16.xpose.msra.mxu0 0
      %1945 = vmatpush.bf16.xpose.msra.mxu0 0
      %1946 = vmatpush.bf16.xpose.msra.mxu0 0
      %1947 = vmatpush.bf16.xpose.msra.mxu0 0
      %1948 = vmatpush.bf16.xpose.msra.mxu0 %v1939
      %1949 = vmatmul.bf16.gmra.mxu0 %v1936
      %v1950 = vpop.f32.mrf.mxu0
      %v1951 = vadd.f32 0.0, %v1950
      %v1952 = vpop.f32.mrf.mxu0
      %1953 = vdwg.mxu0
      %v1954 = vsel %vm1728, %v1951, -inf
      %1955 = vmax.xlane.f32.xlu0 %v1954
      %v1956 = vpop.xlane.xlu0 %1955
      %v1957 = vsub.f32 %v1951, %v1956
      %v1958 = vmul.f32 %v1957, 1.442695
      %v1959 = vpow.pop %v1958
      %v1960 = vsel %vm1728, %v1959, 0.0
      %1961 = vadd.xlane.f32.xlu0 %v1960
      %v1962 = vpop.xlane.xlu0 %1961
      %v1963 = vrcp.pop %v1962
      %v1964 = vmul.f32 %v1959, %v1963
      %v1965 = vpack.c.bf16 %v1964, %v1964
      %1966 = vrot.lane.b32.xlu0 %v1708, 72
      %v1967 = vpop.permute.xlu0 %1966
      %v1970 = vsel %vm1728, %v1965, 0
      %1972 = vmatpush.bf16.msra.mxu0 0
      %1973 = vmatpush.bf16.msra.mxu0 0
      %1974 = vmatpush.bf16.msra.mxu0 0
      %1975 = vmatpush.bf16.msra.mxu0 0
      %1976 = vmatpush.bf16.msra.mxu0 0
      %1977 = vmatpush.bf16.msra.mxu0 0
      %1978 = vmatpush.bf16.msra.mxu0 0
      %1979 = vmatpush.bf16.msra.mxu0 %v1967
      %1980 = vmatmul.bf16.gmra.mxu0 %v1970
      %v1981 = vpop.f32.mrf.mxu0
      %v1982 = vadd.f32 0.0, %v1981
      %v1983 = vpop.f32.mrf.mxu0
      %1984 = vdwg.mxu0
      %v1985 = vpack.c.bf16 %v1982, %v1982
      %v1987 = vsel %vm1273, %v1985, 0
      %v1990 = vsel %vm1311, %v1705, 0
      %1992 = vmatpush.bf16.msra.mxu0 0
      %1993 = vmatpush.bf16.msra.mxu0 0
      %1994 = vmatpush.bf16.msra.mxu0 0
      %1995 = vmatpush.bf16.msra.mxu0 0
      %1996 = vmatpush.bf16.msra.mxu0 0
      %1997 = vmatpush.bf16.msra.mxu0 0
      %1998 = vmatpush.bf16.msra.mxu0 0
      %1999 = vmatpush.bf16.msra.mxu0 %v1990
      %2000 = vmatmul.bf16.gmra.mxu0 %v1987
      %v2001 = vpop.f32.mrf.mxu0
      %v2002 = vadd.f32 0.0, %v2001
      %v2003 = vpop.f32.mrf.mxu0
      %2004 = vdwg.mxu0
      %v2005 = vadd.f32 %v1930, %v2002
      %v2006 = vld [vmem:[%s1122] sm:$0x1]
      %v2008 = vperm.slane %v2006, 0
      %v2010 = vadd.f32 %v2005, %v2008
      %v2011 = vadd.f32 %v2010, %v1626
      %v2012 = vld [vmem:[%s1125] sm:$0x1]
      %v2013 = vld [vmem:[%s1128] sm:$0x1]
      %v2014 = vsel %vm1246, %v2011, 0.0
      %2015 = vadd.xlane.f32.xlu0 %v2014
      %v2016 = vpop.xlane.xlu0 %2015
      %v2017 = vmul.f32 %v2016, %v1599
      %v2018 = vsub.f32 %v2011, %v2017
      %v2019 = vmul.f32 %v2018, %v2018
      %v2020 = vsel %vm1246, %v2019, 0.0
      %2021 = vadd.xlane.f32.xlu0 %v2020
      %v2022 = vpop.xlane.xlu0 %2021
      %v2023 = vmul.f32 %v2022, %v1599
      %v2024 = vadd.f32 %v2023, 1e-05
      %v2025 = vrsqrt.pop %v2024
      %v2026 = vmul.f32 %v2025, %v2024
      %v2027 = vmul.f32 %v2026, %v2025
      %v2028 = vmul.f32 0.5, %v2027
      %v2029 = vsub.f32 1.5, %v2028
      %v2030 = vmul.f32 %v2025, %v2029
      %vm2031 = vweird.f32 %v2024
      %vm2032 = vweird.f32 %v2025
      %vm2033 = vmor %vm2031, %vm2032
      %v2034 = vsel %vm2033, %v2025, %v2030
      %v2035 = vmul.f32 %v2018, %v2034
      %v2037 = vperm.slane %v2012, 0
      %v2039 = vmul.f32 %v2035, %v2037
      %v2041 = vperm.slane %v2013, 0
      %v2043 = vadd.f32 %v2039, %v2041
      %v2044 = vld [vmem:[%s1133] sm:$0xf]
      %v2045 = vld [vmem:[%s1133 + $0x4] sm:$0xf]
      %v2046 = vld [vmem:[%s1133 + $0x8] sm:$0xf]
      %v2047 = vld [vmem:[%s1133 + $0xc] sm:$0xf]
      %v2048 = vld [vmem:[%s1136] sm:$0x1]
      %v2049 = vpack.c.bf16 %v2043, %v2043
      %v2051 = vperm.slane %v2048, 0
      %v2057 = vunpack.c.l.b16 %v2044
      %v2058 = vunpack.c.l.b16 %v2045
      %v2059 = vunpack.c.l.b16 %v2046
      %v2060 = vunpack.c.l.b16 %v2047
      %v2061 = vpack.c.b16 %v2058, %v2057
      %v2062 = vpack.c.b16 %v2060, %v2059
      %v2066 = vsel %vm1246, %v2049, 0
      %2068 = vmatpush.bf16.msra.mxu0 0
      %2069 = vmatpush.bf16.msra.mxu0 0
      %2070 = vmatpush.bf16.msra.mxu0 0
      %2071 = vmatpush.bf16.msra.mxu0 0
      %2072 = vmatpush.bf16.msra.mxu0 0
      %2073 = vmatpush.bf16.msra.mxu0 0
      %2074 = vmatpush.bf16.msra.mxu0 %v2062
      %2075 = vmatpush.bf16.msra.mxu0 %v2061
      %2076 = vmatmul.bf16.gmra.mxu0 %v2066
      %v2077 = vpop.f32.mrf.mxu0
      %v2078 = vadd.f32 %v2051, %v2077
      %v2079 = vpop.f32.mrf.mxu0
      %2080 = vdwg.mxu0
      %v2081 = vmax.f32 %v2078, 0.0
      %v2082 = vld [vmem:[%s1141] sm:$0xf]
      %v2083 = vld [vmem:[%s1141 + $0x4] sm:$0xf]
      %v2084 = vld [vmem:[%s1141 + $0x8] sm:$0xf]
      %v2085 = vld [vmem:[%s1141 + $0xc] sm:$0xf]
      %v2086 = vld [vmem:[%s1141 + $0x10] sm:$0xf]
      %v2087 = vld [vmem:[%s1141 + $0x14] sm:$0xf]
      %v2088 = vld [vmem:[%s1141 + $0x18] sm:$0xf]
      %v2089 = vld [vmem:[%s1141 + $0x1c] sm:$0xf]
      %v2090 = vld [vmem:[%s1144] sm:$0x1]
      %v2091 = vpack.c.bf16 %v2081, %v2081
      %v2093 = vperm.slane %v2090, 0
      %v2103 = vunpack.c.l.b16 %v2082
      %v2104 = vunpack.c.l.b16 %v2083
      %v2105 = vunpack.c.l.b16 %v2084
      %v2106 = vunpack.c.l.b16 %v2085
      %v2107 = vunpack.c.l.b16 %v2086
      %v2108 = vunpack.c.l.b16 %v2087
      %v2109 = vunpack.c.l.b16 %v2088
      %v2110 = vunpack.c.l.b16 %v2089
      %v2111 = vpack.c.b16 %v2104, %v2103
      %v2112 = vpack.c.b16 %v2106, %v2105
      %v2113 = vpack.c.b16 %v2108, %v2107
      %v2114 = vpack.c.b16 %v2110, %v2109
      %vm2119 = vcmask 523264
      %v2121 = vsel %vm2119, %v2091, 0
      %2123 = vmatpush.bf16.msra.mxu0 0
      %2124 = vmatpush.bf16.msra.mxu0 0
      %2125 = vmatpush.bf16.msra.mxu0 0
      %2126 = vmatpush.bf16.msra.mxu0 0
      %2127 = vmatpush.bf16.msra.mxu0 %v2114
      %2128 = vmatpush.bf16.msra.mxu0 %v2113
      %2129 = vmatpush.bf16.msra.mxu0 %v2112
      %2130 = vmatpush.bf16.msra.mxu0 %v2111
      %2131 = vmatmul.bf16.gmra.mxu0 %v2121
      %v2132 = vpop.f32.mrf.mxu0
      %v2133 = vadd.f32 %v2093, %v2132
      %v2134 = vpop.f32.mrf.mxu0
      %2135 = vdwg.mxu0
      %v2136 = vadd.f32 %v2133, %v2043
      %v2137 = vld [vmem:[%s1147] sm:$0x1]
      %v2138 = vld [vmem:[%s1150] sm:$0x1]
      %v2139 = vsel %vm1246, %v2136, 0.0
      %2140 = vadd.xlane.f32.xlu0 %v2139
      %v2141 = vpop.xlane.xlu0 %2140
      %v2142 = vmul.f32 %v2141, %v1599
      %v2143 = vsub.f32 %v2136, %v2142
      %v2144 = vmul.f32 %v2143, %v2143
      %v2145 = vsel %vm1246, %v2144, 0.0
      %2146 = vadd.xlane.f32.xlu0 %v2145
      %v2147 = vpop.xlane.xlu0 %2146
      %v2148 = vmul.f32 %v2147, %v1599
      %v2149 = vadd.f32 %v2148, 1e-05
      %v2150 = vrsqrt.pop %v2149
      %v2151 = vmul.f32 %v2150, %v2149
      %v2152 = vmul.f32 %v2151, %v2150
      %v2153 = vmul.f32 0.5, %v2152
      %v2154 = vsub.f32 1.5, %v2153
      %v2155 = vmul.f32 %v2150, %v2154
      %vm2156 = vweird.f32 %v2149
      %vm2157 = vweird.f32 %v2150
      %vm2158 = vmor %vm2156, %vm2157
      %v2159 = vsel %vm2158, %v2150, %v2155
      %v2160 = vmul.f32 %v2143, %v2159
      %v2162 = vperm.slane %v2137, 0
      %v2164 = vmul.f32 %v2160, %v2162
      %v2166 = vperm.slane %v2138, 0
      %v2168 = vadd.f32 %v2164, %v2166
      %2169 = vst.msk [vmem:[%s1154] sm:$0xff] %vm1246, %v2168
      %p2170 = scmp.lt.s32.totalorder %s41, 1
      %s2171 = scalar_select %p2170, %s41, 1
      %s2172 = smul.addr %s2171, 8
      %s2173 = scalar_lea.vmem %s26, %s2172
      // Predicated region
      $region129: #{decoder_forward.2} parent=123 // pred_check
        %p2174 = pneg %p728
      $region130: #{decoder_forward.2} parent=123 // pred_check_branch
        %2176 = sbr.rel (%p2174) target = $region132
      $region131: #{decoder_forward.2} parent=123 // pred_region
        _
      $region132: #{decoder_forward.2} parent=123 // pred_fallthru
        _
    $region124: #{decoder_forward.2} parent=5 // pred_fallthru
      _
    %p2177 = scmp.le.s32.totalorder 2, %s32
    // Predicated region
    $region133: #{decoder_forward.2} parent=5 // pred_check
      %p2178 = pneg %p2177
    $region134: #{decoder_forward.2} parent=5 // pred_check_branch
      %2180 = sbr.rel (%p2178) target = $region136
    $region135: #{decoder_forward.2} parent=5 // pred_region
      %s2181 = ssub.s32 %s32, 2
      // Predicated region
      $region137: #{decoder_forward.2} parent=135 // pred_check
        %p2182 = pneg %p734
      $region138: #{decoder_forward.2} parent=135 // pred_check_branch
        %2184 = sbr.rel (%p2182) target = $region140
      $region139: #{decoder_forward.2} parent=135 // pred_region
        %p2185 = scmp.lt.s32.totalorder %s43, 1
        %s2186 = scalar_select %p2185, %s43, 1
        %s2187 = smul.addr %s2186, 8
        %s2188 = scalar_lea.vmem %s26, %s2187
      $region140: #{decoder_forward.2} parent=135 // pred_fallthru
        _
    $region136: #{decoder_forward.2} parent=5 // pred_fallthru
      _
  $region6: #{decoder_forward.2} parent=0 // loop_footer
    %s36 = sadd.s32 1, %s32
  $region7: #{decoder_forward.2} parent=0 // loop_footer_branch
    %31 = sbr.rel target = $region3
  $region8: #{decoder_forward.2} parent=0 // loop_exit
    _

</llo_original>
